<compile_context>
chip_gen: v7x
topology: tpu7x:2x2x1
jax: 0.10.0
libtpu: 0.0.40
codegen_flags: <defaults>
</compile_context>

<pallas_src>
import functools

import jax
import jax.numpy as jnp
from jax.experimental import pallas as pl
from jax.experimental.pallas import tpu as pltpu

_LN_EPS = 1e-5  # torch LayerNorm default eps


def _layernorm(x, g, b):
    mu = jnp.mean(x, axis=-1, keepdims=True)
    xc = x - mu
    var = jnp.mean(xc * xc, axis=-1, keepdims=True)
    return xc * jax.lax.rsqrt(var + _LN_EPS) * g + b


# --------------------------------------------------------------------------- #
# Fused Pallas kernels
# --------------------------------------------------------------------------- #
def _cte_kernel(p_ref, w_ref, b_ref, g_ref, bb_ref, o_ref):
    """im2col patches @ conv-weight + bias, then LayerNorm (one fused kernel)."""
    acc = jnp.dot(p_ref[...], w_ref[...],
                  preferred_element_type=jnp.float32) + b_ref[...]
    o_ref[...] = _layernorm(acc, g_ref[...], bb_ref[...]).astype(o_ref.dtype)


def _cpsa_kernel(x_ref, g_ref, b_ref, wq_ref, bq_ref, wk_ref, bk_ref,
                 wv_ref, bv_ref, wp_ref, bp_ref, o_ref, xn_ref, acc_ref):
    """Pre-norm multi-head self-attention + projection + residual.

    grid = (batch, head); head axis is "arbitrary": the per-head contribution
    o_h @ Wp_h is accumulated in a VMEM f32 scratch (equivalent to concat+proj).
    Only 2-D dots are used -- no lane-axis head slicing, no concatenate.
    """
    h_idx = pl.program_id(1)

    @pl.when(h_idx == 0)
    def _():
        xn_ref[...] = _layernorm(x_ref[...], g_ref[...],
                                 b_ref[...]).astype(xn_ref.dtype)
        acc_ref[...] = jnp.zeros_like(acc_ref)

    xn = xn_ref[...]                                                  # (N, dim) bf16
    # Attention scale is pre-folded into wq/bq at parameter-prep time.
    q = jnp.dot(xn, wq_ref[0], preferred_element_type=jnp.float32) + bq_ref[0]
    k = jnp.dot(xn, wk_ref[0], preferred_element_type=jnp.float32) + bk_ref[0]
    v = jnp.dot(xn, wv_ref[0], preferred_element_type=jnp.float32) + bv_ref[0]

    s = jax.lax.dot_general(q.astype(jnp.bfloat16), k.astype(jnp.bfloat16),
                            (((1,), (1,)), ((), ())),
                            preferred_element_type=jnp.float32)       # (N, N)
    s = s - jnp.max(s, axis=-1, keepdims=True)
    p = jnp.exp(s)
    p = p * pl.reciprocal(jnp.sum(p, axis=-1, keepdims=True), approx=True)

    o = jnp.dot(p.astype(jnp.bfloat16), v.astype(jnp.bfloat16),
                preferred_element_type=jnp.float32)                   # (N, hd)
    acc_ref[...] += jnp.dot(o.astype(jnp.bfloat16), wp_ref[0],
                            preferred_element_type=jnp.float32)       # (N, dim)

    @pl.when(h_idx == pl.num_programs(1) - 1)
    def _():
        o_ref[...] = (x_ref[...] + acc_ref[...] + bp_ref[...]).astype(o_ref.dtype)


def _lffn_kernel(x_ref, g_ref, b_ref, w1_ref, b1_ref, wd_ref, bd_ref,
                 w2_ref, b2_ref, o_ref, *, h, w):
    """Pre-norm Mix-FFN: fc1 -> depthwise 3x3 (stride 1, pad 1) -> GELU -> fc2
    -> residual.  Depthwise shifts: w-axis via pltpu.roll + edge mask (XLU),
    h-axis via outer-dim slices -- no padded scratch, no misaligned stores."""
    hidden = w1_ref.shape[1]
    x = x_ref[...]                                                     # (N, dim) f32
    xn = _layernorm(x, g_ref[...], b_ref[...])
    hid = jnp.dot(xn.astype(jnp.bfloat16), w1_ref[...],
                  preferred_element_type=jnp.float32) + b1_ref[...]    # (N, hidden)
    hid3 = hid.reshape(h, w, hidden)

    col = jax.lax.broadcasted_iota(jnp.int32, (h, w, hidden), 1)
    zrow = jnp.zeros((1, w, hidden), jnp.float32)
    acc3 = jnp.zeros((h, w, hidden), jnp.float32)

    for dx in (-1, 0, 1):
        if dx == 0:
            sx = hid3
        elif dx == 1:
            # sx[:, x, :] = hid3[:, x+1, :], zero at x == w-1
            sx = jnp.where(col < w - 1, pltpu.roll(hid3, shift=w - 1, axis=1), 0.0)
        else:
            # sx[:, x, :] = hid3[:, x-1, :], zero at x == 0
            sx = jnp.where(col >= 1, pltpu.roll(hid3, shift=1, axis=1), 0.0)
        for dy in (-1, 0, 1):
            if dy == 0:
                sy = sx
            elif dy == 1:
                sy = jnp.concatenate([sx[1:], zrow], axis=0)           # sy[y]=sx[y+1]
            else:
                sy = jnp.concatenate([zrow, sx[:-1]], axis=0)          # sy[y]=sx[y-1]
            i = (dy + 1) * 3 + (dx + 1)
            tap = wd_ref[i:i + 1, :].reshape(1, 1, hidden)
            acc3 = acc3 + sy * tap
    acc3 = acc3 + bd_ref[...].reshape(1, 1, hidden)

    # TODO(synk): torch nn.GELU() default is erf-exact; tanh approximation used here.
    act = jax.nn.gelu(acc3, approximate=True)

    y = jnp.dot(act.reshape(h * w, hidden).astype(jnp.bfloat16), w2_ref[...],
                preferred_element_type=jnp.float32) + b2_ref[...]
    o_ref[...] = (x + y).astype(o_ref.dtype)


# --------------------------------------------------------------------------- #
# Wrappers (one pallas_call each)
# --------------------------------------------------------------------------- #
def cte_embed(patches, prep, *, B, hw):
    K = patches.shape[1]
    dim = prep["cte_w"].shape[1]
    const2 = lambda shape: pl.BlockSpec(shape, lambda i: (0, 0))
    return pl.pallas_call(
        _cte_kernel,
        out_shape=jax.ShapeDtypeStruct((B * hw, dim), jnp.float32),
        grid=(B,),
        in_specs=[pl.BlockSpec((hw, K), lambda i: (i, 0)),
                  const2((K, dim)), const2((1, dim)),
                  const2((1, dim)), const2((1, dim))],
        out_specs=pl.BlockSpec((hw, dim), lambda i: (i, 0)),
        compiler_params=pltpu.CompilerParams(dimension_semantics=("parallel",)),
    )(patches, prep["cte_w"], prep["cte_b"], prep["cte_ln_g"], prep["cte_ln_b"])


def cpsa_block(tok, lp, *, B, N):
    num_heads, dim, hd = lp["wq"].shape[0], lp["wq"].shape[1], lp["wq"].shape[2]
    M = B * N
    row_spec = pl.BlockSpec((N, dim), lambda b, h: (b, 0))
    vec_spec = lambda c: pl.BlockSpec((1, c), lambda b, h: (0, 0))
    wh_spec = pl.BlockSpec((1, dim, hd), lambda b, h: (h, 0, 0))
    bh_spec = pl.BlockSpec((1, 1, hd), lambda b, h: (h, 0, 0))
    wp_spec = pl.BlockSpec((1, hd, dim), lambda b, h: (h, 0, 0))
    return pl.pallas_call(
        _cpsa_kernel,
        out_shape=jax.ShapeDtypeStruct((M, dim), tok.dtype),
        grid=(B, num_heads),
        in_specs=[row_spec, vec_spec(dim), vec_spec(dim),
                  wh_spec, bh_spec, wh_spec, bh_spec, wh_spec, bh_spec,
                  wp_spec, vec_spec(dim)],
        out_specs=row_spec,
        scratch_shapes=[pltpu.VMEM((N, dim), jnp.bfloat16),   # cached LN(x)
                        pltpu.VMEM((N, dim), jnp.float32)],   # head-proj accumulator
        input_output_aliases={0: 0},                          # in-place residual slab
        compiler_params=pltpu.CompilerParams(
            dimension_semantics=("parallel", "arbitrary")),
    )(tok, lp["ln1_g"], lp["ln1_b"],
      lp["wq"], lp["bq"], lp["wk"], lp["bk"], lp["wv"], lp["bv"],
      lp["wp"], lp["bp"])


def lffn_block(tok, lp, *, B, h, w):
    dim = lp["fc2_w"].shape[1]
    hidden = lp["fc1_w"].shape[1]
    N = h * w
    M = B * N
    kern = functools.partial(_lffn_kernel, h=h, w=w)
    const2 = lambda shape: pl.BlockSpec(shape, lambda i: (0, 0))
    return pl.pallas_call(
        kern,
        out_shape=jax.ShapeDtypeStruct((M, dim), tok.dtype),
        grid=(B,),
        in_specs=[pl.BlockSpec((N, dim), lambda i: (i, 0)),
                  const2((1, dim)), const2((1, dim)),
                  const2((dim, hidden)), const2((1, hidden)),
                  const2((9, hidden)), const2((1, hidden)),
                  const2((hidden, dim)), const2((1, dim))],
        out_specs=pl.BlockSpec((N, dim), lambda i: (i, 0)),
        input_output_aliases={0: 0},                          # in-place residual slab
        compiler_params=pltpu.CompilerParams(dimension_semantics=("parallel",)),
    )(tok, lp["ln2_g"], lp["ln2_b"], lp["fc1_w"], lp["fc1_b"],
      lp["dw_w"], lp["dw_b"], lp["fc2_w"], lp["fc2_b"])


# --------------------------------------------------------------------------- #
# TSD_B forward
# --------------------------------------------------------------------------- #
def tsd_b_forward(x_nchw, prep):
    B, Cin, H, W = x_nchw.shape
    dim = prep["cte_w"].shape[1]

    # ---- CTEBlock ----------------------------------------------------------
    # TODO(synk): CTEBlock source not provided; CvT-style convolutional token
    # embedding assumed: Conv2d(cte_out_channels, dim, k=3, s=2, p=1) -> flatten
    # -> LayerNorm, returning (tokens, h, w).  The 3x3/stride-2 im2col gather is
    # left to XLA (runs once, fuses); matmul + bias + LN are one fused pallas_call.
    x = jnp.transpose(x_nchw, (0, 2, 3, 1))                      # NHWC
    xp = jnp.pad(x, ((0, 0), (1, 1), (1, 1), (0, 0)))
    h, w = H // 2, W // 2
    cols = [xp[:, dh:dh + 2 * h:2, dw:dw + 2 * w:2, :]
            for dh in range(3) for dw in range(3)]
    patches = (jnp.concatenate(cols, axis=-1)
               .reshape(B * h * w, 9 * Cin).astype(jnp.bfloat16))  # bf16 slab (DMA-bound)
    tok = cte_embed(patches, prep, B=B, hw=h * w)                 # (B*N, dim) f32

    N = h * w
    for lp in prep["layers"]:
        # TODO(synk): CPSABlock assumed pre-norm MHSA + residual; LFFNBlock assumed
        # pre-norm Mix-FFN (fc1 -> depthwise 3x3 over (h, w) -> GELU -> fc2) + residual.
        tok = cpsa_block(tok, lp, B=B, N=N)
        tok = lffn_block(tok, lp, B=B, h=h, w=w)

    return tok.reshape(B, N, dim)


# --------------------------------------------------------------------------- #
# Parameter init (torch-like layout) and one-time kernel-layout preparation
# --------------------------------------------------------------------------- #
def init_params(key, cin, dim, expansion_ratio, num_layers):
    hidden = dim * expansion_ratio

    def wgt(k, shape):
        return jax.random.normal(k, shape, jnp.float32) * 0.02

    keys = jax.random.split(key, 1 + num_layers)
    params = {
        "cte_w": wgt(keys[0], (9 * cin, dim)),       # conv3x3 weight as (kh*kw*cin, dim)
        "cte_b": jnp.zeros((dim,), jnp.float32),
        "cte_ln_g": jnp.ones((dim,), jnp.float32),
        "cte_ln_b": jnp.zeros((dim,), jnp.float32),
        "layers": [],
    }
    for l in range(num_layers):
        lk = jax.random.split(keys[1 + l], 5)
        params["layers"].append({
            "ln1_g": jnp.ones((dim,), jnp.float32),
            "ln1_b": jnp.zeros((dim,), jnp.float32),
            "qkv_w": wgt(lk[0], (dim, 3 * dim)),
            "qkv_b": jnp.zeros((3 * dim,), jnp.float32),
            "proj_w": wgt(lk[1], (dim, dim)),
            "proj_b": jnp.zeros((dim,), jnp.float32),
            "ln2_g": jnp.ones((dim,), jnp.float32),
            "ln2_b": jnp.zeros((dim,), jnp.float32),
            "fc1_w": wgt(lk[2], (dim, hidden)),
            "fc1_b": jnp.zeros((hidden,), jnp.float32),
            "dw_w": wgt(lk[3], (3, 3, hidden)),      # depthwise conv weights (kh, kw, C)
            "dw_b": jnp.zeros((hidden,), jnp.float32),
            "fc2_w": wgt(lk[4], (hidden, dim)),
            "fc2_b": jnp.zeros((dim,), jnp.float32),
        })
    return params


def prepare_params(params, *, num_heads):
    """One-time prep: fold attention scale into q weights/bias, split per-head
    weight slabs, pre-cast GEMM weights to bf16, reshape vectors to (1, C)."""
    dim = params["cte_w"].shape[1]
    hd = dim // num_heads
    scale = hd ** -0.5

    def per_head_w(wm):                                   # (dim, dim) -> (nh, dim, hd)
        return jnp.transpose(wm.reshape(dim, num_heads, hd), (1, 0, 2)).astype(jnp.bfloat16)

    def per_head_b(bv):                                   # (dim,) -> (nh, 1, hd)
        return bv.reshape(num_heads, 1, hd).astype(jnp.float32)

    prep = {
        "cte_w": params["cte_w"].astype(jnp.bfloat16),
        "cte_b": params["cte_b"].reshape(1, dim),
        "cte_ln_g": params["cte_ln_g"].reshape(1, dim),
        "cte_ln_b": params["cte_ln_b"].reshape(1, dim),
        "layers": [],
    }
    for lp in params["layers"]:
        hidden = lp["fc1_w"].shape[1]
        qkv_w, qkv_b = lp["qkv_w"], lp["qkv_b"]
        prep["layers"].append({
            "ln1_g": lp["ln1_g"].reshape(1, dim),
            "ln1_b": lp["ln1_b"].reshape(1, dim),
            "wq": per_head_w(qkv_w[:, :dim] * scale),
            "bq": per_head_b(qkv_b[:dim] * scale),
            "wk": per_head_w(qkv_w[:, dim:2 * dim]),
            "bk": per_head_b(qkv_b[dim:2 * dim]),
            "wv": per_head_w(qkv_w[:, 2 * dim:]),
            "bv": per_head_b(qkv_b[2 * dim:]),
            "wp": lp["proj_w"].reshape(num_heads, hd, dim).astype(jnp.bfloat16),
            "bp": lp["proj_b"].reshape(1, dim),
            "ln2_g": lp["ln2_g"].reshape(1, dim),
            "ln2_b": lp["ln2_b"].reshape(1, dim),
            "fc1_w": lp["fc1_w"].astype(jnp.bfloat16),
            "fc1_b": lp["fc1_b"].reshape(1, hidden),
            "dw_w": lp["dw_w"].reshape(9, hidden),
            "dw_b": lp["dw_b"].reshape(1, hidden),
            "fc2_w": lp["fc2_w"].astype(jnp.bfloat16),
            "fc2_b": lp["fc2_b"].reshape(1, dim),
        })
    return prep


# --------------------------------------------------------------------------- #
if __name__ == "__main__":
    key = jax.random.PRNGKey(0)
    kp, kx = jax.random.split(key)

    # Small shapes consistent with the module:
    #   TSD_B(dim=32, cte_out_channels=4, num_encoder_layers=2, expansion_ratio=2)
    B, Cin, H, W = 2, 4, 16, 16
    dim, num_heads, expansion_ratio, num_layers = 32, 4, 2, 2

    params = init_params(kp, Cin, dim, expansion_ratio, num_layers)
    prep = prepare_params(params, num_heads=num_heads)      # one-time weight prep
    x = jax.random.normal(kx, (B, Cin, H, W), jnp.float32)

    fwd = jax.jit(tsd_b_forward)
    out = fwd(x, prep)
    jax.block_until_ready(out)

    assert out.shape == (B, (H // 2) * (W // 2), dim)
    assert bool(jnp.all(jnp.isfinite(out)))
    print("KERNEL_OK")
</pallas_src>

<mosaic_0001>
module attributes {stable_mosaic.version = 11 : i64} {
  func.func @_cte_kernel(%arg0: i32, %arg1: memref<64x36xbf16, #tpu.memory_space<vmem>>, %arg2: memref<36x32xbf16, #tpu.memory_space<vmem>>, %arg3: memref<1x32xf32, #tpu.memory_space<vmem>>, %arg4: memref<1x32xf32, #tpu.memory_space<vmem>>, %arg5: memref<1x32xf32, #tpu.memory_space<vmem>>, %arg6: memref<64x32xf32, #tpu.memory_space<vmem>>) attributes {dimension_semantics = [#tpu.dimension_semantics<parallel>], iteration_bounds = array<i64: 2>, scalar_prefetch = 0 : i64, scratch_operands = 0 : i64, tpu.core_type = #tpu.core_type<tc>, window_params = [{transform_indices = @transform_0, window_bounds = array<i64: 64, 36>}, {pipeline_mode = #tpu.pipeline_mode<synchronous>, transform_indices = @transform_1, window_bounds = array<i64: 36, 32>}, {pipeline_mode = #tpu.pipeline_mode<synchronous>, transform_indices = @transform_2, window_bounds = array<i64: 1, 32>}, {pipeline_mode = #tpu.pipeline_mode<synchronous>, transform_indices = @transform_3, window_bounds = array<i64: 1, 32>}, {pipeline_mode = #tpu.pipeline_mode<synchronous>, transform_indices = @transform_4, window_bounds = array<i64: 1, 32>}, {transform_indices = @transform_5, window_bounds = array<i64: 64, 32>}]} {
    %c0 = arith.constant 0 : index
    %c0_0 = arith.constant 0 : index
    %0 = vector.load %arg1[%c0, %c0_0] : memref<64x36xbf16, #tpu.memory_space<vmem>>, vector<64x36xbf16>
    %c0_1 = arith.constant 0 : index
    %c0_2 = arith.constant 0 : index
    %1 = vector.load %arg2[%c0_1, %c0_2] : memref<36x32xbf16, #tpu.memory_space<vmem>>, vector<36x32xbf16>
    %cst = arith.constant dense<0.000000e+00> : vector<64x32xf32>
    %2 = tpu.matmul %0, %1, %cst {dimension_numbers = #tpu.dot_dimension_numbers<[1], [0], [0], [1], [0, 0, 1, 1], [], []>} : vector<64x36xbf16>, vector<36x32xbf16>, vector<64x32xf32> -> vector<64x32xf32>
    %c0_3 = arith.constant 0 : index
    %c0_4 = arith.constant 0 : index
    %3 = vector.load %arg3[%c0_3, %c0_4] : memref<1x32xf32, #tpu.memory_space<vmem>>, vector<1x32xf32>
    %4 = vector.broadcast %3 : vector<1x32xf32> to vector<64x32xf32>
    %5 = arith.addf %2, %4 : vector<64x32xf32>
    %c0_5 = arith.constant 0 : index
    %c0_6 = arith.constant 0 : index
    %6 = vector.load %arg4[%c0_5, %c0_6] : memref<1x32xf32, #tpu.memory_space<vmem>>, vector<1x32xf32>
    %c0_7 = arith.constant 0 : index
    %c0_8 = arith.constant 0 : index
    %7 = vector.load %arg5[%c0_7, %c0_8] : memref<1x32xf32, #tpu.memory_space<vmem>>, vector<1x32xf32>
    %cst_9 = arith.constant dense<0.000000e+00> : vector<64xf32>
    %8 = vector.multi_reduction <add>, %5, %cst_9 [1] : vector<64x32xf32> to vector<64xf32>
    %9 = vector.shape_cast %8 : vector<64xf32> to vector<64x1xf32>
    %cst_10 = arith.constant 3.200000e+01 : f32
    %10 = vector.broadcast %cst_10 : f32 to vector<64x1xf32>
    %11 = arith.divf %9, %10 : vector<64x1xf32>
    %12 = vector.broadcast %11 : vector<64x1xf32> to vector<64x32xf32>
    %13 = arith.subf %5, %12 : vector<64x32xf32>
    %14 = arith.mulf %13, %13 : vector<64x32xf32>
    %cst_11 = arith.constant dense<0.000000e+00> : vector<64xf32>
    %15 = vector.multi_reduction <add>, %14, %cst_11 [1] : vector<64x32xf32> to vector<64xf32>
    %16 = vector.shape_cast %15 : vector<64xf32> to vector<64x1xf32>
    %cst_12 = arith.constant 3.200000e+01 : f32
    %17 = vector.broadcast %cst_12 : f32 to vector<64x1xf32>
    %18 = arith.divf %16, %17 : vector<64x1xf32>
    %cst_13 = arith.constant 9.99999974E-6 : f32
    %19 = vector.broadcast %cst_13 : f32 to vector<64x1xf32>
    %20 = arith.addf %18, %19 : vector<64x1xf32>
    %21 = math.rsqrt %20 : vector<64x1xf32>
    %22 = vector.broadcast %21 : vector<64x1xf32> to vector<64x32xf32>
    %23 = arith.mulf %13, %22 : vector<64x32xf32>
    %24 = vector.broadcast %6 : vector<1x32xf32> to vector<64x32xf32>
    %25 = arith.mulf %23, %24 : vector<64x32xf32>
    %26 = vector.broadcast %7 : vector<1x32xf32> to vector<64x32xf32>
    %27 = arith.addf %25, %26 : vector<64x32xf32>
    %c0_14 = arith.constant 0 : index
    %c0_15 = arith.constant 0 : index
    %28 = vector.load %arg6[%c0_14, %c0_15] : memref<64x32xf32, #tpu.memory_space<vmem>>, vector<64x32xf32>
    tpu.vector_store %arg6[%c0_14, %c0_15], %27 {strides = array<i32>} : memref<64x32xf32, #tpu.memory_space<vmem>>, vector<64x32xf32>,
    return
  }
  func.func @transform_0(%arg0: i32) -> (i32, i32) {
    %c0_i32 = arith.constant 0 : i32
    %c0_i32_0 = arith.constant 0 : i32
    return %arg0, %c0_i32 : i32, i32
  }
  func.func @transform_1(%arg0: i32) -> (i32, i32) {
    %c0_i32 = arith.constant 0 : i32
    %c0_i32_0 = arith.constant 0 : i32
    %c0_i32_1 = arith.constant 0 : i32
    return %c0_i32, %c0_i32_0 : i32, i32
  }
  func.func @transform_2(%arg0: i32) -> (i32, i32) {
    %c0_i32 = arith.constant 0 : i32
    %c0_i32_0 = arith.constant 0 : i32
    %c0_i32_1 = arith.constant 0 : i32
    return %c0_i32, %c0_i32_0 : i32, i32
  }
  func.func @transform_3(%arg0: i32) -> (i32, i32) {
    %c0_i32 = arith.constant 0 : i32
    %c0_i32_0 = arith.constant 0 : i32
    %c0_i32_1 = arith.constant 0 : i32
    return %c0_i32, %c0_i32_0 : i32, i32
  }
  func.func @transform_4(%arg0: i32) -> (i32, i32) {
    %c0_i32 = arith.constant 0 : i32
    %c0_i32_0 = arith.constant 0 : i32
    %c0_i32_1 = arith.constant 0 : i32
    return %c0_i32, %c0_i32_0 : i32, i32
  }
  func.func @transform_5(%arg0: i32) -> (i32, i32) {
    %c0_i32 = arith.constant 0 : i32
    %c0_i32_0 = arith.constant 0 : i32
    return %arg0, %c0_i32 : i32, i32
  }
}

module attributes {stable_mosaic.version = 11 : i64} {
  func.func @_cpsa_kernel(%arg0: i32, %arg1: i32, %arg2: memref<64x32xf32, #tpu.memory_space<vmem>>, %arg3: memref<1x32xf32, #tpu.memory_space<vmem>>, %arg4: memref<1x32xf32, #tpu.memory_space<vmem>>, %arg5: memref<1x32x8xbf16, #tpu.memory_space<vmem>>, %arg6: memref<1x1x8xf32, #tpu.memory_space<vmem>>, %arg7: memref<1x32x8xbf16, #tpu.memory_space<vmem>>, %arg8: memref<1x1x8xf32, #tpu.memory_space<vmem>>, %arg9: memref<1x32x8xbf16, #tpu.memory_space<vmem>>, %arg10: memref<1x1x8xf32, #tpu.memory_space<vmem>>, %arg11: memref<1x8x32xbf16, #tpu.memory_space<vmem>>, %arg12: memref<1x32xf32, #tpu.memory_space<vmem>>, %arg13: memref<64x32xf32, #tpu.memory_space<vmem>>, %arg14: memref<64x32xbf16, #tpu.memory_space<vmem>>, %arg15: memref<64x32xf32, #tpu.memory_space<vmem>>) attributes {dimension_semantics = [#tpu.dimension_semantics<parallel>, #tpu.dimension_semantics<arbitrary>], iteration_bounds = array<i64: 2, 4>, scalar_prefetch = 0 : i64, scratch_operands = 2 : i64, tpu.core_type = #tpu.core_type<tc>, window_params = [{transform_indices = @transform_0, window_bounds = array<i64: 64, 32>}, {pipeline_mode = #tpu.pipeline_mode<synchronous>, transform_indices = @transform_1, window_bounds = array<i64: 1, 32>}, {pipeline_mode = #tpu.pipeline_mode<synchronous>, transform_indices = @transform_2, window_bounds = array<i64: 1, 32>}, {transform_indices = @transform_3, window_bounds = array<i64: 1, 32, 8>}, {transform_indices = @transform_4, window_bounds = array<i64: 1, 1, 8>}, {transform_indices = @transform_5, window_bounds = array<i64: 1, 32, 8>}, {transform_indices = @transform_6, window_bounds = array<i64: 1, 1, 8>}, {transform_indices = @transform_7, window_bounds = array<i64: 1, 32, 8>}, {transform_indices = @transform_8, window_bounds = array<i64: 1, 1, 8>}, {transform_indices = @transform_9, window_bounds = array<i64: 1, 8, 32>}, {pipeline_mode = #tpu.pipeline_mode<synchronous>, transform_indices = @transform_10, window_bounds = array<i64: 1, 32>}, {transform_indices = @transform_11, window_bounds = array<i64: 64, 32>}]} {
    %c0_i32 = arith.constant 0 : i32
    %0 = arith.cmpi eq, %arg1, %c0_i32 : i32
    %1 = arith.extui %0 : i1 to i32
    %c0_i32_0 = arith.constant 0 : i32
    %2 = arith.cmpi ne, %1, %c0_i32_0 : i32
    scf.if %2 {
      %c0_35 = arith.constant 0 : index
      %c0_36 = arith.constant 0 : index
      %51 = vector.load %arg2[%c0_35, %c0_36] : memref<64x32xf32, #tpu.memory_space<vmem>>, vector<64x32xf32>
      %c0_37 = arith.constant 0 : index
      %c0_38 = arith.constant 0 : index
      %52 = vector.load %arg3[%c0_37, %c0_38] : memref<1x32xf32, #tpu.memory_space<vmem>>, vector<1x32xf32>
      %c0_39 = arith.constant 0 : index
      %c0_40 = arith.constant 0 : index
      %53 = vector.load %arg4[%c0_39, %c0_40] : memref<1x32xf32, #tpu.memory_space<vmem>>, vector<1x32xf32>
      %cst_41 = arith.constant dense<0.000000e+00> : vector<64xf32>
      %54 = vector.multi_reduction <add>, %51, %cst_41 [1] : vector<64x32xf32> to vector<64xf32>
      %55 = vector.shape_cast %54 : vector<64xf32> to vector<64x1xf32>
      %cst_42 = arith.constant 3.200000e+01 : f32
      %56 = vector.broadcast %cst_42 : f32 to vector<64x1xf32>
      %57 = arith.divf %55, %56 : vector<64x1xf32>
      %58 = vector.broadcast %57 : vector<64x1xf32> to vector<64x32xf32>
      %59 = arith.subf %51, %58 : vector<64x32xf32>
      %60 = arith.mulf %59, %59 : vector<64x32xf32>
      %cst_43 = arith.constant dense<0.000000e+00> : vector<64xf32>
      %61 = vector.multi_reduction <add>, %60, %cst_43 [1] : vector<64x32xf32> to vector<64xf32>
      %62 = vector.shape_cast %61 : vector<64xf32> to vector<64x1xf32>
      %cst_44 = arith.constant 3.200000e+01 : f32
      %63 = vector.broadcast %cst_44 : f32 to vector<64x1xf32>
      %64 = arith.divf %62, %63 : vector<64x1xf32>
      %cst_45 = arith.constant 9.99999974E-6 : f32
      %65 = vector.broadcast %cst_45 : f32 to vector<64x1xf32>
      %66 = arith.addf %64, %65 : vector<64x1xf32>
      %67 = math.rsqrt %66 : vector<64x1xf32>
      %68 = vector.broadcast %67 : vector<64x1xf32> to vector<64x32xf32>
      %69 = arith.mulf %59, %68 : vector<64x32xf32>
      %70 = vector.broadcast %52 : vector<1x32xf32> to vector<64x32xf32>
      %71 = arith.mulf %69, %70 : vector<64x32xf32>
      %72 = vector.broadcast %53 : vector<1x32xf32> to vector<64x32xf32>
      %73 = arith.addf %71, %72 : vector<64x32xf32>
      %74 = arith.truncf %73 : vector<64x32xf32> to vector<64x32xbf16>
      %c0_46 = arith.constant 0 : index
      %c0_47 = arith.constant 0 : index
      %75 = vector.load %arg14[%c0_46, %c0_47] : memref<64x32xbf16, #tpu.memory_space<vmem>>, vector<64x32xbf16>
      tpu.vector_store %arg14[%c0_46, %c0_47], %74 {strides = array<i32>} : memref<64x32xbf16, #tpu.memory_space<vmem>>, vector<64x32xbf16>,
      %cst_48 = arith.constant 0.000000e+00 : f32
      %76 = vector.broadcast %cst_48 : f32 to vector<64x32xf32>
      %c0_49 = arith.constant 0 : index
      %c0_50 = arith.constant 0 : index
      %77 = vector.load %arg15[%c0_49, %c0_50] : memref<64x32xf32, #tpu.memory_space<vmem>>, vector<64x32xf32>
      tpu.vector_store %arg15[%c0_49, %c0_50], %76 {strides = array<i32>} : memref<64x32xf32, #tpu.memory_space<vmem>>, vector<64x32xf32>,
    } else {
    }
    %c0 = arith.constant 0 : index
    %c0_1 = arith.constant 0 : index
    %3 = vector.load %arg14[%c0, %c0_1] : memref<64x32xbf16, #tpu.memory_space<vmem>>, vector<64x32xbf16>
    %c0_2 = arith.constant 0 : index
    %c0_3 = arith.constant 0 : index
    %c0_4 = arith.constant 0 : index
    %4 = vector.load %arg5[%c0_2, %c0_3, %c0_4] : memref<1x32x8xbf16, #tpu.memory_space<vmem>>, vector<1x32x8xbf16>
    %5 = vector.shape_cast %4 : vector<1x32x8xbf16> to vector<32x8xbf16>
    %cst = arith.constant dense<0.000000e+00> : vector<64x8xf32>
    %6 = tpu.matmul %3, %5, %cst {dimension_numbers = #tpu.dot_dimension_numbers<[1], [0], [0], [1], [0, 0, 1, 1], [], []>} : vector<64x32xbf16>, vector<32x8xbf16>, vector<64x8xf32> -> vector<64x8xf32>
    %c0_5 = arith.constant 0 : index
    %c0_6 = arith.constant 0 : index
    %c0_7 = arith.constant 0 : index
    %7 = vector.load %arg6[%c0_5, %c0_6, %c0_7] : memref<1x1x8xf32, #tpu.memory_space<vmem>>, vector<1x1x8xf32>
    %8 = vector.shape_cast %7 : vector<1x1x8xf32> to vector<1x8xf32>
    %9 = vector.broadcast %8 : vector<1x8xf32> to vector<64x8xf32>
    %10 = arith.addf %6, %9 : vector<64x8xf32>
    %c0_8 = arith.constant 0 : index
    %c0_9 = arith.constant 0 : index
    %c0_10 = arith.constant 0 : index
    %11 = vector.load %arg7[%c0_8, %c0_9, %c0_10] : memref<1x32x8xbf16, #tpu.memory_space<vmem>>, vector<1x32x8xbf16>
    %12 = vector.shape_cast %11 : vector<1x32x8xbf16> to vector<32x8xbf16>
    %cst_11 = arith.constant dense<0.000000e+00> : vector<64x8xf32>
    %13 = tpu.matmul %3, %12, %cst_11 {dimension_numbers = #tpu.dot_dimension_numbers<[1], [0], [0], [1], [0, 0, 1, 1], [], []>} : vector<64x32xbf16>, vector<32x8xbf16>, vector<64x8xf32> -> vector<64x8xf32>
    %c0_12 = arith.constant 0 : index
    %c0_13 = arith.constant 0 : index
    %c0_14 = arith.constant 0 : index
    %14 = vector.load %arg8[%c0_12, %c0_13, %c0_14] : memref<1x1x8xf32, #tpu.memory_space<vmem>>, vector<1x1x8xf32>
    %15 = vector.shape_cast %14 : vector<1x1x8xf32> to vector<1x8xf32>
    %16 = vector.broadcast %15 : vector<1x8xf32> to vector<64x8xf32>
    %17 = arith.addf %13, %16 : vector<64x8xf32>
    %c0_15 = arith.constant 0 : index
    %c0_16 = arith.constant 0 : index
    %c0_17 = arith.constant 0 : index
    %18 = vector.load %arg9[%c0_15, %c0_16, %c0_17] : memref<1x32x8xbf16, #tpu.memory_space<vmem>>, vector<1x32x8xbf16>
    %19 = vector.shape_cast %18 : vector<1x32x8xbf16> to vector<32x8xbf16>
    %cst_18 = arith.constant dense<0.000000e+00> : vector<64x8xf32>
    %20 = tpu.matmul %3, %19, %cst_18 {dimension_numbers = #tpu.dot_dimension_numbers<[1], [0], [0], [1], [0, 0, 1, 1], [], []>} : vector<64x32xbf16>, vector<32x8xbf16>, vector<64x8xf32> -> vector<64x8xf32>
    %c0_19 = arith.constant 0 : index
    %c0_20 = arith.constant 0 : index
    %c0_21 = arith.constant 0 : index
    %21 = vector.load %arg10[%c0_19, %c0_20, %c0_21] : memref<1x1x8xf32, #tpu.memory_space<vmem>>, vector<1x1x8xf32>
    %22 = vector.shape_cast %21 : vector<1x1x8xf32> to vector<1x8xf32>
    %23 = vector.broadcast %22 : vector<1x8xf32> to vector<64x8xf32>
    %24 = arith.addf %20, %23 : vector<64x8xf32>
    %25 = arith.truncf %10 : vector<64x8xf32> to vector<64x8xbf16>
    %26 = arith.truncf %17 : vector<64x8xf32> to vector<64x8xbf16>
    %cst_22 = arith.constant dense<0.000000e+00> : vector<64x64xf32>
    %27 = tpu.matmul %25, %26, %cst_22 {dimension_numbers = #tpu.dot_dimension_numbers<[1], [1], [0], [0], [0, 0, 1, 0], [], []>} : vector<64x8xbf16>, vector<64x8xbf16>, vector<64x64xf32> -> vector<64x64xf32>
    %cst_23 = arith.constant dense<0xFF800000> : vector<64xf32>
    %28 = vector.multi_reduction <maximumf>, %27, %cst_23 [1] : vector<64x64xf32> to vector<64xf32>
    %29 = vector.shape_cast %28 : vector<64xf32> to vector<64x1xf32>
    %30 = vector.broadcast %29 : vector<64x1xf32> to vector<64x64xf32>
    %31 = arith.subf %27, %30 : vector<64x64xf32>
    %32 = math.exp %31 : vector<64x64xf32>
    %cst_24 = arith.constant dense<0.000000e+00> : vector<64xf32>
    %33 = vector.multi_reduction <add>, %32, %cst_24 [1] : vector<64x64xf32> to vector<64xf32>
    %34 = vector.shape_cast %33 : vector<64xf32> to vector<64x1xf32>
    %35 = tpu.reciprocal %34 {approx = true} : vector<64x1xf32> -> vector<64x1xf32>
    %36 = vector.broadcast %35 : vector<64x1xf32> to vector<64x64xf32>
    %37 = arith.mulf %32, %36 : vector<64x64xf32>
    %38 = arith.truncf %37 : vector<64x64xf32> to vector<64x64xbf16>
    %39 = arith.truncf %24 : vector<64x8xf32> to vector<64x8xbf16>
    %cst_25 = arith.constant dense<0.000000e+00> : vector<64x8xf32>
    %40 = tpu.matmul %38, %39, %cst_25 {dimension_numbers = #tpu.dot_dimension_numbers<[1], [0], [0], [1], [0, 0, 1, 1], [], []>} : vector<64x64xbf16>, vector<64x8xbf16>, vector<64x8xf32> -> vector<64x8xf32>
    %c0_26 = arith.constant 0 : index
    %c0_27 = arith.constant 0 : index
    %41 = vector.load %arg15[%c0_26, %c0_27] : memref<64x32xf32, #tpu.memory_space<vmem>>, vector<64x32xf32>
    %42 = arith.truncf %40 : vector<64x8xf32> to vector<64x8xbf16>
    %c0_28 = arith.constant 0 : index
    %c0_29 = arith.constant 0 : index
    %c0_30 = arith.constant 0 : index
    %43 = vector.load %arg11[%c0_28, %c0_29, %c0_30] : memref<1x8x32xbf16, #tpu.memory_space<vmem>>, vector<1x8x32xbf16>
    %44 = vector.shape_cast %43 : vector<1x8x32xbf16> to vector<8x32xbf16>
    %cst_31 = arith.constant dense<0.000000e+00> : vector<64x32xf32>
    %45 = tpu.matmul %42, %44, %cst_31 {dimension_numbers = #tpu.dot_dimension_numbers<[1], [0], [0], [1], [0, 0, 1, 1], [], []>} : vector<64x8xbf16>, vector<8x32xbf16>, vector<64x32xf32> -> vector<64x32xf32>
    %46 = arith.addf %41, %45 : vector<64x32xf32>
    %c0_32 = arith.constant 0 : index
    %c0_33 = arith.constant 0 : index
    %47 = vector.load %arg15[%c0_32, %c0_33] : memref<64x32xf32, #tpu.memory_space<vmem>>, vector<64x32xf32>
    tpu.vector_store %arg15[%c0_32, %c0_33], %46 {strides = array<i32>} : memref<64x32xf32, #tpu.memory_space<vmem>>, vector<64x32xf32>,
    %c3_i32 = arith.constant 3 : i32
    %48 = arith.cmpi eq, %arg1, %c3_i32 : i32
    %49 = arith.extui %48 : i1 to i32
    %c0_i32_34 = arith.constant 0 : i32
    %50 = arith.cmpi ne, %49, %c0_i32_34 : i32
    scf.if %50 {
      %c0_35 = arith.constant 0 : index
      %c0_36 = arith.constant 0 : index
      %51 = vector.load %arg2[%c0_35, %c0_36] : memref<64x32xf32, #tpu.memory_space<vmem>>, vector<64x32xf32>
      %c0_37 = arith.constant 0 : index
      %c0_38 = arith.constant 0 : index
      %52 = vector.load %arg15[%c0_37, %c0_38] : memref<64x32xf32, #tpu.memory_space<vmem>>, vector<64x32xf32>
      %53 = arith.addf %51, %52 : vector<64x32xf32>
      %c0_39 = arith.constant 0 : index
      %c0_40 = arith.constant 0 : index
      %54 = vector.load %arg12[%c0_39, %c0_40] : memref<1x32xf32, #tpu.memory_space<vmem>>, vector<1x32xf32>
      %55 = vector.broadcast %54 : vector<1x32xf32> to vector<64x32xf32>
      %56 = arith.addf %53, %55 : vector<64x32xf32>
      %c0_41 = arith.constant 0 : index
      %c0_42 = arith.constant 0 : index
      %57 = vector.load %arg13[%c0_41, %c0_42] : memref<64x32xf32, #tpu.memory_space<vmem>>, vector<64x32xf32>
      tpu.vector_store %arg13[%c0_41, %c0_42], %56 {strides = array<i32>} : memref<64x32xf32, #tpu.memory_space<vmem>>, vector<64x32xf32>,
    } else {
    }
    return
  }
  func.func @transform_0(%arg0: i32, %arg1: i32) -> (i32, i32) {
    %c0_i32 = arith.constant 0 : i32
    %c0_i32_0 = arith.constant 0 : i32
    return %arg0, %c0_i32 : i32, i32
  }
  func.func @transform_1(%arg0: i32, %arg1: i32) -> (i32, i32) {
    %c0_i32 = arith.constant 0 : i32
    %c0_i32_0 = arith.constant 0 : i32
    %c0_i32_1 = arith.constant 0 : i32
    return %c0_i32, %c0_i32_0 : i32, i32
  }
  func.func @transform_2(%arg0: i32, %arg1: i32) -> (i32, i32) {
    %c0_i32 = arith.constant 0 : i32
    %c0_i32_0 = arith.constant 0 : i32
    %c0_i32_1 = arith.constant 0 : i32
    return %c0_i32, %c0_i32_0 : i32, i32
  }
  func.func @transform_3(%arg0: i32, %arg1: i32) -> (i32, i32, i32) {
    %c0_i32 = arith.constant 0 : i32
    %c0_i32_0 = arith.constant 0 : i32
    %c0_i32_1 = arith.constant 0 : i32
    return %arg1, %c0_i32, %c0_i32_0 : i32, i32, i32
  }
  func.func @transform_4(%arg0: i32, %arg1: i32) -> (i32, i32, i32) {
    %c0_i32 = arith.constant 0 : i32
    %c0_i32_0 = arith.constant 0 : i32
    %c0_i32_1 = arith.constant 0 : i32
    return %arg1, %c0_i32, %c0_i32_0 : i32, i32, i32
  }
  func.func @transform_5(%arg0: i32, %arg1: i32) -> (i32, i32, i32) {
    %c0_i32 = arith.constant 0 : i32
    %c0_i32_0 = arith.constant 0 : i32
    %c0_i32_1 = arith.constant 0 : i32
    return %arg1, %c0_i32, %c0_i32_0 : i32, i32, i32
  }
  func.func @transform_6(%arg0: i32, %arg1: i32) -> (i32, i32, i32) {
    %c0_i32 = arith.constant 0 : i32
    %c0_i32_0 = arith.constant 0 : i32
    %c0_i32_1 = arith.constant 0 : i32
    return %arg1, %c0_i32, %c0_i32_0 : i32, i32, i32
  }
  func.func @transform_7(%arg0: i32, %arg1: i32) -> (i32, i32, i32) {
    %c0_i32 = arith.constant 0 : i32
    %c0_i32_0 = arith.constant 0 : i32
    %c0_i32_1 = arith.constant 0 : i32
    return %arg1, %c0_i32, %c0_i32_0 : i32, i32, i32
  }
  func.func @transform_8(%arg0: i32, %arg1: i32) -> (i32, i32, i32) {
    %c0_i32 = arith.constant 0 : i32
    %c0_i32_0 = arith.constant 0 : i32
    %c0_i32_1 = arith.constant 0 : i32
    return %arg1, %c0_i32, %c0_i32_0 : i32, i32, i32
  }
  func.func @transform_9(%arg0: i32, %arg1: i32) -> (i32, i32, i32) {
    %c0_i32 = arith.constant 0 : i32
    %c0_i32_0 = arith.constant 0 : i32
    %c0_i32_1 = arith.constant 0 : i32
    return %arg1, %c0_i32, %c0_i32_0 : i32, i32, i32
  }
  func.func @transform_10(%arg0: i32, %arg1: i32) -> (i32, i32) {
    %c0_i32 = arith.constant 0 : i32
    %c0_i32_0 = arith.constant 0 : i32
    %c0_i32_1 = arith.constant 0 : i32
    return %c0_i32, %c0_i32_0 : i32, i32
  }
  func.func @transform_11(%arg0: i32, %arg1: i32) -> (i32, i32) {
    %c0_i32 = arith.constant 0 : i32
    %c0_i32_0 = arith.constant 0 : i32
    return %arg0, %c0_i32 : i32, i32
  }
}

module attributes {stable_mosaic.version = 11 : i64} {
  func.func @_lffn_kernel(%arg0: i32, %arg1: memref<64x32xf32, #tpu.memory_space<vmem>>, %arg2: memref<1x32xf32, #tpu.memory_space<vmem>>, %arg3: memref<1x32xf32, #tpu.memory_space<vmem>>, %arg4: memref<32x64xbf16, #tpu.memory_space<vmem>>, %arg5: memref<1x64xf32, #tpu.memory_space<vmem>>, %arg6: memref<9x64xf32, #tpu.memory_space<vmem>>, %arg7: memref<1x64xf32, #tpu.memory_space<vmem>>, %arg8: memref<64x32xbf16, #tpu.memory_space<vmem>>, %arg9: memref<1x32xf32, #tpu.memory_space<vmem>>, %arg10: memref<64x32xf32, #tpu.memory_space<vmem>>) attributes {dimension_semantics = [#tpu.dimension_semantics<parallel>], iteration_bounds = array<i64: 2>, scalar_prefetch = 0 : i64, scratch_operands = 0 : i64, tpu.core_type = #tpu.core_type<tc>, window_params = [{transform_indices = @transform_0, window_bounds = array<i64: 64, 32>}, {pipeline_mode = #tpu.pipeline_mode<synchronous>, transform_indices = @transform_1, window_bounds = array<i64: 1, 32>}, {pipeline_mode = #tpu.pipeline_mode<synchronous>, transform_indices = @transform_2, window_bounds = array<i64: 1, 32>}, {pipeline_mode = #tpu.pipeline_mode<synchronous>, transform_indices = @transform_3, window_bounds = array<i64: 32, 64>}, {pipeline_mode = #tpu.pipeline_mode<synchronous>, transform_indices = @transform_4, window_bounds = array<i64: 1, 64>}, {pipeline_mode = #tpu.pipeline_mode<synchronous>, transform_indices = @transform_5, window_bounds = array<i64: 9, 64>}, {pipeline_mode = #tpu.pipeline_mode<synchronous>, transform_indices = @transform_6, window_bounds = array<i64: 1, 64>}, {pipeline_mode = #tpu.pipeline_mode<synchronous>, transform_indices = @transform_7, window_bounds = array<i64: 64, 32>}, {pipeline_mode = #tpu.pipeline_mode<synchronous>, transform_indices = @transform_8, window_bounds = array<i64: 1, 32>}, {transform_indices = @transform_9, window_bounds = array<i64: 64, 32>}]} {
    %c0 = arith.constant 0 : index
    %c0_0 = arith.constant 0 : index
    %0 = vector.load %arg1[%c0, %c0_0] : memref<64x32xf32, #tpu.memory_space<vmem>>, vector<64x32xf32>
    %c0_1 = arith.constant 0 : index
    %c0_2 = arith.constant 0 : index
    %1 = vector.load %arg2[%c0_1, %c0_2] : memref<1x32xf32, #tpu.memory_space<vmem>>, vector<1x32xf32>
    %c0_3 = arith.constant 0 : index
    %c0_4 = arith.constant 0 : index
    %2 = vector.load %arg3[%c0_3, %c0_4] : memref<1x32xf32, #tpu.memory_space<vmem>>, vector<1x32xf32>
    %cst = arith.constant dense<0.000000e+00> : vector<64xf32>
    %3 = vector.multi_reduction <add>, %0, %cst [1] : vector<64x32xf32> to vector<64xf32>
    %4 = vector.shape_cast %3 : vector<64xf32> to vector<64x1xf32>
    %cst_5 = arith.constant 3.200000e+01 : f32
    %5 = vector.broadcast %cst_5 : f32 to vector<64x1xf32>
    %6 = arith.divf %4, %5 : vector<64x1xf32>
    %7 = vector.broadcast %6 : vector<64x1xf32> to vector<64x32xf32>
    %8 = arith.subf %0, %7 : vector<64x32xf32>
    %9 = arith.mulf %8, %8 : vector<64x32xf32>
    %cst_6 = arith.constant dense<0.000000e+00> : vector<64xf32>
    %10 = vector.multi_reduction <add>, %9, %cst_6 [1] : vector<64x32xf32> to vector<64xf32>
    %11 = vector.shape_cast %10 : vector<64xf32> to vector<64x1xf32>
    %cst_7 = arith.constant 3.200000e+01 : f32
    %12 = vector.broadcast %cst_7 : f32 to vector<64x1xf32>
    %13 = arith.divf %11, %12 : vector<64x1xf32>
    %cst_8 = arith.constant 9.99999974E-6 : f32
    %14 = vector.broadcast %cst_8 : f32 to vector<64x1xf32>
    %15 = arith.addf %13, %14 : vector<64x1xf32>
    %16 = math.rsqrt %15 : vector<64x1xf32>
    %17 = vector.broadcast %16 : vector<64x1xf32> to vector<64x32xf32>
    %18 = arith.mulf %8, %17 : vector<64x32xf32>
    %19 = vector.broadcast %1 : vector<1x32xf32> to vector<64x32xf32>
    %20 = arith.mulf %18, %19 : vector<64x32xf32>
    %21 = vector.broadcast %2 : vector<1x32xf32> to vector<64x32xf32>
    %22 = arith.addf %20, %21 : vector<64x32xf32>
    %23 = arith.truncf %22 : vector<64x32xf32> to vector<64x32xbf16>
    %c0_9 = arith.constant 0 : index
    %c0_10 = arith.constant 0 : index
    %24 = vector.load %arg4[%c0_9, %c0_10] : memref<32x64xbf16, #tpu.memory_space<vmem>>, vector<32x64xbf16>
    %cst_11 = arith.constant dense<0.000000e+00> : vector<64x64xf32>
    %25 = tpu.matmul %23, %24, %cst_11 {dimension_numbers = #tpu.dot_dimension_numbers<[1], [0], [0], [1], [0, 0, 1, 1], [], []>} : vector<64x32xbf16>, vector<32x64xbf16>, vector<64x64xf32> -> vector<64x64xf32>
    %c0_12 = arith.constant 0 : index
    %c0_13 = arith.constant 0 : index
    %26 = vector.load %arg5[%c0_12, %c0_13] : memref<1x64xf32, #tpu.memory_space<vmem>>, vector<1x64xf32>
    %27 = vector.broadcast %26 : vector<1x64xf32> to vector<64x64xf32>
    %28 = arith.addf %25, %27 : vector<64x64xf32>
    %29 = vector.shape_cast %28 : vector<64x64xf32> to vector<8x8x64xf32>
    %30 = tpu.iota {dimensions = array<i32: 1>} : vector<8x8x64xi32>
    %cst_14 = arith.constant 0.000000e+00 : f32
    %31 = vector.broadcast %cst_14 : f32 to vector<1x8x64xf32>
    %cst_15 = arith.constant 0.000000e+00 : f32
    %32 = vector.broadcast %cst_15 : f32 to vector<8x8x64xf32>
    %c1_i32 = arith.constant 1 : i32
    %33 = vector.broadcast %c1_i32 : i32 to vector<8x8x64xi32>
    %34 = arith.cmpi sge, %30, %33 : vector<8x8x64xi32>
    %c1_i32_16 = arith.constant 1 : i32
    %35 = tpu.dynamic_rotate %29 by %c1_i32_16 dim 1 : vector<8x8x64xf32>, i32 -> vector<8x8x64xf32>
    %cst_17 = arith.constant 0.000000e+00 : f32
    %36 = vector.broadcast %cst_17 : f32 to vector<8x8x64xf32>
    %37 = arith.select %34, %35, %36 : vector<8x8x64xi1>, vector<8x8x64xf32>
    %38 = vector.extract_strided_slice %37 {offsets = [0, 0, 0], sizes = [7, 8, 64], strides = [1, 1, 1]} : vector<8x8x64xf32> to vector<7x8x64xf32>
    %39 = tpu.concatenate %31, %38 in 0 : vector<1x8x64xf32>, vector<7x8x64xf32> -> vector<8x8x64xf32>
    %c0_18 = arith.constant 0 : index
    %c0_19 = arith.constant 0 : index
    %40 = vector.load %arg6[%c0_18, %c0_19] : memref<9x64xf32, #tpu.memory_space<vmem>>, vector<1x64xf32>
    %41 = vector.shape_cast %40 : vector<1x64xf32> to vector<1x1x64xf32>
    %42 = vector.broadcast %41 : vector<1x1x64xf32> to vector<8x8x64xf32>
    %43 = arith.mulf %39, %42 : vector<8x8x64xf32>
    %44 = arith.addf %32, %43 : vector<8x8x64xf32>
    %c3 = arith.constant 3 : index
    %c0_20 = arith.constant 0 : index
    %45 = vector.load %arg6[%c3, %c0_20] : memref<9x64xf32, #tpu.memory_space<vmem>>, vector<1x64xf32>
    %46 = vector.shape_cast %45 : vector<1x64xf32> to vector<1x1x64xf32>
    %47 = vector.broadcast %46 : vector<1x1x64xf32> to vector<8x8x64xf32>
    %48 = arith.mulf %37, %47 : vector<8x8x64xf32>
    %49 = arith.addf %44, %48 : vector<8x8x64xf32>
    %50 = vector.extract_strided_slice %37 {offsets = [1, 0, 0], sizes = [7, 8, 64], strides = [1, 1, 1]} : vector<8x8x64xf32> to vector<7x8x64xf32>
    %51 = tpu.concatenate %50, %31 in 0 : vector<7x8x64xf32>, vector<1x8x64xf32> -> vector<8x8x64xf32>
    %c6 = arith.constant 6 : index
    %c0_21 = arith.constant 0 : index
    %52 = vector.load %arg6[%c6, %c0_21] : memref<9x64xf32, #tpu.memory_space<vmem>>, vector<1x64xf32>
    %53 = vector.shape_cast %52 : vector<1x64xf32> to vector<1x1x64xf32>
    %54 = vector.broadcast %53 : vector<1x1x64xf32> to vector<8x8x64xf32>
    %55 = arith.mulf %51, %54 : vector<8x8x64xf32>
    %56 = arith.addf %49, %55 : vector<8x8x64xf32>
    %57 = vector.extract_strided_slice %29 {offsets = [0, 0, 0], sizes = [7, 8, 64], strides = [1, 1, 1]} : vector<8x8x64xf32> to vector<7x8x64xf32>
    %58 = tpu.concatenate %31, %57 in 0 : vector<1x8x64xf32>, vector<7x8x64xf32> -> vector<8x8x64xf32>
    %c1 = arith.constant 1 : index
    %c0_22 = arith.constant 0 : index
    %59 = vector.load %arg6[%c1, %c0_22] : memref<9x64xf32, #tpu.memory_space<vmem>>, vector<1x64xf32>
    %60 = vector.shape_cast %59 : vector<1x64xf32> to vector<1x1x64xf32>
    %61 = vector.broadcast %60 : vector<1x1x64xf32> to vector<8x8x64xf32>
    %62 = arith.mulf %58, %61 : vector<8x8x64xf32>
    %63 = arith.addf %56, %62 : vector<8x8x64xf32>
    %c4 = arith.constant 4 : index
    %c0_23 = arith.constant 0 : index
    %64 = vector.load %arg6[%c4, %c0_23] : memref<9x64xf32, #tpu.memory_space<vmem>>, vector<1x64xf32>
    %65 = vector.shape_cast %64 : vector<1x64xf32> to vector<1x1x64xf32>
    %66 = vector.broadcast %65 : vector<1x1x64xf32> to vector<8x8x64xf32>
    %67 = arith.mulf %29, %66 : vector<8x8x64xf32>
    %68 = arith.addf %63, %67 : vector<8x8x64xf32>
    %69 = vector.extract_strided_slice %29 {offsets = [1, 0, 0], sizes = [7, 8, 64], strides = [1, 1, 1]} : vector<8x8x64xf32> to vector<7x8x64xf32>
    %70 = tpu.concatenate %69, %31 in 0 : vector<7x8x64xf32>, vector<1x8x64xf32> -> vector<8x8x64xf32>
    %c7 = arith.constant 7 : index
    %c0_24 = arith.constant 0 : index
    %71 = vector.load %arg6[%c7, %c0_24] : memref<9x64xf32, #tpu.memory_space<vmem>>, vector<1x64xf32>
    %72 = vector.shape_cast %71 : vector<1x64xf32> to vector<1x1x64xf32>
    %73 = vector.broadcast %72 : vector<1x1x64xf32> to vector<8x8x64xf32>
    %74 = arith.mulf %70, %73 : vector<8x8x64xf32>
    %75 = arith.addf %68, %74 : vector<8x8x64xf32>
    %c7_i32 = arith.constant 7 : i32
    %76 = vector.broadcast %c7_i32 : i32 to vector<8x8x64xi32>
    %77 = arith.cmpi slt, %30, %76 : vector<8x8x64xi32>
    %c7_i32_25 = arith.constant 7 : i32
    %78 = tpu.dynamic_rotate %29 by %c7_i32_25 dim 1 : vector<8x8x64xf32>, i32 -> vector<8x8x64xf32>
    %cst_26 = arith.constant 0.000000e+00 : f32
    %79 = vector.broadcast %cst_26 : f32 to vector<8x8x64xf32>
    %80 = arith.select %77, %78, %79 : vector<8x8x64xi1>, vector<8x8x64xf32>
    %81 = vector.extract_strided_slice %80 {offsets = [0, 0, 0], sizes = [7, 8, 64], strides = [1, 1, 1]} : vector<8x8x64xf32> to vector<7x8x64xf32>
    %82 = tpu.concatenate %31, %81 in 0 : vector<1x8x64xf32>, vector<7x8x64xf32> -> vector<8x8x64xf32>
    %c2 = arith.constant 2 : index
    %c0_27 = arith.constant 0 : index
    %83 = vector.load %arg6[%c2, %c0_27] : memref<9x64xf32, #tpu.memory_space<vmem>>, vector<1x64xf32>
    %84 = vector.shape_cast %83 : vector<1x64xf32> to vector<1x1x64xf32>
    %85 = vector.broadcast %84 : vector<1x1x64xf32> to vector<8x8x64xf32>
    %86 = arith.mulf %82, %85 : vector<8x8x64xf32>
    %87 = arith.addf %75, %86 : vector<8x8x64xf32>
    %c5 = arith.constant 5 : index
    %c0_28 = arith.constant 0 : index
    %88 = vector.load %arg6[%c5, %c0_28] : memref<9x64xf32, #tpu.memory_space<vmem>>, vector<1x64xf32>
    %89 = vector.shape_cast %88 : vector<1x64xf32> to vector<1x1x64xf32>
    %90 = vector.broadcast %89 : vector<1x1x64xf32> to vector<8x8x64xf32>
    %91 = arith.mulf %80, %90 : vector<8x8x64xf32>
    %92 = arith.addf %87, %91 : vector<8x8x64xf32>
    %93 = vector.extract_strided_slice %80 {offsets = [1, 0, 0], sizes = [7, 8, 64], strides = [1, 1, 1]} : vector<8x8x64xf32> to vector<7x8x64xf32>
    %94 = tpu.concatenate %93, %31 in 0 : vector<7x8x64xf32>, vector<1x8x64xf32> -> vector<8x8x64xf32>
    %c8 = arith.constant 8 : index
    %c0_29 = arith.constant 0 : index
    %95 = vector.load %arg6[%c8, %c0_29] : memref<9x64xf32, #tpu.memory_space<vmem>>, vector<1x64xf32>
    %96 = vector.shape_cast %95 : vector<1x64xf32> to vector<1x1x64xf32>
    %97 = vector.broadcast %96 : vector<1x1x64xf32> to vector<8x8x64xf32>
    %98 = arith.mulf %94, %97 : vector<8x8x64xf32>
    %99 = arith.addf %92, %98 : vector<8x8x64xf32>
    %c0_30 = arith.constant 0 : index
    %c0_31 = arith.constant 0 : index
    %100 = vector.load %arg7[%c0_30, %c0_31] : memref<1x64xf32, #tpu.memory_space<vmem>>, vector<1x64xf32>
    %101 = vector.shape_cast %100 : vector<1x64xf32> to vector<1x1x64xf32>
    %102 = vector.broadcast %101 : vector<1x1x64xf32> to vector<8x8x64xf32>
    %103 = arith.addf %99, %102 : vector<8x8x64xf32>
    %104 = arith.mulf %103, %103 : vector<8x8x64xf32>
    %105 = arith.mulf %103, %104 : vector<8x8x64xf32>
    %cst_32 = arith.constant 4.471500e-02 : f32
    %106 = vector.broadcast %cst_32 : f32 to vector<8x8x64xf32>
    %107 = arith.mulf %106, %105 : vector<8x8x64xf32>
    %108 = arith.addf %103, %107 : vector<8x8x64xf32>
    %cst_33 = arith.constant 0.797884583 : f32
    %109 = vector.broadcast %cst_33 : f32 to vector<8x8x64xf32>
    %110 = arith.mulf %109, %108 : vector<8x8x64xf32>
    %111 = math.tanh %110 : vector<8x8x64xf32>
    %cst_34 = arith.constant 1.000000e+00 : f32
    %112 = vector.broadcast %cst_34 : f32 to vector<8x8x64xf32>
    %113 = arith.addf %112, %111 : vector<8x8x64xf32>
    %cst_35 = arith.constant 5.000000e-01 : f32
    %114 = vector.broadcast %cst_35 : f32 to vector<8x8x64xf32>
    %115 = arith.mulf %114, %113 : vector<8x8x64xf32>
    %116 = arith.mulf %103, %115 : vector<8x8x64xf32>
    %117 = vector.shape_cast %116 : vector<8x8x64xf32> to vector<64x64xf32>
    %118 = arith.truncf %117 : vector<64x64xf32> to vector<64x64xbf16>
    %c0_36 = arith.constant 0 : index
    %c0_37 = arith.constant 0 : index
    %119 = vector.load %arg8[%c0_36, %c0_37] : memref<64x32xbf16, #tpu.memory_space<vmem>>, vector<64x32xbf16>
    %cst_38 = arith.constant dense<0.000000e+00> : vector<64x32xf32>
    %120 = tpu.matmul %118, %119, %cst_38 {dimension_numbers = #tpu.dot_dimension_numbers<[1], [0], [0], [1], [0, 0, 1, 1], [], []>} : vector<64x64xbf16>, vector<64x32xbf16>, vector<64x32xf32> -> vector<64x32xf32>
    %c0_39 = arith.constant 0 : index
    %c0_40 = arith.constant 0 : index
    %121 = vector.load %arg9[%c0_39, %c0_40] : memref<1x32xf32, #tpu.memory_space<vmem>>, vector<1x32xf32>
    %122 = vector.broadcast %121 : vector<1x32xf32> to vector<64x32xf32>
    %123 = arith.addf %120, %122 : vector<64x32xf32>
    %124 = arith.addf %0, %123 : vector<64x32xf32>
    %c0_41 = arith.constant 0 : index
    %c0_42 = arith.constant 0 : index
    %125 = vector.load %arg10[%c0_41, %c0_42] : memref<64x32xf32, #tpu.memory_space<vmem>>, vector<64x32xf32>
    tpu.vector_store %arg10[%c0_41, %c0_42], %124 {strides = array<i32>} : memref<64x32xf32, #tpu.memory_space<vmem>>, vector<64x32xf32>,
    return
  }
  func.func @transform_0(%arg0: i32) -> (i32, i32) {
    %c0_i32 = arith.constant 0 : i32
    %c0_i32_0 = arith.constant 0 : i32
    return %arg0, %c0_i32 : i32, i32
  }
  func.func @transform_1(%arg0: i32) -> (i32, i32) {
    %c0_i32 = arith.constant 0 : i32
    %c0_i32_0 = arith.constant 0 : i32
    %c0_i32_1 = arith.constant 0 : i32
    return %c0_i32, %c0_i32_0 : i32, i32
  }
  func.func @transform_2(%arg0: i32) -> (i32, i32) {
    %c0_i32 = arith.constant 0 : i32
    %c0_i32_0 = arith.constant 0 : i32
    %c0_i32_1 = arith.constant 0 : i32
    return %c0_i32, %c0_i32_0 : i32, i32
  }
  func.func @transform_3(%arg0: i32) -> (i32, i32) {
    %c0_i32 = arith.constant 0 : i32
    %c0_i32_0 = arith.constant 0 : i32
    %c0_i32_1 = arith.constant 0 : i32
    return %c0_i32, %c0_i32_0 : i32, i32
  }
  func.func @transform_4(%arg0: i32) -> (i32, i32) {
    %c0_i32 = arith.constant 0 : i32
    %c0_i32_0 = arith.constant 0 : i32
    %c0_i32_1 = arith.constant 0 : i32
    return %c0_i32, %c0_i32_0 : i32, i32
  }
  func.func @transform_5(%arg0: i32) -> (i32, i32) {
    %c0_i32 = arith.constant 0 : i32
    %c0_i32_0 = arith.constant 0 : i32
    %c0_i32_1 = arith.constant 0 : i32
    return %c0_i32, %c0_i32_0 : i32, i32
  }
  func.func @transform_6(%arg0: i32) -> (i32, i32) {
    %c0_i32 = arith.constant 0 : i32
    %c0_i32_0 = arith.constant 0 : i32
    %c0_i32_1 = arith.constant 0 : i32
    return %c0_i32, %c0_i32_0 : i32, i32
  }
  func.func @transform_7(%arg0: i32) -> (i32, i32) {
    %c0_i32 = arith.constant 0 : i32
    %c0_i32_0 = arith.constant 0 : i32
    %c0_i32_1 = arith.constant 0 : i32
    return %c0_i32, %c0_i32_0 : i32, i32
  }
  func.func @transform_8(%arg0: i32) -> (i32, i32) {
    %c0_i32 = arith.constant 0 : i32
    %c0_i32_0 = arith.constant 0 : i32
    %c0_i32_1 = arith.constant 0 : i32
    return %c0_i32, %c0_i32_0 : i32, i32
  }
  func.func @transform_9(%arg0: i32) -> (i32, i32) {
    %c0_i32 = arith.constant 0 : i32
    %c0_i32_0 = arith.constant 0 : i32
    return %arg0, %c0_i32 : i32, i32
  }
}

</mosaic_0001>

<llo_original>
// kernel: tsd_b_forward.7
$region0: #{tsd_b_forward.7}
  #allocation0 [shape = 'u32[]', space=smem, size = 0x4, offset = 0x4, fixed_abs, tag = 'smem constant byte address 0x4 - core index']
  #allocation1 [shape = 'u32[144,128]{1,0:T(1,128)}', space=vmem, size = 0x12000, scoped, tag = 'internal scratch']
  %s0 = inlined_call_operand.vmem [shape: f32[128,32], index: 0, kind: input, shape index: {}, may-alias: {0,9}]
  %s1 = inlined_call_operand.vmem [shape: f32[1,32], index: 1, kind: input, shape index: {}]
  %s2 = inlined_call_operand.vmem [shape: f32[1,32], index: 2, kind: input, shape index: {}]
  %s3 = inlined_call_operand.vmem [shape: bf16[32,64], index: 3, kind: input, shape index: {}]
  %s4 = inlined_call_operand.vmem [shape: f32[1,64], index: 4, kind: input, shape index: {}]
  %s5 = inlined_call_operand.vmem [shape: f32[9,64], index: 5, kind: input, shape index: {}]
  %s6 = inlined_call_operand.vmem [shape: f32[1,64], index: 6, kind: input, shape index: {}]
  %s7 = inlined_call_operand.vmem [shape: bf16[64,32], index: 7, kind: input, shape index: {}]
  %s8 = inlined_call_operand.vmem [shape: f32[1,32], index: 8, kind: input, shape index: {}]
  %s9 = inlined_call_operand.vmem [shape: f32[128,32], index: 9, kind: output, shape index: {}, may-alias: {0,9}]
  %s10 = sld [smem:[#allocation0]]
  $region69: #{tsd_b_forward.7} parent=0
    _
  %s12 = ssub.s32 1, %s10
  %s13 = scalar_select 0, %s12, %s10
  loop: start=0, step=1, limit=4
  $region2: #{tsd_b_forward.7} parent=0 // loop_pre_header
    _
  $region3: #{tsd_b_forward.7} parent=0 // loop_header
    %s15 = sphi 0, %s19
    %p16 = scmp.ge.s32.totalorder %s15, 4
    %s25 = sphi 0, %s27
    %s28 = sphi 0, %s25
    %s29 = sphi 0, %s28
    %s45 = sphi 0, %s29
    %s49 = sphi 0, %s49
    %s51 = sphi 0, %s49
    %s52 = sphi 0, %s51
    %s66 = sphi 0, %s52
    %s70 = sphi 0, %s70
    %s72 = sphi 0, %s70
    %s73 = sphi 0, %s72
    %s87 = sphi 0, %s73
    %s91 = sphi 0, %s91
    %s93 = sphi 0, %s91
    %s94 = sphi 0, %s93
    %s108 = sphi 0, %s94
    %s112 = sphi 0, %s112
    %s114 = sphi 0, %s112
    %s115 = sphi 0, %s114
    %s129 = sphi 0, %s115
    %s133 = sphi 0, %s133
    %s135 = sphi 0, %s133
    %s136 = sphi 0, %s135
    %s150 = sphi 0, %s136
    %s154 = sphi 0, %s154
    %s156 = sphi 0, %s154
    %s157 = sphi 0, %s156
    %s171 = sphi 0, %s157
    %s175 = sphi 0, %s175
    %s177 = sphi 0, %s175
    %s178 = sphi 0, %s177
    %s192 = sphi 0, %s178
    %s196 = sphi 0, %s196
    %s198 = sphi 0, %s196
    %s199 = sphi 0, %s198
    %s213 = sphi 0, %s199
    %s219 = sphi 0, %s221
    %s222 = sphi 0, %s219
    %s223 = sphi 0, %s222
    %s239 = sphi 0, %s223
  $region4: #{tsd_b_forward.7} parent=0 // loop_header_branch
    %18 = sbr.rel (%p16) target = $region8
  $region5: #{tsd_b_forward.7} parent=0 // loop_body
    %s20 = ssub.s32 %s15, 1
    %s21 = ssub.s32 %s15, 2
    %s22 = sadd.s32 %s15, 1
    %s23 = ssub.s32 %s15, %s22
    %p24 = scmp.eq.s32.totalorder %s23, 0
    %s26 = sadd.s32 %s25, 1
    %s27 = scalar_select %p24, %s25, %s26
    %p30 = pneg %p24
    %p31 = scmp.eq.s32.totalorder %s15, 1
    %p32 = por %p30, %p31
    %p33 = scmp.ne.s32.totalorder %s25, %s28
    %p34 = scmp.eq.s32.totalorder %s15, 0
    %p35 = por %p33, %p34
    %p36 = scmp.ne.s32.totalorder %s25, %s28
    %p37 = scmp.eq.s32.totalorder %s20, 1
    %p38 = por %p36, %p37
    %p39 = scmp.ne.s32.totalorder %s28, %s29
    %p40 = scmp.eq.s32.totalorder %s20, 0
    %p41 = por %p39, %p40
    %p42 = scmp.ne.s32.totalorder %s28, %s29
    %p43 = scmp.eq.s32.totalorder %s21, 1
    %p44 = por %p42, %p43
    %p46 = scmp.ne.s32.totalorder %s29, %s45
    %p47 = scmp.eq.s32.totalorder %s21, 0
    %p48 = por %p46, %p47
    %s50 = sadd.s32 %s49, 1
    %p53 = scmp.eq.s32.totalorder %s15, 1
    %p54 = scmp.ne.s32.totalorder %s49, %s51
    %p55 = scmp.eq.s32.totalorder %s15, 0
    %p56 = por %p54, %p55
    %p57 = scmp.ne.s32.totalorder %s49, %s51
    %p58 = scmp.eq.s32.totalorder %s20, 1
    %p59 = por %p57, %p58
    %p60 = scmp.ne.s32.totalorder %s51, %s52
    %p61 = scmp.eq.s32.totalorder %s20, 0
    %p62 = por %p60, %p61
    %p63 = scmp.ne.s32.totalorder %s51, %s52
    %p64 = scmp.eq.s32.totalorder %s21, 1
    %p65 = por %p63, %p64
    %p67 = scmp.ne.s32.totalorder %s52, %s66
    %p68 = scmp.eq.s32.totalorder %s21, 0
    %p69 = por %p67, %p68
    %s71 = sadd.s32 %s70, 1
    %p74 = scmp.eq.s32.totalorder %s15, 1
    %p75 = scmp.ne.s32.totalorder %s70, %s72
    %p76 = scmp.eq.s32.totalorder %s15, 0
    %p77 = por %p75, %p76
    %p78 = scmp.ne.s32.totalorder %s70, %s72
    %p79 = scmp.eq.s32.totalorder %s20, 1
    %p80 = por %p78, %p79
    %p81 = scmp.ne.s32.totalorder %s72, %s73
    %p82 = scmp.eq.s32.totalorder %s20, 0
    %p83 = por %p81, %p82
    %p84 = scmp.ne.s32.totalorder %s72, %s73
    %p85 = scmp.eq.s32.totalorder %s21, 1
    %p86 = por %p84, %p85
    %p88 = scmp.ne.s32.totalorder %s73, %s87
    %p89 = scmp.eq.s32.totalorder %s21, 0
    %p90 = por %p88, %p89
    %s92 = sadd.s32 %s91, 1
    %p95 = scmp.eq.s32.totalorder %s15, 1
    %p96 = scmp.ne.s32.totalorder %s91, %s93
    %p97 = scmp.eq.s32.totalorder %s15, 0
    %p98 = por %p96, %p97
    %p99 = scmp.ne.s32.totalorder %s91, %s93
    %p100 = scmp.eq.s32.totalorder %s20, 1
    %p101 = por %p99, %p100
    %p102 = scmp.ne.s32.totalorder %s93, %s94
    %p103 = scmp.eq.s32.totalorder %s20, 0
    %p104 = por %p102, %p103
    %p105 = scmp.ne.s32.totalorder %s93, %s94
    %p106 = scmp.eq.s32.totalorder %s21, 1
    %p107 = por %p105, %p106
    %p109 = scmp.ne.s32.totalorder %s94, %s108
    %p110 = scmp.eq.s32.totalorder %s21, 0
    %p111 = por %p109, %p110
    %s113 = sadd.s32 %s112, 1
    %p116 = scmp.eq.s32.totalorder %s15, 1
    %p117 = scmp.ne.s32.totalorder %s112, %s114
    %p118 = scmp.eq.s32.totalorder %s15, 0
    %p119 = por %p117, %p118
    %p120 = scmp.ne.s32.totalorder %s112, %s114
    %p121 = scmp.eq.s32.totalorder %s20, 1
    %p122 = por %p120, %p121
    %p123 = scmp.ne.s32.totalorder %s114, %s115
    %p124 = scmp.eq.s32.totalorder %s20, 0
    %p125 = por %p123, %p124
    %p126 = scmp.ne.s32.totalorder %s114, %s115
    %p127 = scmp.eq.s32.totalorder %s21, 1
    %p128 = por %p126, %p127
    %p130 = scmp.ne.s32.totalorder %s115, %s129
    %p131 = scmp.eq.s32.totalorder %s21, 0
    %p132 = por %p130, %p131
    %s134 = sadd.s32 %s133, 1
    %p137 = scmp.eq.s32.totalorder %s15, 1
    %p138 = scmp.ne.s32.totalorder %s133, %s135
    %p139 = scmp.eq.s32.totalorder %s15, 0
    %p140 = por %p138, %p139
    %p141 = scmp.ne.s32.totalorder %s133, %s135
    %p142 = scmp.eq.s32.totalorder %s20, 1
    %p143 = por %p141, %p142
    %p144 = scmp.ne.s32.totalorder %s135, %s136
    %p145 = scmp.eq.s32.totalorder %s20, 0
    %p146 = por %p144, %p145
    %p147 = scmp.ne.s32.totalorder %s135, %s136
    %p148 = scmp.eq.s32.totalorder %s21, 1
    %p149 = por %p147, %p148
    %p151 = scmp.ne.s32.totalorder %s136, %s150
    %p152 = scmp.eq.s32.totalorder %s21, 0
    %p153 = por %p151, %p152
    %s155 = sadd.s32 %s154, 1
    %p158 = scmp.eq.s32.totalorder %s15, 1
    %p159 = scmp.ne.s32.totalorder %s154, %s156
    %p160 = scmp.eq.s32.totalorder %s15, 0
    %p161 = por %p159, %p160
    %p162 = scmp.ne.s32.totalorder %s154, %s156
    %p163 = scmp.eq.s32.totalorder %s20, 1
    %p164 = por %p162, %p163
    %p165 = scmp.ne.s32.totalorder %s156, %s157
    %p166 = scmp.eq.s32.totalorder %s20, 0
    %p167 = por %p165, %p166
    %p168 = scmp.ne.s32.totalorder %s156, %s157
    %p169 = scmp.eq.s32.totalorder %s21, 1
    %p170 = por %p168, %p169
    %p172 = scmp.ne.s32.totalorder %s157, %s171
    %p173 = scmp.eq.s32.totalorder %s21, 0
    %p174 = por %p172, %p173
    %s176 = sadd.s32 %s175, 1
    %p179 = scmp.eq.s32.totalorder %s15, 1
    %p180 = scmp.ne.s32.totalorder %s175, %s177
    %p181 = scmp.eq.s32.totalorder %s15, 0
    %p182 = por %p180, %p181
    %p183 = scmp.ne.s32.totalorder %s175, %s177
    %p184 = scmp.eq.s32.totalorder %s20, 1
    %p185 = por %p183, %p184
    %p186 = scmp.ne.s32.totalorder %s177, %s178
    %p187 = scmp.eq.s32.totalorder %s20, 0
    %p188 = por %p186, %p187
    %p189 = scmp.ne.s32.totalorder %s177, %s178
    %p190 = scmp.eq.s32.totalorder %s21, 1
    %p191 = por %p189, %p190
    %p193 = scmp.ne.s32.totalorder %s178, %s192
    %p194 = scmp.eq.s32.totalorder %s21, 0
    %p195 = por %p193, %p194
    %s197 = sadd.s32 %s196, 1
    %p200 = scmp.eq.s32.totalorder %s15, 1
    %p201 = scmp.ne.s32.totalorder %s196, %s198
    %p202 = scmp.eq.s32.totalorder %s15, 0
    %p203 = por %p201, %p202
    %p204 = scmp.ne.s32.totalorder %s196, %s198
    %p205 = scmp.eq.s32.totalorder %s20, 1
    %p206 = por %p204, %p205
    %p207 = scmp.ne.s32.totalorder %s198, %s199
    %p208 = scmp.eq.s32.totalorder %s20, 0
    %p209 = por %p207, %p208
    %p210 = scmp.ne.s32.totalorder %s198, %s199
    %p211 = scmp.eq.s32.totalorder %s21, 1
    %p212 = por %p210, %p211
    %p214 = scmp.ne.s32.totalorder %s199, %s213
    %p215 = scmp.eq.s32.totalorder %s21, 0
    %p216 = por %p214, %p215
    %s217 = ssub.s32 %s15, %s22
    %p218 = scmp.eq.s32.totalorder %s217, 0
    %s220 = sadd.s32 %s219, 1
    %s221 = scalar_select %p218, %s219, %s220
    %p224 = pneg %p218
    %p225 = scmp.eq.s32.totalorder %s15, 1
    %p226 = por %p224, %p225
    %p227 = scmp.ne.s32.totalorder %s219, %s222
    %p228 = scmp.eq.s32.totalorder %s15, 0
    %p229 = por %p227, %p228
    %p230 = scmp.ne.s32.totalorder %s219, %s222
    %p231 = scmp.eq.s32.totalorder %s20, 1
    %p232 = por %p230, %p231
    %p233 = scmp.ne.s32.totalorder %s222, %s223
    %p234 = scmp.eq.s32.totalorder %s20, 0
    %p235 = por %p233, %p234
    %p236 = scmp.ne.s32.totalorder %s222, %s223
    %p237 = scmp.eq.s32.totalorder %s21, 1
    %p238 = por %p236, %p237
    %p240 = scmp.ne.s32.totalorder %s223, %s239
    %p241 = scmp.eq.s32.totalorder %s21, 0
    %p242 = por %p240, %p241
    %p243 = scmp.le.s32.totalorder 1, %s15
    %p244 = scmp.lt.s32.totalorder %s15, 3
    %p245 = pnand %p243, %p244
    %p246 = pneg %p245
    // Predicated region
    $region9: #{tsd_b_forward.7} parent=5 // pred_check
      _
    $region10: #{tsd_b_forward.7} parent=5 // pred_check_branch
      %248 = sbr.rel (%p245) target = $region12
    $region11: #{tsd_b_forward.7} parent=5 // pred_region
      %s249 = ssub.s32 %s15, 1
      // Predicated region
      $region13: #{tsd_b_forward.7} parent=11 // pred_check
        %p250 = pneg %p62
      $region14: #{tsd_b_forward.7} parent=11 // pred_check_branch
        %252 = sbr.rel (%p250) target = $region16
      $region15: #{tsd_b_forward.7} parent=11 // pred_region
        _
      $region16: #{tsd_b_forward.7} parent=11 // pred_fallthru
        _
      // Predicated region
      $region17: #{tsd_b_forward.7} parent=11 // pred_check
        %p253 = pneg %p83
      $region18: #{tsd_b_forward.7} parent=11 // pred_check_branch
        %255 = sbr.rel (%p253) target = $region20
      $region19: #{tsd_b_forward.7} parent=11 // pred_region
        _
      $region20: #{tsd_b_forward.7} parent=11 // pred_fallthru
        _
      // Predicated region
      $region21: #{tsd_b_forward.7} parent=11 // pred_check
        %p256 = pneg %p104
      $region22: #{tsd_b_forward.7} parent=11 // pred_check_branch
        %258 = sbr.rel (%p256) target = $region24
      $region23: #{tsd_b_forward.7} parent=11 // pred_region
        _
      $region24: #{tsd_b_forward.7} parent=11 // pred_fallthru
        _
      // Predicated region
      $region25: #{tsd_b_forward.7} parent=11 // pred_check
        %p259 = pneg %p125
      $region26: #{tsd_b_forward.7} parent=11 // pred_check_branch
        %261 = sbr.rel (%p259) target = $region28
      $region27: #{tsd_b_forward.7} parent=11 // pred_region
        _
      $region28: #{tsd_b_forward.7} parent=11 // pred_fallthru
        _
      // Predicated region
      $region29: #{tsd_b_forward.7} parent=11 // pred_check
        %p262 = pneg %p146
      $region30: #{tsd_b_forward.7} parent=11 // pred_check_branch
        %264 = sbr.rel (%p262) target = $region32
      $region31: #{tsd_b_forward.7} parent=11 // pred_region
        _
      $region32: #{tsd_b_forward.7} parent=11 // pred_fallthru
        _
      // Predicated region
      $region33: #{tsd_b_forward.7} parent=11 // pred_check
        %p265 = pneg %p167
      $region34: #{tsd_b_forward.7} parent=11 // pred_check_branch
        %267 = sbr.rel (%p265) target = $region36
      $region35: #{tsd_b_forward.7} parent=11 // pred_region
        _
      $region36: #{tsd_b_forward.7} parent=11 // pred_fallthru
        _
      // Predicated region
      $region37: #{tsd_b_forward.7} parent=11 // pred_check
        %p268 = pneg %p188
      $region38: #{tsd_b_forward.7} parent=11 // pred_check_branch
        %270 = sbr.rel (%p268) target = $region40
      $region39: #{tsd_b_forward.7} parent=11 // pred_region
        _
      $region40: #{tsd_b_forward.7} parent=11 // pred_fallthru
        _
      // Predicated region
      $region41: #{tsd_b_forward.7} parent=11 // pred_check
        %p271 = pneg %p209
      $region42: #{tsd_b_forward.7} parent=11 // pred_check_branch
        %273 = sbr.rel (%p271) target = $region44
      $region43: #{tsd_b_forward.7} parent=11 // pred_region
        _
      $region44: #{tsd_b_forward.7} parent=11 // pred_fallthru
        _
    $region12: #{tsd_b_forward.7} parent=5 // pred_fallthru
      _
    %p274 = scmp.lt.s32.totalorder %s15, 2
    // Predicated region
    $region45: #{tsd_b_forward.7} parent=5 // pred_check
      %p275 = pneg %p274
    $region46: #{tsd_b_forward.7} parent=5 // pred_check_branch
      %277 = sbr.rel (%p275) target = $region48
    $region47: #{tsd_b_forward.7} parent=5 // pred_region
      // Predicated region
      $region49: #{tsd_b_forward.7} parent=47 // pred_check
        %p278 = pneg %p35
      $region50: #{tsd_b_forward.7} parent=47 // pred_check_branch
        %280 = sbr.rel (%p278) target = $region52
      $region51: #{tsd_b_forward.7} parent=47 // pred_region
        %s281 = smul.u32 8, %s15
        %p282 = scmp.lt.s32.totalorder %s281, 15
        %s283 = scalar_select %p282, %s281, 15
        %s284 = smul.addr %s283, 8
        %s285 = scalar_lea.vmem %s0, %s284
        %s286 = smul.u32 8, %s15
      $region52: #{tsd_b_forward.7} parent=47 // pred_fallthru
        _
    $region48: #{tsd_b_forward.7} parent=5 // pred_fallthru
      _
    %p287 = scmp.le.s32.totalorder 1, %s15
    %p288 = scmp.lt.s32.totalorder %s15, 3
    %p289 = pnand %p287, %p288
    %p290 = pneg %p289
    // Predicated region
    $region53: #{tsd_b_forward.7} parent=5 // pred_check
      _
    $region54: #{tsd_b_forward.7} parent=5 // pred_check_branch
      %292 = sbr.rel (%p289) target = $region56
    $region55: #{tsd_b_forward.7} parent=5 // pred_region
      %s293 = ssub.s32 %s15, 1
      %s294 = smul.u32 8, %s20
      %p295 = scmp.lt.s32.totalorder %s294, 15
      %s296 = scalar_select %p295, %s294, 15
      %s297 = smul.addr %s296, 8
      %s298 = scalar_lea.vmem %s0, %s297
      %p299 = pneg %p41
      %p300 = pneg %p38
      %p301 = pneg %p62
      %p302 = pneg %p59
      %p303 = pneg %p83
      %p304 = pneg %p80
      %p305 = pneg %p104
      %p306 = pneg %p101
      %p307 = pneg %p125
      %p308 = pneg %p122
      %p309 = pneg %p146
      %p310 = pneg %p143
      %p311 = pneg %p167
      %p312 = pneg %p164
      %p313 = pneg %p188
      %p314 = pneg %p185
      %p315 = pneg %p209
      %p316 = pneg %p206
      %p317 = pneg %p235
      %p318 = pneg %p232
      %s319 = smul.u32 8, %s20
      %p320 = scmp.lt.s32.totalorder %s319, 15
      %s321 = scalar_select %p320, %s319, 15
      %s322 = smul.addr %s321, 8
      %s323 = scalar_lea.vmem %s9, %s322
      %s324 = smul.u32 8, %s20
      %p325 = scmp.lt.s32.totalorder %s324, 15
      %s326 = scalar_select %p325, %s324, 15
      %s327 = smul.addr %s326, 8
      %s328 = scalar_lea.vmem %s0, %s327
      %s329 = smul.u32 8, %s20
      %s330 = smul.u32 8, %s20
      %p331 = scmp.lt.s32.totalorder %s330, 15
      %s332 = scalar_select %p331, %s330, 15
      %s333 = smul.addr %s332, 8
      %s334 = scalar_lea.vmem %s9, %s333
      %s335 = smul.u32 8, %s20
      %v337 = vld [vmem:[%s328] sm:$0xff]
      %v338 = vld [vmem:[%s328 + $0x8] sm:$0xff]
      %v339 = vld [vmem:[%s328 + $0x10] sm:$0xff]
      %v340 = vld [vmem:[%s328 + $0x18] sm:$0xff]
      %v341 = vld [vmem:[%s328 + $0x20] sm:$0xff]
      %v342 = vld [vmem:[%s328 + $0x28] sm:$0xff]
      %v343 = vld [vmem:[%s328 + $0x30] sm:$0xff]
      %v344 = vld [vmem:[%s328 + $0x38] sm:$0xff]
      %v345 = vld [vmem:[%s1] sm:$0x1]
      %v346 = vld [vmem:[%s2] sm:$0x1]
      %vm347 = vcmask 261120
      %v348 = vsel %vm347, %v337, 0.0
      %349 = vadd.xlane.f32.xlu0 %v348
      %v350 = vpop.xlane.xlu0 %349
      %v351 = vsel %vm347, %v338, 0.0
      %352 = vadd.xlane.f32.xlu0 %v351
      %v353 = vpop.xlane.xlu0 %352
      %v354 = vsel %vm347, %v339, 0.0
      %355 = vadd.xlane.f32.xlu0 %v354
      %v356 = vpop.xlane.xlu0 %355
      %v357 = vsel %vm347, %v340, 0.0
      %358 = vadd.xlane.f32.xlu0 %v357
      %v359 = vpop.xlane.xlu0 %358
      %v360 = vsel %vm347, %v341, 0.0
      %361 = vadd.xlane.f32.xlu0 %v360
      %v362 = vpop.xlane.xlu0 %361
      %v363 = vsel %vm347, %v342, 0.0
      %364 = vadd.xlane.f32.xlu0 %v363
      %v365 = vpop.xlane.xlu0 %364
      %v366 = vsel %vm347, %v343, 0.0
      %367 = vadd.xlane.f32.xlu0 %v366
      %v368 = vpop.xlane.xlu0 %367
      %v369 = vsel %vm347, %v344, 0.0
      %370 = vadd.xlane.f32.xlu0 %v369
      %v371 = vpop.xlane.xlu0 %370
      %v372 = vrcp.pop 32.0
      %v373 = vmul.f32 %v350, %v372
      %v374 = vmul.f32 %v353, %v372
      %v375 = vmul.f32 %v356, %v372
      %v376 = vmul.f32 %v359, %v372
      %v377 = vmul.f32 %v362, %v372
      %v378 = vmul.f32 %v365, %v372
      %v379 = vmul.f32 %v368, %v372
      %v380 = vmul.f32 %v371, %v372
      %v381 = vsub.f32 %v337, %v373
      %v382 = vsub.f32 %v338, %v374
      %v383 = vsub.f32 %v339, %v375
      %v384 = vsub.f32 %v340, %v376
      %v385 = vsub.f32 %v341, %v377
      %v386 = vsub.f32 %v342, %v378
      %v387 = vsub.f32 %v343, %v379
      %v388 = vsub.f32 %v344, %v380
      %v389 = vmul.f32 %v381, %v381
      %v390 = vmul.f32 %v382, %v382
      %v391 = vmul.f32 %v383, %v383
      %v392 = vmul.f32 %v384, %v384
      %v393 = vmul.f32 %v385, %v385
      %v394 = vmul.f32 %v386, %v386
      %v395 = vmul.f32 %v387, %v387
      %v396 = vmul.f32 %v388, %v388
      %v397 = vsel %vm347, %v389, 0.0
      %398 = vadd.xlane.f32.xlu0 %v397
      %v399 = vpop.xlane.xlu0 %398
      %v400 = vsel %vm347, %v390, 0.0
      %401 = vadd.xlane.f32.xlu0 %v400
      %v402 = vpop.xlane.xlu0 %401
      %v403 = vsel %vm347, %v391, 0.0
      %404 = vadd.xlane.f32.xlu0 %v403
      %v405 = vpop.xlane.xlu0 %404
      %v406 = vsel %vm347, %v392, 0.0
      %407 = vadd.xlane.f32.xlu0 %v406
      %v408 = vpop.xlane.xlu0 %407
      %v409 = vsel %vm347, %v393, 0.0
      %410 = vadd.xlane.f32.xlu0 %v409
      %v411 = vpop.xlane.xlu0 %410
      %v412 = vsel %vm347, %v394, 0.0
      %413 = vadd.xlane.f32.xlu0 %v412
      %v414 = vpop.xlane.xlu0 %413
      %v415 = vsel %vm347, %v395, 0.0
      %416 = vadd.xlane.f32.xlu0 %v415
      %v417 = vpop.xlane.xlu0 %416
      %v418 = vsel %vm347, %v396, 0.0
      %419 = vadd.xlane.f32.xlu0 %v418
      %v420 = vpop.xlane.xlu0 %419
      %v421 = vmul.f32 %v399, %v372
      %v422 = vmul.f32 %v402, %v372
      %v423 = vmul.f32 %v405, %v372
      %v424 = vmul.f32 %v408, %v372
      %v425 = vmul.f32 %v411, %v372
      %v426 = vmul.f32 %v414, %v372
      %v427 = vmul.f32 %v417, %v372
      %v428 = vmul.f32 %v420, %v372
      %v429 = vadd.f32 %v421, 1e-05
      %v430 = vadd.f32 %v422, 1e-05
      %v431 = vadd.f32 %v423, 1e-05
      %v432 = vadd.f32 %v424, 1e-05
      %v433 = vadd.f32 %v425, 1e-05
      %v434 = vadd.f32 %v426, 1e-05
      %v435 = vadd.f32 %v427, 1e-05
      %v436 = vadd.f32 %v428, 1e-05
      %v437 = vrsqrt.pop %v429
      %v438 = vrsqrt.pop %v430
      %v439 = vrsqrt.pop %v431
      %v440 = vrsqrt.pop %v432
      %v441 = vrsqrt.pop %v433
      %v442 = vrsqrt.pop %v434
      %v443 = vrsqrt.pop %v435
      %v444 = vrsqrt.pop %v436
      %v445 = vmul.f32 %v381, %v437
      %v446 = vmul.f32 %v382, %v438
      %v447 = vmul.f32 %v383, %v439
      %v448 = vmul.f32 %v384, %v440
      %v449 = vmul.f32 %v385, %v441
      %v450 = vmul.f32 %v386, %v442
      %v451 = vmul.f32 %v387, %v443
      %v452 = vmul.f32 %v388, %v444
      %v454 = vlaneseq
      %v455 = vshrl.u32 %v454, 7
      %v456 = vsub.s32 0, %v455
      %v457 = vrot.slane %v345, %v456
      %v459 = vmul.f32 %v445, %v457
      %v460 = vmul.f32 %v446, %v457
      %v461 = vmul.f32 %v447, %v457
      %v462 = vmul.f32 %v448, %v457
      %v463 = vmul.f32 %v449, %v457
      %v464 = vmul.f32 %v450, %v457
      %v465 = vmul.f32 %v451, %v457
      %v466 = vmul.f32 %v452, %v457
      %v468 = vlaneseq
      %v469 = vshrl.u32 %v468, 7
      %v470 = vsub.s32 0, %v469
      %v471 = vrot.slane %v346, %v470
      %v473 = vadd.f32 %v459, %v471
      %v474 = vadd.f32 %v460, %v471
      %v475 = vadd.f32 %v461, %v471
      %v476 = vadd.f32 %v462, %v471
      %v477 = vadd.f32 %v463, %v471
      %v478 = vadd.f32 %v464, %v471
      %v479 = vadd.f32 %v465, %v471
      %v480 = vadd.f32 %v466, %v471
      %v481 = vpack.c.bf16 %v474, %v473
      %v482 = vpack.c.bf16 %v476, %v475
      %v483 = vpack.c.bf16 %v478, %v477
      %v484 = vpack.c.bf16 %v480, %v479
      %v485 = vld [vmem:[%s3] sm:$0xf]
      %v486 = vld [vmem:[%s3 + $0x4] sm:$0xf]
      %v487 = vld [vmem:[%s3 + $0x8] sm:$0xf]
      %v488 = vld [vmem:[%s3 + $0xc] sm:$0xf]
      %v489 = vld [vmem:[%s4] sm:$0x1]
      %v491 = vlaneseq
      %v492 = vshrl.u32 %v491, 7
      %v493 = vsub.s32 0, %v492
      %v494 = vrot.slane %v489, %v493
      %v500 = vunpack.c.l.b16 %v485
      %v501 = vunpack.c.l.b16 %v486
      %v502 = vunpack.c.l.b16 %v487
      %v503 = vunpack.c.l.b16 %v488
      %v504 = vpack.c.b16 %v501, %v500
      %v505 = vpack.c.b16 %v503, %v502
      %v509 = vsel %vm347, %v481, 0
      %v512 = vsel %vm347, %v482, 0
      %v515 = vsel %vm347, %v483, 0
      %v518 = vsel %vm347, %v484, 0
      %520 = vmatprep.subr.bf16.mxu0 0
      %521 = vmatpush1.bf16.msra.mxu0 %v504
      %522 = vmatprep.subr.bf16.mxu0 0
      %523 = vmatpush1.bf16.msra.mxu0 %v505
      %524 = vmatprep.subr.bf16.mxu0 0
      %525 = vmatpush1.bf16.msra.mxu0 0
      %526 = vmatprep.subr.bf16.mxu0 0
      %527 = vmatpush1.bf16.msra.mxu0 0
      %528 = vmatprep.subr.bf16.mxu0 0
      %529 = vmatpush1.bf16.msra.mxu0 0
      %530 = vmatprep.subr.bf16.mxu0 0
      %531 = vmatpush1.bf16.msra.mxu0 0
      %532 = vmatprep.subr.bf16.mxu0 0
      %533 = vmatpush1.bf16.msra.mxu0 0
      %534 = vmatprep.subr.bf16.mxu0 0
      %535 = vmatpush1.bf16.msra.mxu0 0
      %536 = vmatprep.subr.bf16.mxu0 0
      %537 = vmatpush1.bf16.msra.mxu0 0
      %538 = vmatprep.subr.bf16.mxu0 0
      %539 = vmatpush1.bf16.msra.mxu0 0
      %540 = vmatprep.subr.bf16.mxu0 0
      %541 = vmatpush1.bf16.msra.mxu0 0
      %542 = vmatprep.subr.bf16.mxu0 0
      %543 = vmatpush1.bf16.msra.mxu0 0
      %544 = vmatprep.subr.bf16.mxu0 0
      %545 = vmatpush1.bf16.msra.mxu0 0
      %546 = vmatprep.subr.bf16.mxu0 0
      %547 = vmatpush1.bf16.msra.mxu0 0
      %548 = vmatprep.subr.bf16.mxu0 0
      %549 = vmatpush1.bf16.msra.mxu0 0
      %550 = vmatprep.subr.bf16.mxu0 0
      %551 = vmatpush1.bf16.msra.mxu0 0
      %552 = vmatprep.mubr.bf16.mxu0 0
      %553 = vmatmul.mubr.bf16.gmra.mrb[0].mxu0 %v509
      %v554 = vpop.f32.mrb[0].mxu0
      %v555 = vadd.f32 %v494, %v554
      %v556 = vpop.f32.mrb[0].mxu0
      %v557 = vpop.f32.mrb[0].mxu0
      %v558 = vadd.f32 %v494, %v557
      %v559 = vpop.f32.mrb[0].mxu0
      %560 = vmatprep.mubr.bf16.mxu0 0
      %561 = vmatmul.mubr.bf16.gmra.mrb[0].mxu0 %v512
      %v562 = vpop.f32.mrb[0].mxu0
      %v563 = vadd.f32 %v494, %v562
      %v564 = vpop.f32.mrb[0].mxu0
      %v565 = vpop.f32.mrb[0].mxu0
      %v566 = vadd.f32 %v494, %v565
      %v567 = vpop.f32.mrb[0].mxu0
      %568 = vmatprep.mubr.bf16.mxu0 0
      %569 = vmatmul.mubr.bf16.gmra.mrb[0].mxu0 %v515
      %v570 = vpop.f32.mrb[0].mxu0
      %v571 = vadd.f32 %v494, %v570
      %v572 = vpop.f32.mrb[0].mxu0
      %v573 = vpop.f32.mrb[0].mxu0
      %v574 = vadd.f32 %v494, %v573
      %v575 = vpop.f32.mrb[0].mxu0
      %576 = vmatprep.mubr.bf16.mxu0 0
      %577 = vmatmul.mubr.bf16.gmra.mrb[0].mxu0 %v518
      %v578 = vpop.f32.mrb[0].mxu0
      %v579 = vadd.f32 %v494, %v578
      %v580 = vpop.f32.mrb[0].mxu0
      %v581 = vpop.f32.mrb[0].mxu0
      %v582 = vadd.f32 %v494, %v581
      %v583 = vpop.f32.mrb[0].mxu0
      %584 = vdwg.mxu0
      %v585 = vlaneseq
      %v586 = vshrl.u32 %v585, 7
      %vm587 = vcmp.ge.s32.totalorder %v586, 1
      %v588 = vrot.slane %v555, 7
      %v589 = vrot.slane %v558, 7
      %v590 = vrot.slane %v563, 7
      %v591 = vrot.slane %v566, 7
      %v592 = vrot.slane %v571, 7
      %v593 = vrot.slane %v574, 7
      %v594 = vrot.slane %v579, 7
      %v595 = vrot.slane %v582, 7
      %v596 = vsel %vm587, %v588, 0.0
      %v597 = vsel %vm587, %v589, 0.0
      %v598 = vsel %vm587, %v590, 0.0
      %v599 = vsel %vm587, %v591, 0.0
      %v600 = vsel %vm587, %v592, 0.0
      %v601 = vsel %vm587, %v593, 0.0
      %v602 = vsel %vm587, %v594, 0.0
      %v603 = vsel %vm587, %v595, 0.0
      %v604 = vld [vmem:[%s5] sm:$0x1]
      %v605 = vlaneseq
      %v606 = vshrl.u32 %v605, 7
      %v607 = vsub.s32 0, %v606
      %v608 = vrot.slane %v604, %v607
      %v609 = vmul.f32 %v608, 0.0
      %v610 = vmul.f32 %v596, %v608
      %v611 = vmul.f32 %v597, %v608
      %v612 = vmul.f32 %v598, %v608
      %v613 = vmul.f32 %v599, %v608
      %v614 = vmul.f32 %v600, %v608
      %v615 = vmul.f32 %v601, %v608
      %v616 = vmul.f32 %v602, %v608
      %v617 = vadd.f32 %v609, 0.0
      %v618 = vadd.f32 %v610, 0.0
      %v619 = vadd.f32 %v611, 0.0
      %v620 = vadd.f32 %v612, 0.0
      %v621 = vadd.f32 %v613, 0.0
      %v622 = vadd.f32 %v614, 0.0
      %v623 = vadd.f32 %v615, 0.0
      %v624 = vadd.f32 %v616, 0.0
      %v625 = vld [vmem:[%s5 + $0x3] sm:$0x1]
      %v626 = vlaneseq
      %v627 = vshrl.u32 %v626, 7
      %v628 = vsub.s32 0, %v627
      %v629 = vrot.slane %v625, %v628
      %v630 = vmul.f32 %v596, %v629
      %v631 = vmul.f32 %v597, %v629
      %v632 = vmul.f32 %v598, %v629
      %v633 = vmul.f32 %v599, %v629
      %v634 = vmul.f32 %v600, %v629
      %v635 = vmul.f32 %v601, %v629
      %v636 = vmul.f32 %v602, %v629
      %v637 = vmul.f32 %v603, %v629
      %v638 = vadd.f32 %v617, %v630
      %v639 = vadd.f32 %v618, %v631
      %v640 = vadd.f32 %v619, %v632
      %v641 = vadd.f32 %v620, %v633
      %v642 = vadd.f32 %v621, %v634
      %v643 = vadd.f32 %v622, %v635
      %v644 = vadd.f32 %v623, %v636
      %v645 = vadd.f32 %v624, %v637
      %v646 = vld [vmem:[%s5 + $0x6] sm:$0x1]
      %v647 = vlaneseq
      %v648 = vshrl.u32 %v647, 7
      %v649 = vsub.s32 0, %v648
      %v650 = vrot.slane %v646, %v649
      %v651 = vmul.f32 %v597, %v650
      %v652 = vmul.f32 %v598, %v650
      %v653 = vmul.f32 %v599, %v650
      %v654 = vmul.f32 %v600, %v650
      %v655 = vmul.f32 %v601, %v650
      %v656 = vmul.f32 %v602, %v650
      %v657 = vmul.f32 %v603, %v650
      %v658 = vmul.f32 %v650, 0.0
      %v659 = vadd.f32 %v638, %v651
      %v660 = vadd.f32 %v639, %v652
      %v661 = vadd.f32 %v640, %v653
      %v662 = vadd.f32 %v641, %v654
      %v663 = vadd.f32 %v642, %v655
      %v664 = vadd.f32 %v643, %v656
      %v665 = vadd.f32 %v644, %v657
      %v666 = vadd.f32 %v645, %v658
      %v667 = vld [vmem:[%s5 + $0x1] sm:$0x1]
      %v668 = vlaneseq
      %v669 = vshrl.u32 %v668, 7
      %v670 = vsub.s32 0, %v669
      %v671 = vrot.slane %v667, %v670
      %v672 = vmul.f32 %v671, 0.0
      %v673 = vmul.f32 %v555, %v671
      %v674 = vmul.f32 %v558, %v671
      %v675 = vmul.f32 %v563, %v671
      %v676 = vmul.f32 %v566, %v671
      %v677 = vmul.f32 %v571, %v671
      %v678 = vmul.f32 %v574, %v671
      %v679 = vmul.f32 %v579, %v671
      %v680 = vadd.f32 %v659, %v672
      %v681 = vadd.f32 %v660, %v673
      %v682 = vadd.f32 %v661, %v674
      %v683 = vadd.f32 %v662, %v675
      %v684 = vadd.f32 %v663, %v676
      %v685 = vadd.f32 %v664, %v677
      %v686 = vadd.f32 %v665, %v678
      %v687 = vadd.f32 %v666, %v679
      %v688 = vld [vmem:[%s5 + $0x4] sm:$0x1]
      %v689 = vlaneseq
      %v690 = vshrl.u32 %v689, 7
      %v691 = vsub.s32 0, %v690
      %v692 = vrot.slane %v688, %v691
      %v693 = vmul.f32 %v555, %v692
      %v694 = vmul.f32 %v558, %v692
      %v695 = vmul.f32 %v563, %v692
      %v696 = vmul.f32 %v566, %v692
      %v697 = vmul.f32 %v571, %v692
      %v698 = vmul.f32 %v574, %v692
      %v699 = vmul.f32 %v579, %v692
      %v700 = vmul.f32 %v582, %v692
      %v701 = vadd.f32 %v680, %v693
      %v702 = vadd.f32 %v681, %v694
      %v703 = vadd.f32 %v682, %v695
      %v704 = vadd.f32 %v683, %v696
      %v705 = vadd.f32 %v684, %v697
      %v706 = vadd.f32 %v685, %v698
      %v707 = vadd.f32 %v686, %v699
      %v708 = vadd.f32 %v687, %v700
      %v709 = vld [vmem:[%s5 + $0x7] sm:$0x1]
      %v710 = vlaneseq
      %v711 = vshrl.u32 %v710, 7
      %v712 = vsub.s32 0, %v711
      %v713 = vrot.slane %v709, %v712
      %v714 = vmul.f32 %v558, %v713
      %v715 = vmul.f32 %v563, %v713
      %v716 = vmul.f32 %v566, %v713
      %v717 = vmul.f32 %v571, %v713
      %v718 = vmul.f32 %v574, %v713
      %v719 = vmul.f32 %v579, %v713
      %v720 = vmul.f32 %v582, %v713
      %v721 = vmul.f32 %v713, 0.0
      %v722 = vadd.f32 %v701, %v714
      %v723 = vadd.f32 %v702, %v715
      %v724 = vadd.f32 %v703, %v716
      %v725 = vadd.f32 %v704, %v717
      %v726 = vadd.f32 %v705, %v718
      %v727 = vadd.f32 %v706, %v719
      %v728 = vadd.f32 %v707, %v720
      %v729 = vadd.f32 %v708, %v721
      %vm730 = vcmp.lt.s32.totalorder %v586, 7
      %v731 = vrot.slane %v555, 1
      %v732 = vrot.slane %v558, 1
      %v733 = vrot.slane %v563, 1
      %v734 = vrot.slane %v566, 1
      %v735 = vrot.slane %v571, 1
      %v736 = vrot.slane %v574, 1
      %v737 = vrot.slane %v579, 1
      %v738 = vrot.slane %v582, 1
      %v739 = vsel %vm730, %v731, 0.0
      %v740 = vsel %vm730, %v732, 0.0
      %v741 = vsel %vm730, %v733, 0.0
      %v742 = vsel %vm730, %v734, 0.0
      %v743 = vsel %vm730, %v735, 0.0
      %v744 = vsel %vm730, %v736, 0.0
      %v745 = vsel %vm730, %v737, 0.0
      %v746 = vsel %vm730, %v738, 0.0
      %v747 = vld [vmem:[%s5 + $0x2] sm:$0x1]
      %v748 = vlaneseq
      %v749 = vshrl.u32 %v748, 7
      %v750 = vsub.s32 0, %v749
      %v751 = vrot.slane %v747, %v750
      %v752 = vmul.f32 %v751, 0.0
      %v753 = vmul.f32 %v739, %v751
      %v754 = vmul.f32 %v740, %v751
      %v755 = vmul.f32 %v741, %v751
      %v756 = vmul.f32 %v742, %v751
      %v757 = vmul.f32 %v743, %v751
      %v758 = vmul.f32 %v744, %v751
      %v759 = vmul.f32 %v745, %v751
      %v760 = vadd.f32 %v722, %v752
      %v761 = vadd.f32 %v723, %v753
      %v762 = vadd.f32 %v724, %v754
      %v763 = vadd.f32 %v725, %v755
      %v764 = vadd.f32 %v726, %v756
      %v765 = vadd.f32 %v727, %v757
      %v766 = vadd.f32 %v728, %v758
      %v767 = vadd.f32 %v729, %v759
      %v768 = vld [vmem:[%s5 + $0x5] sm:$0x1]
      %v769 = vlaneseq
      %v770 = vshrl.u32 %v769, 7
      %v771 = vsub.s32 0, %v770
      %v772 = vrot.slane %v768, %v771
      %v773 = vmul.f32 %v739, %v772
      %v774 = vmul.f32 %v740, %v772
      %v775 = vmul.f32 %v741, %v772
      %v776 = vmul.f32 %v742, %v772
      %v777 = vmul.f32 %v743, %v772
      %v778 = vmul.f32 %v744, %v772
      %v779 = vmul.f32 %v745, %v772
      %v780 = vmul.f32 %v746, %v772
      %v781 = vadd.f32 %v760, %v773
      %v782 = vadd.f32 %v761, %v774
      %v783 = vadd.f32 %v762, %v775
      %v784 = vadd.f32 %v763, %v776
      %v785 = vadd.f32 %v764, %v777
      %v786 = vadd.f32 %v765, %v778
      %v787 = vadd.f32 %v766, %v779
      %v788 = vadd.f32 %v767, %v780
      %v789 = vld [vmem:[%s5 + $0x8] sm:$0x1]
      %v790 = vlaneseq
      %v791 = vshrl.u32 %v790, 7
      %v792 = vsub.s32 0, %v791
      %v793 = vrot.slane %v789, %v792
      %v794 = vmul.f32 %v740, %v793
      %v795 = vmul.f32 %v741, %v793
      %v796 = vmul.f32 %v742, %v793
      %v797 = vmul.f32 %v743, %v793
      %v798 = vmul.f32 %v744, %v793
      %v799 = vmul.f32 %v745, %v793
      %v800 = vmul.f32 %v746, %v793
      %v801 = vmul.f32 %v793, 0.0
      %v802 = vadd.f32 %v781, %v794
      %v803 = vadd.f32 %v782, %v795
      %v804 = vadd.f32 %v783, %v796
      %v805 = vadd.f32 %v784, %v797
      %v806 = vadd.f32 %v785, %v798
      %v807 = vadd.f32 %v786, %v799
      %v808 = vadd.f32 %v787, %v800
      %v809 = vadd.f32 %v788, %v801
      %v810 = vld [vmem:[%s6] sm:$0x1]
      %v812 = vlaneseq
      %v813 = vshrl.u32 %v812, 7
      %v814 = vsub.s32 0, %v813
      %v815 = vrot.slane %v810, %v814
      %v817 = vadd.f32 %v802, %v815
      %v818 = vadd.f32 %v803, %v815
      %v819 = vadd.f32 %v804, %v815
      %v820 = vadd.f32 %v805, %v815
      %v821 = vadd.f32 %v806, %v815
      %v822 = vadd.f32 %v807, %v815
      %v823 = vadd.f32 %v808, %v815
      %v824 = vadd.f32 %v809, %v815
      %v825 = vmul.f32 %v817, %v817
      %v826 = vmul.f32 %v818, %v818
      %v827 = vmul.f32 %v819, %v819
      %v828 = vmul.f32 %v820, %v820
      %v829 = vmul.f32 %v821, %v821
      %v830 = vmul.f32 %v822, %v822
      %v831 = vmul.f32 %v823, %v823
      %v832 = vmul.f32 %v824, %v824
      %v833 = vmul.f32 %v817, %v825
      %v834 = vmul.f32 %v818, %v826
      %v835 = vmul.f32 %v819, %v827
      %v836 = vmul.f32 %v820, %v828
      %v837 = vmul.f32 %v821, %v829
      %v838 = vmul.f32 %v822, %v830
      %v839 = vmul.f32 %v823, %v831
      %v840 = vmul.f32 %v824, %v832
      %v841 = vmul.f32 %v833, 0.044715
      %v842 = vmul.f32 %v834, 0.044715
      %v843 = vmul.f32 %v835, 0.044715
      %v844 = vmul.f32 %v836, 0.044715
      %v845 = vmul.f32 %v837, 0.044715
      %v846 = vmul.f32 %v838, 0.044715
      %v847 = vmul.f32 %v839, 0.044715
      %v848 = vmul.f32 %v840, 0.044715
      %v849 = vadd.f32 %v817, %v841
      %v850 = vadd.f32 %v818, %v842
      %v851 = vadd.f32 %v819, %v843
      %v852 = vadd.f32 %v820, %v844
      %v853 = vadd.f32 %v821, %v845
      %v854 = vadd.f32 %v822, %v846
      %v855 = vadd.f32 %v823, %v847
      %v856 = vadd.f32 %v824, %v848
      %v857 = vmul.f32 %v849, 0.7978846
      %v858 = vmul.f32 %v850, 0.7978846
      %v859 = vmul.f32 %v851, 0.7978846
      %v860 = vmul.f32 %v852, 0.7978846
      %v861 = vmul.f32 %v853, 0.7978846
      %v862 = vmul.f32 %v854, 0.7978846
      %v863 = vmul.f32 %v855, 0.7978846
      %v864 = vmul.f32 %v856, 0.7978846
      %v865 = vtanh.pop %v857
      %v866 = vtanh.pop %v858
      %v867 = vtanh.pop %v859
      %v868 = vtanh.pop %v860
      %v869 = vtanh.pop %v861
      %v870 = vtanh.pop %v862
      %v871 = vtanh.pop %v863
      %v872 = vtanh.pop %v864
      %v873 = vadd.f32 %v865, 1.0
      %v874 = vadd.f32 %v866, 1.0
      %v875 = vadd.f32 %v867, 1.0
      %v876 = vadd.f32 %v868, 1.0
      %v877 = vadd.f32 %v869, 1.0
      %v878 = vadd.f32 %v870, 1.0
      %v879 = vadd.f32 %v871, 1.0
      %v880 = vadd.f32 %v872, 1.0
      %v881 = vmul.f32 %v873, 0.5
      %v882 = vmul.f32 %v874, 0.5
      %v883 = vmul.f32 %v875, 0.5
      %v884 = vmul.f32 %v876, 0.5
      %v885 = vmul.f32 %v877, 0.5
      %v886 = vmul.f32 %v878, 0.5
      %v887 = vmul.f32 %v879, 0.5
      %v888 = vmul.f32 %v880, 0.5
      %v889 = vmul.f32 %v817, %v881
      %v890 = vmul.f32 %v818, %v882
      %v891 = vmul.f32 %v819, %v883
      %v892 = vmul.f32 %v820, %v884
      %v893 = vmul.f32 %v821, %v885
      %v894 = vmul.f32 %v822, %v886
      %v895 = vmul.f32 %v823, %v887
      %v896 = vmul.f32 %v824, %v888
      %v897 = vpack.c.bf16 %v890, %v889
      %v898 = vpack.c.bf16 %v892, %v891
      %v899 = vpack.c.bf16 %v894, %v893
      %v900 = vpack.c.bf16 %v896, %v895
      %v901 = vld [vmem:[%s7] sm:$0xf]
      %v902 = vld [vmem:[%s7 + $0x4] sm:$0xf]
      %v903 = vld [vmem:[%s7 + $0x8] sm:$0xf]
      %v904 = vld [vmem:[%s7 + $0xc] sm:$0xf]
      %v905 = vld [vmem:[%s7 + $0x10] sm:$0xf]
      %v906 = vld [vmem:[%s7 + $0x14] sm:$0xf]
      %v907 = vld [vmem:[%s7 + $0x18] sm:$0xf]
      %v908 = vld [vmem:[%s7 + $0x1c] sm:$0xf]
      %v909 = vld [vmem:[%s8] sm:$0x1]
      %v911 = vlaneseq
      %v912 = vshrl.u32 %v911, 7
      %v913 = vsub.s32 0, %v912
      %v914 = vrot.slane %v909, %v913
      %v924 = vunpack.c.l.b16 %v901
      %v925 = vunpack.c.l.b16 %v902
      %v926 = vunpack.c.l.b16 %v903
      %v927 = vunpack.c.l.b16 %v904
      %v928 = vunpack.c.l.b16 %v905
      %v929 = vunpack.c.l.b16 %v906
      %v930 = vunpack.c.l.b16 %v907
      %v931 = vunpack.c.l.b16 %v908
      %v932 = vpack.c.b16 %v925, %v924
      %v933 = vpack.c.b16 %v927, %v926
      %v934 = vpack.c.b16 %v929, %v928
      %v935 = vpack.c.b16 %v931, %v930
      %vm940 = vcmask 523264
      %v942 = vsel %vm940, %v897, 0
      %v945 = vsel %vm940, %v898, 0
      %v948 = vsel %vm940, %v899, 0
      %v951 = vsel %vm940, %v900, 0
      %953 = vmatprep.subr.bf16.mxu0 0
      %954 = vmatpush1.bf16.msra.mxu0 %v932
      %955 = vmatprep.subr.bf16.mxu0 0
      %956 = vmatpush1.bf16.msra.mxu0 %v933
      %957 = vmatprep.subr.bf16.mxu0 0
      %958 = vmatpush1.bf16.msra.mxu0 %v934
      %959 = vmatprep.subr.bf16.mxu0 0
      %960 = vmatpush1.bf16.msra.mxu0 %v935
      %961 = vmatprep.subr.bf16.mxu0 0
      %962 = vmatpush1.bf16.msra.mxu0 0
      %963 = vmatprep.subr.bf16.mxu0 0
      %964 = vmatpush1.bf16.msra.mxu0 0
      %965 = vmatprep.subr.bf16.mxu0 0
      %966 = vmatpush1.bf16.msra.mxu0 0
      %967 = vmatprep.subr.bf16.mxu0 0
      %968 = vmatpush1.bf16.msra.mxu0 0
      %969 = vmatprep.subr.bf16.mxu0 0
      %970 = vmatpush1.bf16.msra.mxu0 0
      %971 = vmatprep.subr.bf16.mxu0 0
      %972 = vmatpush1.bf16.msra.mxu0 0
      %973 = vmatprep.subr.bf16.mxu0 0
      %974 = vmatpush1.bf16.msra.mxu0 0
      %975 = vmatprep.subr.bf16.mxu0 0
      %976 = vmatpush1.bf16.msra.mxu0 0
      %977 = vmatprep.subr.bf16.mxu0 0
      %978 = vmatpush1.bf16.msra.mxu0 0
      %979 = vmatprep.subr.bf16.mxu0 0
      %980 = vmatpush1.bf16.msra.mxu0 0
      %981 = vmatprep.subr.bf16.mxu0 0
      %982 = vmatpush1.bf16.msra.mxu0 0
      %983 = vmatprep.subr.bf16.mxu0 0
      %984 = vmatpush1.bf16.msra.mxu0 0
      %985 = vmatprep.mubr.bf16.mxu0 0
      %986 = vmatmul.mubr.bf16.gmra.mrb[0].mxu0 %v942
      %v987 = vpop.f32.mrb[0].mxu0
      %v988 = vadd.f32 %v914, %v987
      %v989 = vpop.f32.mrb[0].mxu0
      %v990 = vpop.f32.mrb[0].mxu0
      %v991 = vadd.f32 %v914, %v990
      %v992 = vpop.f32.mrb[0].mxu0
      %993 = vmatprep.mubr.bf16.mxu0 0
      %994 = vmatmul.mubr.bf16.gmra.mrb[0].mxu0 %v945
      %v995 = vpop.f32.mrb[0].mxu0
      %v996 = vadd.f32 %v914, %v995
      %v997 = vpop.f32.mrb[0].mxu0
      %v998 = vpop.f32.mrb[0].mxu0
      %v999 = vadd.f32 %v914, %v998
      %v1000 = vpop.f32.mrb[0].mxu0
      %1001 = vmatprep.mubr.bf16.mxu0 0
      %1002 = vmatmul.mubr.bf16.gmra.mrb[0].mxu0 %v948
      %v1003 = vpop.f32.mrb[0].mxu0
      %v1004 = vadd.f32 %v914, %v1003
      %v1005 = vpop.f32.mrb[0].mxu0
      %v1006 = vpop.f32.mrb[0].mxu0
      %v1007 = vadd.f32 %v914, %v1006
      %v1008 = vpop.f32.mrb[0].mxu0
      %1009 = vmatprep.mubr.bf16.mxu0 0
      %1010 = vmatmul.mubr.bf16.gmra.mrb[0].mxu0 %v951
      %v1011 = vpop.f32.mrb[0].mxu0
      %v1012 = vadd.f32 %v914, %v1011
      %v1013 = vpop.f32.mrb[0].mxu0
      %v1014 = vpop.f32.mrb[0].mxu0
      %v1015 = vadd.f32 %v914, %v1014
      %v1016 = vpop.f32.mrb[0].mxu0
      %1017 = vdwg.mxu0
      %v1018 = vadd.f32 %v337, %v988
      %v1019 = vadd.f32 %v338, %v991
      %v1020 = vadd.f32 %v339, %v996
      %v1021 = vadd.f32 %v340, %v999
      %v1022 = vadd.f32 %v341, %v1004
      %v1023 = vadd.f32 %v342, %v1007
      %v1024 = vadd.f32 %v343, %v1012
      %v1025 = vadd.f32 %v344, %v1015
      %1026 = vst.msk [vmem:[%s334] sm:$0xff] %vm347, %v1018
      %1027 = vst.msk [vmem:[%s334 + $0x8] sm:$0xff] %vm347, %v1019
      %1028 = vst.msk [vmem:[%s334 + $0x10] sm:$0xff] %vm347, %v1020
      %1029 = vst.msk [vmem:[%s334 + $0x18] sm:$0xff] %vm347, %v1021
      %1030 = vst.msk [vmem:[%s334 + $0x20] sm:$0xff] %vm347, %v1022
      %1031 = vst.msk [vmem:[%s334 + $0x28] sm:$0xff] %vm347, %v1023
      %1032 = vst.msk [vmem:[%s334 + $0x30] sm:$0xff] %vm347, %v1024
      %1033 = vst.msk [vmem:[%s334 + $0x38] sm:$0xff] %vm347, %v1025
      %s1034 = smul.u32 8, %s20
      %p1035 = scmp.lt.s32.totalorder %s1034, 15
      %s1036 = scalar_select %p1035, %s1034, 15
      %s1037 = smul.addr %s1036, 8
      %s1038 = scalar_lea.vmem %s9, %s1037
      // Predicated region
      $region57: #{tsd_b_forward.7} parent=55 // pred_check
        %p1039 = pneg %p232
      $region58: #{tsd_b_forward.7} parent=55 // pred_check_branch
        %1041 = sbr.rel (%p1039) target = $region60
      $region59: #{tsd_b_forward.7} parent=55 // pred_region
        %s1042 = smul.u32 8, %s20
      $region60: #{tsd_b_forward.7} parent=55 // pred_fallthru
        _
    $region56: #{tsd_b_forward.7} parent=5 // pred_fallthru
      _
    %p1043 = scmp.le.s32.totalorder 2, %s15
    // Predicated region
    $region61: #{tsd_b_forward.7} parent=5 // pred_check
      %p1044 = pneg %p1043
    $region62: #{tsd_b_forward.7} parent=5 // pred_check_branch
      %1046 = sbr.rel (%p1044) target = $region64
    $region63: #{tsd_b_forward.7} parent=5 // pred_region
      %s1047 = ssub.s32 %s15, 2
      // Predicated region
      $region65: #{tsd_b_forward.7} parent=63 // pred_check
        %p1048 = pneg %p238
      $region66: #{tsd_b_forward.7} parent=63 // pred_check_branch
        %1050 = sbr.rel (%p1048) target = $region68
      $region67: #{tsd_b_forward.7} parent=63 // pred_region
        %s1051 = smul.u32 8, %s21
        %p1052 = scmp.lt.s32.totalorder %s1051, 15
        %s1053 = scalar_select %p1052, %s1051, 15
        %s1054 = smul.addr %s1053, 8
        %s1055 = scalar_lea.vmem %s9, %s1054
      $region68: #{tsd_b_forward.7} parent=63 // pred_fallthru
        _
    $region64: #{tsd_b_forward.7} parent=5 // pred_fallthru
      _
  $region6: #{tsd_b_forward.7} parent=0 // loop_footer
    %s19 = sadd.s32 1, %s15
  $region7: #{tsd_b_forward.7} parent=0 // loop_footer_branch
    %14 = sbr.rel target = $region3
  $region8: #{tsd_b_forward.7} parent=0 // loop_exit
    _

// kernel: tsd_b_forward.5
$region0: #{tsd_b_forward.5}
  #allocation0 [shape = 'u32[]', space=smem, size = 0x4, offset = 0x4, fixed_abs, tag = 'smem constant byte address 0x4 - core index']
  #allocation1 [shape = 'u32[144,128]{1,0:T(1,128)}', space=vmem, size = 0x12000, scoped, tag = 'internal scratch']
  %s0 = inlined_call_operand.vmem [shape: bf16[128,36], index: 0, kind: input, shape index: {}]
  %s1 = inlined_call_operand.vmem [shape: bf16[36,32], index: 1, kind: input, shape index: {}]
  %s2 = inlined_call_operand.vmem [shape: f32[1,32], index: 2, kind: input, shape index: {}]
  %s3 = inlined_call_operand.vmem [shape: f32[1,32], index: 3, kind: input, shape index: {}]
  %s4 = inlined_call_operand.vmem [shape: f32[1,32], index: 4, kind: input, shape index: {}]
  %s5 = inlined_call_operand.vmem [shape: f32[128,32], index: 5, kind: output, shape index: {}]
  %s6 = sld [smem:[#allocation0]]
  $region53: #{tsd_b_forward.5} parent=0
    _
  %s8 = ssub.s32 1, %s6
  %s9 = scalar_select 0, %s8, %s6
  loop: start=0, step=1, limit=4
  $region2: #{tsd_b_forward.5} parent=0 // loop_pre_header
    _
  $region3: #{tsd_b_forward.5} parent=0 // loop_header
    %s11 = sphi 0, %s15
    %p12 = scmp.ge.s32.totalorder %s11, 4
    %s21 = sphi 0, %s23
    %s24 = sphi 0, %s21
    %s25 = sphi 0, %s24
    %s41 = sphi 0, %s25
    %s45 = sphi 0, %s45
    %s47 = sphi 0, %s45
    %s48 = sphi 0, %s47
    %s62 = sphi 0, %s48
    %s66 = sphi 0, %s66
    %s68 = sphi 0, %s66
    %s69 = sphi 0, %s68
    %s83 = sphi 0, %s69
    %s87 = sphi 0, %s87
    %s89 = sphi 0, %s87
    %s90 = sphi 0, %s89
    %s104 = sphi 0, %s90
    %s108 = sphi 0, %s108
    %s110 = sphi 0, %s108
    %s111 = sphi 0, %s110
    %s125 = sphi 0, %s111
    %s131 = sphi 0, %s133
    %s134 = sphi 0, %s131
    %s135 = sphi 0, %s134
    %s151 = sphi 0, %s135
  $region4: #{tsd_b_forward.5} parent=0 // loop_header_branch
    %14 = sbr.rel (%p12) target = $region8
  $region5: #{tsd_b_forward.5} parent=0 // loop_body
    %s16 = ssub.s32 %s11, 1
    %s17 = ssub.s32 %s11, 2
    %s18 = sadd.s32 %s11, 1
    %s19 = ssub.s32 %s11, %s18
    %p20 = scmp.eq.s32.totalorder %s19, 0
    %s22 = sadd.s32 %s21, 1
    %s23 = scalar_select %p20, %s21, %s22
    %p26 = pneg %p20
    %p27 = scmp.eq.s32.totalorder %s11, 1
    %p28 = por %p26, %p27
    %p29 = scmp.ne.s32.totalorder %s21, %s24
    %p30 = scmp.eq.s32.totalorder %s11, 0
    %p31 = por %p29, %p30
    %p32 = scmp.ne.s32.totalorder %s21, %s24
    %p33 = scmp.eq.s32.totalorder %s16, 1
    %p34 = por %p32, %p33
    %p35 = scmp.ne.s32.totalorder %s24, %s25
    %p36 = scmp.eq.s32.totalorder %s16, 0
    %p37 = por %p35, %p36
    %p38 = scmp.ne.s32.totalorder %s24, %s25
    %p39 = scmp.eq.s32.totalorder %s17, 1
    %p40 = por %p38, %p39
    %p42 = scmp.ne.s32.totalorder %s25, %s41
    %p43 = scmp.eq.s32.totalorder %s17, 0
    %p44 = por %p42, %p43
    %s46 = sadd.s32 %s45, 1
    %p49 = scmp.eq.s32.totalorder %s11, 1
    %p50 = scmp.ne.s32.totalorder %s45, %s47
    %p51 = scmp.eq.s32.totalorder %s11, 0
    %p52 = por %p50, %p51
    %p53 = scmp.ne.s32.totalorder %s45, %s47
    %p54 = scmp.eq.s32.totalorder %s16, 1
    %p55 = por %p53, %p54
    %p56 = scmp.ne.s32.totalorder %s47, %s48
    %p57 = scmp.eq.s32.totalorder %s16, 0
    %p58 = por %p56, %p57
    %p59 = scmp.ne.s32.totalorder %s47, %s48
    %p60 = scmp.eq.s32.totalorder %s17, 1
    %p61 = por %p59, %p60
    %p63 = scmp.ne.s32.totalorder %s48, %s62
    %p64 = scmp.eq.s32.totalorder %s17, 0
    %p65 = por %p63, %p64
    %s67 = sadd.s32 %s66, 1
    %p70 = scmp.eq.s32.totalorder %s11, 1
    %p71 = scmp.ne.s32.totalorder %s66, %s68
    %p72 = scmp.eq.s32.totalorder %s11, 0
    %p73 = por %p71, %p72
    %p74 = scmp.ne.s32.totalorder %s66, %s68
    %p75 = scmp.eq.s32.totalorder %s16, 1
    %p76 = por %p74, %p75
    %p77 = scmp.ne.s32.totalorder %s68, %s69
    %p78 = scmp.eq.s32.totalorder %s16, 0
    %p79 = por %p77, %p78
    %p80 = scmp.ne.s32.totalorder %s68, %s69
    %p81 = scmp.eq.s32.totalorder %s17, 1
    %p82 = por %p80, %p81
    %p84 = scmp.ne.s32.totalorder %s69, %s83
    %p85 = scmp.eq.s32.totalorder %s17, 0
    %p86 = por %p84, %p85
    %s88 = sadd.s32 %s87, 1
    %p91 = scmp.eq.s32.totalorder %s11, 1
    %p92 = scmp.ne.s32.totalorder %s87, %s89
    %p93 = scmp.eq.s32.totalorder %s11, 0
    %p94 = por %p92, %p93
    %p95 = scmp.ne.s32.totalorder %s87, %s89
    %p96 = scmp.eq.s32.totalorder %s16, 1
    %p97 = por %p95, %p96
    %p98 = scmp.ne.s32.totalorder %s89, %s90
    %p99 = scmp.eq.s32.totalorder %s16, 0
    %p100 = por %p98, %p99
    %p101 = scmp.ne.s32.totalorder %s89, %s90
    %p102 = scmp.eq.s32.totalorder %s17, 1
    %p103 = por %p101, %p102
    %p105 = scmp.ne.s32.totalorder %s90, %s104
    %p106 = scmp.eq.s32.totalorder %s17, 0
    %p107 = por %p105, %p106
    %s109 = sadd.s32 %s108, 1
    %p112 = scmp.eq.s32.totalorder %s11, 1
    %p113 = scmp.ne.s32.totalorder %s108, %s110
    %p114 = scmp.eq.s32.totalorder %s11, 0
    %p115 = por %p113, %p114
    %p116 = scmp.ne.s32.totalorder %s108, %s110
    %p117 = scmp.eq.s32.totalorder %s16, 1
    %p118 = por %p116, %p117
    %p119 = scmp.ne.s32.totalorder %s110, %s111
    %p120 = scmp.eq.s32.totalorder %s16, 0
    %p121 = por %p119, %p120
    %p122 = scmp.ne.s32.totalorder %s110, %s111
    %p123 = scmp.eq.s32.totalorder %s17, 1
    %p124 = por %p122, %p123
    %p126 = scmp.ne.s32.totalorder %s111, %s125
    %p127 = scmp.eq.s32.totalorder %s17, 0
    %p128 = por %p126, %p127
    %s129 = ssub.s32 %s11, %s18
    %p130 = scmp.eq.s32.totalorder %s129, 0
    %s132 = sadd.s32 %s131, 1
    %s133 = scalar_select %p130, %s131, %s132
    %p136 = pneg %p130
    %p137 = scmp.eq.s32.totalorder %s11, 1
    %p138 = por %p136, %p137
    %p139 = scmp.ne.s32.totalorder %s131, %s134
    %p140 = scmp.eq.s32.totalorder %s11, 0
    %p141 = por %p139, %p140
    %p142 = scmp.ne.s32.totalorder %s131, %s134
    %p143 = scmp.eq.s32.totalorder %s16, 1
    %p144 = por %p142, %p143
    %p145 = scmp.ne.s32.totalorder %s134, %s135
    %p146 = scmp.eq.s32.totalorder %s16, 0
    %p147 = por %p145, %p146
    %p148 = scmp.ne.s32.totalorder %s134, %s135
    %p149 = scmp.eq.s32.totalorder %s17, 1
    %p150 = por %p148, %p149
    %p152 = scmp.ne.s32.totalorder %s135, %s151
    %p153 = scmp.eq.s32.totalorder %s17, 0
    %p154 = por %p152, %p153
    %p155 = scmp.le.s32.totalorder 1, %s11
    %p156 = scmp.lt.s32.totalorder %s11, 3
    %p157 = pnand %p155, %p156
    %p158 = pneg %p157
    // Predicated region
    $region9: #{tsd_b_forward.5} parent=5 // pred_check
      _
    $region10: #{tsd_b_forward.5} parent=5 // pred_check_branch
      %160 = sbr.rel (%p157) target = $region12
    $region11: #{tsd_b_forward.5} parent=5 // pred_region
      %s161 = ssub.s32 %s11, 1
      // Predicated region
      $region13: #{tsd_b_forward.5} parent=11 // pred_check
        %p162 = pneg %p58
      $region14: #{tsd_b_forward.5} parent=11 // pred_check_branch
        %164 = sbr.rel (%p162) target = $region16
      $region15: #{tsd_b_forward.5} parent=11 // pred_region
        _
      $region16: #{tsd_b_forward.5} parent=11 // pred_fallthru
        _
      // Predicated region
      $region17: #{tsd_b_forward.5} parent=11 // pred_check
        %p165 = pneg %p79
      $region18: #{tsd_b_forward.5} parent=11 // pred_check_branch
        %167 = sbr.rel (%p165) target = $region20
      $region19: #{tsd_b_forward.5} parent=11 // pred_region
        _
      $region20: #{tsd_b_forward.5} parent=11 // pred_fallthru
        _
      // Predicated region
      $region21: #{tsd_b_forward.5} parent=11 // pred_check
        %p168 = pneg %p100
      $region22: #{tsd_b_forward.5} parent=11 // pred_check_branch
        %170 = sbr.rel (%p168) target = $region24
      $region23: #{tsd_b_forward.5} parent=11 // pred_region
        _
      $region24: #{tsd_b_forward.5} parent=11 // pred_fallthru
        _
      // Predicated region
      $region25: #{tsd_b_forward.5} parent=11 // pred_check
        %p171 = pneg %p121
      $region26: #{tsd_b_forward.5} parent=11 // pred_check_branch
        %173 = sbr.rel (%p171) target = $region28
      $region27: #{tsd_b_forward.5} parent=11 // pred_region
        _
      $region28: #{tsd_b_forward.5} parent=11 // pred_fallthru
        _
    $region12: #{tsd_b_forward.5} parent=5 // pred_fallthru
      _
    %p174 = scmp.lt.s32.totalorder %s11, 2
    // Predicated region
    $region29: #{tsd_b_forward.5} parent=5 // pred_check
      %p175 = pneg %p174
    $region30: #{tsd_b_forward.5} parent=5 // pred_check_branch
      %177 = sbr.rel (%p175) target = $region32
    $region31: #{tsd_b_forward.5} parent=5 // pred_region
      // Predicated region
      $region33: #{tsd_b_forward.5} parent=31 // pred_check
        %p178 = pneg %p31
      $region34: #{tsd_b_forward.5} parent=31 // pred_check_branch
        %180 = sbr.rel (%p178) target = $region36
      $region35: #{tsd_b_forward.5} parent=31 // pred_region
        %s181 = smul.u32 8, %s11
        %p182 = scmp.lt.s32.totalorder %s181, 15
        %s183 = scalar_select %p182, %s181, 15
        %s184 = smul.addr %s183, 4
        %s185 = scalar_lea.vmem %s0, %s184
        %s186 = smul.u32 8, %s11
      $region36: #{tsd_b_forward.5} parent=31 // pred_fallthru
        _
    $region32: #{tsd_b_forward.5} parent=5 // pred_fallthru
      _
    %p187 = scmp.le.s32.totalorder 1, %s11
    %p188 = scmp.lt.s32.totalorder %s11, 3
    %p189 = pnand %p187, %p188
    %p190 = pneg %p189
    // Predicated region
    $region37: #{tsd_b_forward.5} parent=5 // pred_check
      _
    $region38: #{tsd_b_forward.5} parent=5 // pred_check_branch
      %192 = sbr.rel (%p189) target = $region40
    $region39: #{tsd_b_forward.5} parent=5 // pred_region
      %s193 = ssub.s32 %s11, 1
      %s194 = smul.u32 8, %s16
      %p195 = scmp.lt.s32.totalorder %s194, 15
      %s196 = scalar_select %p195, %s194, 15
      %s197 = smul.addr %s196, 4
      %s198 = scalar_lea.vmem %s0, %s197
      %p199 = pneg %p37
      %p200 = pneg %p34
      %p201 = pneg %p58
      %p202 = pneg %p55
      %p203 = pneg %p79
      %p204 = pneg %p76
      %p205 = pneg %p100
      %p206 = pneg %p97
      %p207 = pneg %p121
      %p208 = pneg %p118
      %p209 = pneg %p147
      %p210 = pneg %p144
      %s211 = smul.u32 8, %s16
      %p212 = scmp.lt.s32.totalorder %s211, 15
      %s213 = scalar_select %p212, %s211, 15
      %s214 = smul.addr %s213, 8
      %s215 = scalar_lea.vmem %s5, %s214
      %s216 = smul.u32 8, %s16
      %p217 = scmp.lt.s32.totalorder %s216, 15
      %s218 = scalar_select %p217, %s216, 15
      %s219 = smul.addr %s218, 4
      %s220 = scalar_lea.vmem %s0, %s219
      %s221 = smul.u32 8, %s16
      %s222 = smul.u32 8, %s16
      %p223 = scmp.lt.s32.totalorder %s222, 15
      %s224 = scalar_select %p223, %s222, 15
      %s225 = smul.addr %s224, 8
      %s226 = scalar_lea.vmem %s5, %s225
      %s227 = smul.u32 8, %s16
      %v229 = vld [vmem:[%s220] sm:$0xf]
      %v230 = vld [vmem:[%s220 + $0x4] sm:$0xf]
      %v231 = vld [vmem:[%s220 + $0x8] sm:$0xf]
      %v232 = vld [vmem:[%s220 + $0xc] sm:$0xf]
      %v233 = vld [vmem:[%s220 + $0x10] sm:$0xf]
      %v234 = vld [vmem:[%s220 + $0x14] sm:$0xf]
      %v235 = vld [vmem:[%s220 + $0x18] sm:$0xf]
      %v236 = vld [vmem:[%s220 + $0x1c] sm:$0xf]
      %v237 = vld [vmem:[%s1] sm:$0xf]
      %v238 = vld [vmem:[%s1 + $0x4] sm:$0xf]
      %v239 = vld [vmem:[%s1 + $0x8] sm:$0xf]
      %v240 = vld [vmem:[%s1 + $0xc] sm:$0xf]
      %v241 = vld [vmem:[%s1 + $0x10] sm:$0x3]
      %v242 = vld [vmem:[%s2] sm:$0x1]
      %v244 = vlaneseq
      %v245 = vshrl.u32 %v244, 7
      %v246 = vsub.s32 0, %v245
      %v247 = vrot.slane %v242, %v246
      %v257 = vunpack.c.l.b16 %v229
      %v258 = vunpack.c.l.b16 %v230
      %v259 = vunpack.c.l.b16 %v231
      %v260 = vunpack.c.l.b16 %v232
      %v261 = vunpack.c.l.b16 %v233
      %v262 = vunpack.c.l.b16 %v234
      %v263 = vunpack.c.l.b16 %v235
      %v264 = vunpack.c.l.b16 %v236
      %v265 = vpack.c.b16 %v258, %v257
      %v266 = vpack.c.b16 %v260, %v259
      %v267 = vpack.c.b16 %v262, %v261
      %v268 = vpack.c.b16 %v264, %v263
      %v274 = vunpack.c.l.b16 %v237
      %v275 = vunpack.c.l.b16 %v238
      %v276 = vunpack.c.l.b16 %v239
      %v277 = vunpack.c.l.b16 %v240
      %v278 = vunpack.c.l.b16 %v241
      %v279 = vpack.c.b16 %v275, %v274
      %v280 = vpack.c.b16 %v277, %v276
      %v281 = vpack.c.b16 %v278, %v278
      %vm284 = vcmask 293888
      %v286 = vsel %vm284, %v265, 0
      %v289 = vsel %vm284, %v266, 0
      %v292 = vsel %vm284, %v267, 0
      %v295 = vsel %vm284, %v268, 0
      %vm297 = vcmask 1041408
      %v299 = vsel %vm297, %v281, 0
      %301 = vmatprep.subr.bf16.mxu0 0
      %302 = vmatpush1.bf16.msra.mxu0 %v279
      %303 = vmatprep.subr.bf16.mxu0 0
      %304 = vmatpush1.bf16.msra.mxu0 %v280
      %305 = vmatprep.subr.bf16.mxu0 0
      %306 = vmatpush1.bf16.msra.mxu0 %v299
      %307 = vmatprep.subr.bf16.mxu0 0
      %308 = vmatpush1.bf16.msra.mxu0 0
      %309 = vmatprep.subr.bf16.mxu0 0
      %310 = vmatpush1.bf16.msra.mxu0 0
      %311 = vmatprep.subr.bf16.mxu0 0
      %312 = vmatpush1.bf16.msra.mxu0 0
      %313 = vmatprep.subr.bf16.mxu0 0
      %314 = vmatpush1.bf16.msra.mxu0 0
      %315 = vmatprep.subr.bf16.mxu0 0
      %316 = vmatpush1.bf16.msra.mxu0 0
      %317 = vmatprep.subr.bf16.mxu0 0
      %318 = vmatpush1.bf16.msra.mxu0 0
      %319 = vmatprep.subr.bf16.mxu0 0
      %320 = vmatpush1.bf16.msra.mxu0 0
      %321 = vmatprep.subr.bf16.mxu0 0
      %322 = vmatpush1.bf16.msra.mxu0 0
      %323 = vmatprep.subr.bf16.mxu0 0
      %324 = vmatpush1.bf16.msra.mxu0 0
      %325 = vmatprep.subr.bf16.mxu0 0
      %326 = vmatpush1.bf16.msra.mxu0 0
      %327 = vmatprep.subr.bf16.mxu0 0
      %328 = vmatpush1.bf16.msra.mxu0 0
      %329 = vmatprep.subr.bf16.mxu0 0
      %330 = vmatpush1.bf16.msra.mxu0 0
      %331 = vmatprep.subr.bf16.mxu0 0
      %332 = vmatpush1.bf16.msra.mxu0 0
      %333 = vmatprep.mubr.bf16.mxu0 0
      %334 = vmatmul.mubr.bf16.gmra.mrb[0].mxu0 %v286
      %v335 = vpop.f32.mrb[0].mxu0
      %v336 = vadd.f32 %v247, %v335
      %v337 = vpop.f32.mrb[0].mxu0
      %v338 = vpop.f32.mrb[0].mxu0
      %v339 = vadd.f32 %v247, %v338
      %v340 = vpop.f32.mrb[0].mxu0
      %341 = vmatprep.mubr.bf16.mxu0 0
      %342 = vmatmul.mubr.bf16.gmra.mrb[0].mxu0 %v289
      %v343 = vpop.f32.mrb[0].mxu0
      %v344 = vadd.f32 %v247, %v343
      %v345 = vpop.f32.mrb[0].mxu0
      %v346 = vpop.f32.mrb[0].mxu0
      %v347 = vadd.f32 %v247, %v346
      %v348 = vpop.f32.mrb[0].mxu0
      %349 = vmatprep.mubr.bf16.mxu0 0
      %350 = vmatmul.mubr.bf16.gmra.mrb[0].mxu0 %v292
      %v351 = vpop.f32.mrb[0].mxu0
      %v352 = vadd.f32 %v247, %v351
      %v353 = vpop.f32.mrb[0].mxu0
      %v354 = vpop.f32.mrb[0].mxu0
      %v355 = vadd.f32 %v247, %v354
      %v356 = vpop.f32.mrb[0].mxu0
      %357 = vmatprep.mubr.bf16.mxu0 0
      %358 = vmatmul.mubr.bf16.gmra.mrb[0].mxu0 %v295
      %v359 = vpop.f32.mrb[0].mxu0
      %v360 = vadd.f32 %v247, %v359
      %v361 = vpop.f32.mrb[0].mxu0
      %v362 = vpop.f32.mrb[0].mxu0
      %v363 = vadd.f32 %v247, %v362
      %v364 = vpop.f32.mrb[0].mxu0
      %365 = vdwg.mxu0
      %v366 = vld [vmem:[%s3] sm:$0x1]
      %v367 = vld [vmem:[%s4] sm:$0x1]
      %vm368 = vcmask 261120
      %v369 = vsel %vm368, %v336, 0.0
      %370 = vadd.xlane.f32.xlu0 %v369
      %v371 = vpop.xlane.xlu0 %370
      %v372 = vsel %vm368, %v339, 0.0
      %373 = vadd.xlane.f32.xlu0 %v372
      %v374 = vpop.xlane.xlu0 %373
      %v375 = vsel %vm368, %v344, 0.0
      %376 = vadd.xlane.f32.xlu0 %v375
      %v377 = vpop.xlane.xlu0 %376
      %v378 = vsel %vm368, %v347, 0.0
      %379 = vadd.xlane.f32.xlu0 %v378
      %v380 = vpop.xlane.xlu0 %379
      %v381 = vsel %vm368, %v352, 0.0
      %382 = vadd.xlane.f32.xlu0 %v381
      %v383 = vpop.xlane.xlu0 %382
      %v384 = vsel %vm368, %v355, 0.0
      %385 = vadd.xlane.f32.xlu0 %v384
      %v386 = vpop.xlane.xlu0 %385
      %v387 = vsel %vm368, %v360, 0.0
      %388 = vadd.xlane.f32.xlu0 %v387
      %v389 = vpop.xlane.xlu0 %388
      %v390 = vsel %vm368, %v363, 0.0
      %391 = vadd.xlane.f32.xlu0 %v390
      %v392 = vpop.xlane.xlu0 %391
      %v393 = vrcp.pop 32.0
      %v394 = vmul.f32 %v371, %v393
      %v395 = vmul.f32 %v374, %v393
      %v396 = vmul.f32 %v377, %v393
      %v397 = vmul.f32 %v380, %v393
      %v398 = vmul.f32 %v383, %v393
      %v399 = vmul.f32 %v386, %v393
      %v400 = vmul.f32 %v389, %v393
      %v401 = vmul.f32 %v392, %v393
      %v402 = vsub.f32 %v336, %v394
      %v403 = vsub.f32 %v339, %v395
      %v404 = vsub.f32 %v344, %v396
      %v405 = vsub.f32 %v347, %v397
      %v406 = vsub.f32 %v352, %v398
      %v407 = vsub.f32 %v355, %v399
      %v408 = vsub.f32 %v360, %v400
      %v409 = vsub.f32 %v363, %v401
      %v410 = vmul.f32 %v402, %v402
      %v411 = vmul.f32 %v403, %v403
      %v412 = vmul.f32 %v404, %v404
      %v413 = vmul.f32 %v405, %v405
      %v414 = vmul.f32 %v406, %v406
      %v415 = vmul.f32 %v407, %v407
      %v416 = vmul.f32 %v408, %v408
      %v417 = vmul.f32 %v409, %v409
      %v418 = vsel %vm368, %v410, 0.0
      %419 = vadd.xlane.f32.xlu0 %v418
      %v420 = vpop.xlane.xlu0 %419
      %v421 = vsel %vm368, %v411, 0.0
      %422 = vadd.xlane.f32.xlu0 %v421
      %v423 = vpop.xlane.xlu0 %422
      %v424 = vsel %vm368, %v412, 0.0
      %425 = vadd.xlane.f32.xlu0 %v424
      %v426 = vpop.xlane.xlu0 %425
      %v427 = vsel %vm368, %v413, 0.0
      %428 = vadd.xlane.f32.xlu0 %v427
      %v429 = vpop.xlane.xlu0 %428
      %v430 = vsel %vm368, %v414, 0.0
      %431 = vadd.xlane.f32.xlu0 %v430
      %v432 = vpop.xlane.xlu0 %431
      %v433 = vsel %vm368, %v415, 0.0
      %434 = vadd.xlane.f32.xlu0 %v433
      %v435 = vpop.xlane.xlu0 %434
      %v436 = vsel %vm368, %v416, 0.0
      %437 = vadd.xlane.f32.xlu0 %v436
      %v438 = vpop.xlane.xlu0 %437
      %v439 = vsel %vm368, %v417, 0.0
      %440 = vadd.xlane.f32.xlu0 %v439
      %v441 = vpop.xlane.xlu0 %440
      %v442 = vmul.f32 %v420, %v393
      %v443 = vmul.f32 %v423, %v393
      %v444 = vmul.f32 %v426, %v393
      %v445 = vmul.f32 %v429, %v393
      %v446 = vmul.f32 %v432, %v393
      %v447 = vmul.f32 %v435, %v393
      %v448 = vmul.f32 %v438, %v393
      %v449 = vmul.f32 %v441, %v393
      %v450 = vadd.f32 %v442, 1e-05
      %v451 = vadd.f32 %v443, 1e-05
      %v452 = vadd.f32 %v444, 1e-05
      %v453 = vadd.f32 %v445, 1e-05
      %v454 = vadd.f32 %v446, 1e-05
      %v455 = vadd.f32 %v447, 1e-05
      %v456 = vadd.f32 %v448, 1e-05
      %v457 = vadd.f32 %v449, 1e-05
      %v458 = vrsqrt.pop %v450
      %v459 = vrsqrt.pop %v451
      %v460 = vrsqrt.pop %v452
      %v461 = vrsqrt.pop %v453
      %v462 = vrsqrt.pop %v454
      %v463 = vrsqrt.pop %v455
      %v464 = vrsqrt.pop %v456
      %v465 = vrsqrt.pop %v457
      %v466 = vmul.f32 %v402, %v458
      %v467 = vmul.f32 %v403, %v459
      %v468 = vmul.f32 %v404, %v460
      %v469 = vmul.f32 %v405, %v461
      %v470 = vmul.f32 %v406, %v462
      %v471 = vmul.f32 %v407, %v463
      %v472 = vmul.f32 %v408, %v464
      %v473 = vmul.f32 %v409, %v465
      %v475 = vlaneseq
      %v476 = vshrl.u32 %v475, 7
      %v477 = vsub.s32 0, %v476
      %v478 = vrot.slane %v366, %v477
      %v480 = vmul.f32 %v466, %v478
      %v481 = vmul.f32 %v467, %v478
      %v482 = vmul.f32 %v468, %v478
      %v483 = vmul.f32 %v469, %v478
      %v484 = vmul.f32 %v470, %v478
      %v485 = vmul.f32 %v471, %v478
      %v486 = vmul.f32 %v472, %v478
      %v487 = vmul.f32 %v473, %v478
      %v489 = vlaneseq
      %v490 = vshrl.u32 %v489, 7
      %v491 = vsub.s32 0, %v490
      %v492 = vrot.slane %v367, %v491
      %v494 = vadd.f32 %v480, %v492
      %v495 = vadd.f32 %v481, %v492
      %v496 = vadd.f32 %v482, %v492
      %v497 = vadd.f32 %v483, %v492
      %v498 = vadd.f32 %v484, %v492
      %v499 = vadd.f32 %v485, %v492
      %v500 = vadd.f32 %v486, %v492
      %v501 = vadd.f32 %v487, %v492
      %502 = vst.msk [vmem:[%s226] sm:$0xff] %vm368, %v494
      %503 = vst.msk [vmem:[%s226 + $0x8] sm:$0xff] %vm368, %v495
      %504 = vst.msk [vmem:[%s226 + $0x10] sm:$0xff] %vm368, %v496
      %505 = vst.msk [vmem:[%s226 + $0x18] sm:$0xff] %vm368, %v497
      %506 = vst.msk [vmem:[%s226 + $0x20] sm:$0xff] %vm368, %v498
      %507 = vst.msk [vmem:[%s226 + $0x28] sm:$0xff] %vm368, %v499
      %508 = vst.msk [vmem:[%s226 + $0x30] sm:$0xff] %vm368, %v500
      %509 = vst.msk [vmem:[%s226 + $0x38] sm:$0xff] %vm368, %v501
      %s510 = smul.u32 8, %s16
      %p511 = scmp.lt.s32.totalorder %s510, 15
      %s512 = scalar_select %p511, %s510, 15
      %s513 = smul.addr %s512, 8
      %s514 = scalar_lea.vmem %s5, %s513
      // Predicated region
      $region41: #{tsd_b_forward.5} parent=39 // pred_check
        %p515 = pneg %p144
      $region42: #{tsd_b_forward.5} parent=39 // pred_check_branch
        %517 = sbr.rel (%p515) target = $region44
      $region43: #{tsd_b_forward.5} parent=39 // pred_region
        %s518 = smul.u32 8, %s16
      $region44: #{tsd_b_forward.5} parent=39 // pred_fallthru
        _
    $region40: #{tsd_b_forward.5} parent=5 // pred_fallthru
      _
    %p519 = scmp.le.s32.totalorder 2, %s11
    // Predicated region
    $region45: #{tsd_b_forward.5} parent=5 // pred_check
      %p520 = pneg %p519
    $region46: #{tsd_b_forward.5} parent=5 // pred_check_branch
      %522 = sbr.rel (%p520) target = $region48
    $region47: #{tsd_b_forward.5} parent=5 // pred_region
      %s523 = ssub.s32 %s11, 2
      // Predicated region
      $region49: #{tsd_b_forward.5} parent=47 // pred_check
        %p524 = pneg %p150
      $region50: #{tsd_b_forward.5} parent=47 // pred_check_branch
        %526 = sbr.rel (%p524) target = $region52
      $region51: #{tsd_b_forward.5} parent=47 // pred_region
        %s527 = smul.u32 8, %s17
        %p528 = scmp.lt.s32.totalorder %s527, 15
        %s529 = scalar_select %p528, %s527, 15
        %s530 = smul.addr %s529, 8
        %s531 = scalar_lea.vmem %s5, %s530
      $region52: #{tsd_b_forward.5} parent=47 // pred_fallthru
        _
    $region48: #{tsd_b_forward.5} parent=5 // pred_fallthru
      _
  $region6: #{tsd_b_forward.5} parent=0 // loop_footer
    %s15 = sadd.s32 1, %s11
  $region7: #{tsd_b_forward.5} parent=0 // loop_footer_branch
    %10 = sbr.rel target = $region3
  $region8: #{tsd_b_forward.5} parent=0 // loop_exit
    _

// kernel: tsd_b_forward.6
$region0: #{tsd_b_forward.6}
  #allocation0 [shape = 'u32[]', space=smem, size = 0x4, offset = 0x4, fixed_abs, tag = 'smem constant byte address 0x4 - core index']
  #allocation1 [shape = 'u32[144,128]{1,0:T(1,128)}', space=vmem, size = 0x12000, scoped, tag = 'internal scratch']
  #allocation2 [shape = 'bf16[64,32]{1,0:T(16,128)(2,1)}', space=vmem, size = 0x4000, scoped, tag = 'scratch operand']
  #allocation3 [shape = 'f32[64,32]{1,0:T(8,128)}', space=vmem, size = 0x8000, scoped, tag = 'scratch operand']
  %s0 = inlined_call_operand.vmem [shape: f32[128,32], index: 0, kind: input, shape index: {}, may-alias: {0,11}]
  %s1 = inlined_call_operand.vmem [shape: f32[1,32], index: 1, kind: input, shape index: {}]
  %s2 = inlined_call_operand.vmem [shape: f32[1,32], index: 2, kind: input, shape index: {}]
  %s3 = inlined_call_operand.vmem [shape: bf16[4,32,8], index: 3, kind: input, shape index: {}]
  %s4 = inlined_call_operand.vmem [shape: f32[4,1,8], index: 4, kind: input, shape index: {}]
  %s5 = inlined_call_operand.vmem [shape: bf16[4,32,8], index: 5, kind: input, shape index: {}]
  %s6 = inlined_call_operand.vmem [shape: f32[4,1,8], index: 6, kind: input, shape index: {}]
  %s7 = inlined_call_operand.vmem [shape: bf16[4,32,8], index: 7, kind: input, shape index: {}]
  %s8 = inlined_call_operand.vmem [shape: f32[4,1,8], index: 8, kind: input, shape index: {}]
  %s9 = inlined_call_operand.vmem [shape: bf16[4,8,32], index: 9, kind: input, shape index: {}]
  %s10 = inlined_call_operand.vmem [shape: f32[1,32], index: 10, kind: input, shape index: {}]
  %s11 = inlined_call_operand.vmem [shape: f32[128,32], index: 11, kind: output, shape index: {}, may-alias: {0,11}]
  %s12 = sld [smem:[#allocation0]]
  $region85: #{tsd_b_forward.6} parent=0
    _
  %s14 = ssub.s32 1, %s12
  %s15 = scalar_select 0, %s14, %s12
  loop: start=0, step=1, limit=10
  $region2: #{tsd_b_forward.6} parent=0 // loop_pre_header
    _
  $region3: #{tsd_b_forward.6} parent=0 // loop_header
    %s17 = sphi 0, %s21
    %p18 = scmp.ge.s32.totalorder %s17, 10
    %s24 = sphi 0, %s36
    %s25 = sphi 0, %s32
    %s26 = sphi 0, %s24
    %s27 = sphi 0, %s25
    %s28 = sphi 0, %s26
    %s29 = sphi 0, %s27
    %s39 = sphi 0, %s41
    %s42 = sphi 0, %s39
    %s43 = sphi 0, %s42
    %s59 = sphi 0, %s43
    %s63 = sphi 0, %s63
    %s65 = sphi 0, %s63
    %s66 = sphi 0, %s65
    %s80 = sphi 0, %s66
    %s84 = sphi 0, %s84
    %s86 = sphi 0, %s84
    %s87 = sphi 0, %s86
    %s101 = sphi 0, %s87
    %s107 = sphi 0, %s109
    %s110 = sphi 0, %s107
    %s111 = sphi 0, %s110
    %s127 = sphi 0, %s111
    %s133 = sphi 0, %s135
    %s136 = sphi 0, %s133
    %s137 = sphi 0, %s136
    %s153 = sphi 0, %s137
    %s159 = sphi 0, %s161
    %s162 = sphi 0, %s159
    %s163 = sphi 0, %s162
    %s179 = sphi 0, %s163
    %s185 = sphi 0, %s187
    %s188 = sphi 0, %s185
    %s189 = sphi 0, %s188
    %s205 = sphi 0, %s189
    %s211 = sphi 0, %s213
    %s214 = sphi 0, %s211
    %s215 = sphi 0, %s214
    %s231 = sphi 0, %s215
    %s237 = sphi 0, %s239
    %s240 = sphi 0, %s237
    %s241 = sphi 0, %s240
    %s257 = sphi 0, %s241
    %s263 = sphi 0, %s265
    %s266 = sphi 0, %s263
    %s267 = sphi 0, %s266
    %s283 = sphi 0, %s267
    %s287 = sphi 0, %s287
    %s289 = sphi 0, %s287
    %s290 = sphi 0, %s289
    %s304 = sphi 0, %s290
    %s310 = sphi 0, %s312
    %s313 = sphi 0, %s310
    %s314 = sphi 0, %s313
    %s330 = sphi 0, %s314
  $region4: #{tsd_b_forward.6} parent=0 // loop_header_branch
    %20 = sbr.rel (%p18) target = $region8
  $region5: #{tsd_b_forward.6} parent=0 // loop_body
    %s22 = ssub.s32 %s17, 1
    %s23 = ssub.s32 %s17, 2
    %s30 = sadd.s32 1, %s25
    %p31 = scmp.ge.s32.totalorder %s30, 4
    %s32 = scalar_select %p31, 0, %s30
    %s33 = sadd.s32 1, %s24
    %s34 = scalar_select %p31, %s33, %s24
    %p35 = scmp.ge.s32.totalorder %s34, 2
    %s36 = scalar_select %p35, 0, %s34
    %s37 = ssub.s32 %s24, %s36
    %p38 = scmp.eq.s32.totalorder %s37, 0
    %s40 = sadd.s32 %s39, 1
    %s41 = scalar_select %p38, %s39, %s40
    %p44 = pneg %p38
    %p45 = scmp.eq.s32.totalorder %s17, 7
    %p46 = por %p44, %p45
    %p47 = scmp.ne.s32.totalorder %s39, %s42
    %p48 = scmp.eq.s32.totalorder %s17, 0
    %p49 = por %p47, %p48
    %p50 = scmp.ne.s32.totalorder %s39, %s42
    %p51 = scmp.eq.s32.totalorder %s22, 7
    %p52 = por %p50, %p51
    %p53 = scmp.ne.s32.totalorder %s42, %s43
    %p54 = scmp.eq.s32.totalorder %s22, 0
    %p55 = por %p53, %p54
    %p56 = scmp.ne.s32.totalorder %s42, %s43
    %p57 = scmp.eq.s32.totalorder %s23, 7
    %p58 = por %p56, %p57
    %p60 = scmp.ne.s32.totalorder %s43, %s59
    %p61 = scmp.eq.s32.totalorder %s23, 0
    %p62 = por %p60, %p61
    %s64 = sadd.s32 %s63, 1
    %p67 = scmp.eq.s32.totalorder %s17, 7
    %p68 = scmp.ne.s32.totalorder %s63, %s65
    %p69 = scmp.eq.s32.totalorder %s17, 0
    %p70 = por %p68, %p69
    %p71 = scmp.ne.s32.totalorder %s63, %s65
    %p72 = scmp.eq.s32.totalorder %s22, 7
    %p73 = por %p71, %p72
    %p74 = scmp.ne.s32.totalorder %s65, %s66
    %p75 = scmp.eq.s32.totalorder %s22, 0
    %p76 = por %p74, %p75
    %p77 = scmp.ne.s32.totalorder %s65, %s66
    %p78 = scmp.eq.s32.totalorder %s23, 7
    %p79 = por %p77, %p78
    %p81 = scmp.ne.s32.totalorder %s66, %s80
    %p82 = scmp.eq.s32.totalorder %s23, 0
    %p83 = por %p81, %p82
    %s85 = sadd.s32 %s84, 1
    %p88 = scmp.eq.s32.totalorder %s17, 7
    %p89 = scmp.ne.s32.totalorder %s84, %s86
    %p90 = scmp.eq.s32.totalorder %s17, 0
    %p91 = por %p89, %p90
    %p92 = scmp.ne.s32.totalorder %s84, %s86
    %p93 = scmp.eq.s32.totalorder %s22, 7
    %p94 = por %p92, %p93
    %p95 = scmp.ne.s32.totalorder %s86, %s87
    %p96 = scmp.eq.s32.totalorder %s22, 0
    %p97 = por %p95, %p96
    %p98 = scmp.ne.s32.totalorder %s86, %s87
    %p99 = scmp.eq.s32.totalorder %s23, 7
    %p100 = por %p98, %p99
    %p102 = scmp.ne.s32.totalorder %s87, %s101
    %p103 = scmp.eq.s32.totalorder %s23, 0
    %p104 = por %p102, %p103
    %s105 = ssub.s32 %s25, %s32
    %p106 = scmp.eq.s32.totalorder %s105, 0
    %s108 = sadd.s32 %s107, 1
    %s109 = scalar_select %p106, %s107, %s108
    %p112 = pneg %p106
    %p113 = scmp.eq.s32.totalorder %s17, 7
    %p114 = por %p112, %p113
    %p115 = scmp.ne.s32.totalorder %s107, %s110
    %p116 = scmp.eq.s32.totalorder %s17, 0
    %p117 = por %p115, %p116
    %p118 = scmp.ne.s32.totalorder %s107, %s110
    %p119 = scmp.eq.s32.totalorder %s22, 7
    %p120 = por %p118, %p119
    %p121 = scmp.ne.s32.totalorder %s110, %s111
    %p122 = scmp.eq.s32.totalorder %s22, 0
    %p123 = por %p121, %p122
    %p124 = scmp.ne.s32.totalorder %s110, %s111
    %p125 = scmp.eq.s32.totalorder %s23, 7
    %p126 = por %p124, %p125
    %p128 = scmp.ne.s32.totalorder %s111, %s127
    %p129 = scmp.eq.s32.totalorder %s23, 0
    %p130 = por %p128, %p129
    %s131 = ssub.s32 %s25, %s32
    %p132 = scmp.eq.s32.totalorder %s131, 0
    %s134 = sadd.s32 %s133, 1
    %s135 = scalar_select %p132, %s133, %s134
    %p138 = pneg %p132
    %p139 = scmp.eq.s32.totalorder %s17, 7
    %p140 = por %p138, %p139
    %p141 = scmp.ne.s32.totalorder %s133, %s136
    %p142 = scmp.eq.s32.totalorder %s17, 0
    %p143 = por %p141, %p142
    %p144 = scmp.ne.s32.totalorder %s133, %s136
    %p145 = scmp.eq.s32.totalorder %s22, 7
    %p146 = por %p144, %p145
    %p147 = scmp.ne.s32.totalorder %s136, %s137
    %p148 = scmp.eq.s32.totalorder %s22, 0
    %p149 = por %p147, %p148
    %p150 = scmp.ne.s32.totalorder %s136, %s137
    %p151 = scmp.eq.s32.totalorder %s23, 7
    %p152 = por %p150, %p151
    %p154 = scmp.ne.s32.totalorder %s137, %s153
    %p155 = scmp.eq.s32.totalorder %s23, 0
    %p156 = por %p154, %p155
    %s157 = ssub.s32 %s25, %s32
    %p158 = scmp.eq.s32.totalorder %s157, 0
    %s160 = sadd.s32 %s159, 1
    %s161 = scalar_select %p158, %s159, %s160
    %p164 = pneg %p158
    %p165 = scmp.eq.s32.totalorder %s17, 7
    %p166 = por %p164, %p165
    %p167 = scmp.ne.s32.totalorder %s159, %s162
    %p168 = scmp.eq.s32.totalorder %s17, 0
    %p169 = por %p167, %p168
    %p170 = scmp.ne.s32.totalorder %s159, %s162
    %p171 = scmp.eq.s32.totalorder %s22, 7
    %p172 = por %p170, %p171
    %p173 = scmp.ne.s32.totalorder %s162, %s163
    %p174 = scmp.eq.s32.totalorder %s22, 0
    %p175 = por %p173, %p174
    %p176 = scmp.ne.s32.totalorder %s162, %s163
    %p177 = scmp.eq.s32.totalorder %s23, 7
    %p178 = por %p176, %p177
    %p180 = scmp.ne.s32.totalorder %s163, %s179
    %p181 = scmp.eq.s32.totalorder %s23, 0
    %p182 = por %p180, %p181
    %s183 = ssub.s32 %s25, %s32
    %p184 = scmp.eq.s32.totalorder %s183, 0
    %s186 = sadd.s32 %s185, 1
    %s187 = scalar_select %p184, %s185, %s186
    %p190 = pneg %p184
    %p191 = scmp.eq.s32.totalorder %s17, 7
    %p192 = por %p190, %p191
    %p193 = scmp.ne.s32.totalorder %s185, %s188
    %p194 = scmp.eq.s32.totalorder %s17, 0
    %p195 = por %p193, %p194
    %p196 = scmp.ne.s32.totalorder %s185, %s188
    %p197 = scmp.eq.s32.totalorder %s22, 7
    %p198 = por %p196, %p197
    %p199 = scmp.ne.s32.totalorder %s188, %s189
    %p200 = scmp.eq.s32.totalorder %s22, 0
    %p201 = por %p199, %p200
    %p202 = scmp.ne.s32.totalorder %s188, %s189
    %p203 = scmp.eq.s32.totalorder %s23, 7
    %p204 = por %p202, %p203
    %p206 = scmp.ne.s32.totalorder %s189, %s205
    %p207 = scmp.eq.s32.totalorder %s23, 0
    %p208 = por %p206, %p207
    %s209 = ssub.s32 %s25, %s32
    %p210 = scmp.eq.s32.totalorder %s209, 0
    %s212 = sadd.s32 %s211, 1
    %s213 = scalar_select %p210, %s211, %s212
    %p216 = pneg %p210
    %p217 = scmp.eq.s32.totalorder %s17, 7
    %p218 = por %p216, %p217
    %p219 = scmp.ne.s32.totalorder %s211, %s214
    %p220 = scmp.eq.s32.totalorder %s17, 0
    %p221 = por %p219, %p220
    %p222 = scmp.ne.s32.totalorder %s211, %s214
    %p223 = scmp.eq.s32.totalorder %s22, 7
    %p224 = por %p222, %p223
    %p225 = scmp.ne.s32.totalorder %s214, %s215
    %p226 = scmp.eq.s32.totalorder %s22, 0
    %p227 = por %p225, %p226
    %p228 = scmp.ne.s32.totalorder %s214, %s215
    %p229 = scmp.eq.s32.totalorder %s23, 7
    %p230 = por %p228, %p229
    %p232 = scmp.ne.s32.totalorder %s215, %s231
    %p233 = scmp.eq.s32.totalorder %s23, 0
    %p234 = por %p232, %p233
    %s235 = ssub.s32 %s25, %s32
    %p236 = scmp.eq.s32.totalorder %s235, 0
    %s238 = sadd.s32 %s237, 1
    %s239 = scalar_select %p236, %s237, %s238
    %p242 = pneg %p236
    %p243 = scmp.eq.s32.totalorder %s17, 7
    %p244 = por %p242, %p243
    %p245 = scmp.ne.s32.totalorder %s237, %s240
    %p246 = scmp.eq.s32.totalorder %s17, 0
    %p247 = por %p245, %p246
    %p248 = scmp.ne.s32.totalorder %s237, %s240
    %p249 = scmp.eq.s32.totalorder %s22, 7
    %p250 = por %p248, %p249
    %p251 = scmp.ne.s32.totalorder %s240, %s241
    %p252 = scmp.eq.s32.totalorder %s22, 0
    %p253 = por %p251, %p252
    %p254 = scmp.ne.s32.totalorder %s240, %s241
    %p255 = scmp.eq.s32.totalorder %s23, 7
    %p256 = por %p254, %p255
    %p258 = scmp.ne.s32.totalorder %s241, %s257
    %p259 = scmp.eq.s32.totalorder %s23, 0
    %p260 = por %p258, %p259
    %s261 = ssub.s32 %s25, %s32
    %p262 = scmp.eq.s32.totalorder %s261, 0
    %s264 = sadd.s32 %s263, 1
    %s265 = scalar_select %p262, %s263, %s264
    %p268 = pneg %p262
    %p269 = scmp.eq.s32.totalorder %s17, 7
    %p270 = por %p268, %p269
    %p271 = scmp.ne.s32.totalorder %s263, %s266
    %p272 = scmp.eq.s32.totalorder %s17, 0
    %p273 = por %p271, %p272
    %p274 = scmp.ne.s32.totalorder %s263, %s266
    %p275 = scmp.eq.s32.totalorder %s22, 7
    %p276 = por %p274, %p275
    %p277 = scmp.ne.s32.totalorder %s266, %s267
    %p278 = scmp.eq.s32.totalorder %s22, 0
    %p279 = por %p277, %p278
    %p280 = scmp.ne.s32.totalorder %s266, %s267
    %p281 = scmp.eq.s32.totalorder %s23, 7
    %p282 = por %p280, %p281
    %p284 = scmp.ne.s32.totalorder %s267, %s283
    %p285 = scmp.eq.s32.totalorder %s23, 0
    %p286 = por %p284, %p285
    %s288 = sadd.s32 %s287, 1
    %p291 = scmp.eq.s32.totalorder %s17, 7
    %p292 = scmp.ne.s32.totalorder %s287, %s289
    %p293 = scmp.eq.s32.totalorder %s17, 0
    %p294 = por %p292, %p293
    %p295 = scmp.ne.s32.totalorder %s287, %s289
    %p296 = scmp.eq.s32.totalorder %s22, 7
    %p297 = por %p295, %p296
    %p298 = scmp.ne.s32.totalorder %s289, %s290
    %p299 = scmp.eq.s32.totalorder %s22, 0
    %p300 = por %p298, %p299
    %p301 = scmp.ne.s32.totalorder %s289, %s290
    %p302 = scmp.eq.s32.totalorder %s23, 7
    %p303 = por %p301, %p302
    %p305 = scmp.ne.s32.totalorder %s290, %s304
    %p306 = scmp.eq.s32.totalorder %s23, 0
    %p307 = por %p305, %p306
    %s308 = ssub.s32 %s24, %s36
    %p309 = scmp.eq.s32.totalorder %s308, 0
    %s311 = sadd.s32 %s310, 1
    %s312 = scalar_select %p309, %s310, %s311
    %p315 = pneg %p309
    %p316 = scmp.eq.s32.totalorder %s17, 7
    %p317 = por %p315, %p316
    %p318 = scmp.ne.s32.totalorder %s310, %s313
    %p319 = scmp.eq.s32.totalorder %s17, 0
    %p320 = por %p318, %p319
    %p321 = scmp.ne.s32.totalorder %s310, %s313
    %p322 = scmp.eq.s32.totalorder %s22, 7
    %p323 = por %p321, %p322
    %p324 = scmp.ne.s32.totalorder %s313, %s314
    %p325 = scmp.eq.s32.totalorder %s22, 0
    %p326 = por %p324, %p325
    %p327 = scmp.ne.s32.totalorder %s313, %s314
    %p328 = scmp.eq.s32.totalorder %s23, 7
    %p329 = por %p327, %p328
    %p331 = scmp.ne.s32.totalorder %s314, %s330
    %p332 = scmp.eq.s32.totalorder %s23, 0
    %p333 = por %p331, %p332
    %p334 = scmp.le.s32.totalorder 1, %s17
    %p335 = scmp.lt.s32.totalorder %s17, 9
    %p336 = pnand %p334, %p335
    %p337 = pneg %p336
    // Predicated region
    $region9: #{tsd_b_forward.6} parent=5 // pred_check
      _
    $region10: #{tsd_b_forward.6} parent=5 // pred_check_branch
      %339 = sbr.rel (%p336) target = $region12
    $region11: #{tsd_b_forward.6} parent=5 // pred_region
      %s340 = ssub.s32 %s17, 1
      // Predicated region
      $region13: #{tsd_b_forward.6} parent=11 // pred_check
        %p341 = pneg %p76
      $region14: #{tsd_b_forward.6} parent=11 // pred_check_branch
        %343 = sbr.rel (%p341) target = $region16
      $region15: #{tsd_b_forward.6} parent=11 // pred_region
        _
      $region16: #{tsd_b_forward.6} parent=11 // pred_fallthru
        _
      // Predicated region
      $region17: #{tsd_b_forward.6} parent=11 // pred_check
        %p344 = pneg %p97
      $region18: #{tsd_b_forward.6} parent=11 // pred_check_branch
        %346 = sbr.rel (%p344) target = $region20
      $region19: #{tsd_b_forward.6} parent=11 // pred_region
        _
      $region20: #{tsd_b_forward.6} parent=11 // pred_fallthru
        _
      // Predicated region
      $region21: #{tsd_b_forward.6} parent=11 // pred_check
        %p347 = pneg %p300
      $region22: #{tsd_b_forward.6} parent=11 // pred_check_branch
        %349 = sbr.rel (%p347) target = $region24
      $region23: #{tsd_b_forward.6} parent=11 // pred_region
        _
      $region24: #{tsd_b_forward.6} parent=11 // pred_fallthru
        _
    $region12: #{tsd_b_forward.6} parent=5 // pred_fallthru
      _
    %p350 = scmp.lt.s32.totalorder %s17, 8
    // Predicated region
    $region25: #{tsd_b_forward.6} parent=5 // pred_check
      %p351 = pneg %p350
    $region26: #{tsd_b_forward.6} parent=5 // pred_check_branch
      %353 = sbr.rel (%p351) target = $region28
    $region27: #{tsd_b_forward.6} parent=5 // pred_region
      // Predicated region
      $region29: #{tsd_b_forward.6} parent=27 // pred_check
        %p354 = pneg %p49
      $region30: #{tsd_b_forward.6} parent=27 // pred_check_branch
        %356 = sbr.rel (%p354) target = $region32
      $region31: #{tsd_b_forward.6} parent=27 // pred_region
        %s357 = smul.u32 8, %s24
        %p358 = scmp.lt.s32.totalorder %s357, 15
        %s359 = scalar_select %p358, %s357, 15
        %s360 = smul.addr %s359, 8
        %s361 = scalar_lea.vmem %s0, %s360
        %s362 = smul.u32 8, %s24
      $region32: #{tsd_b_forward.6} parent=27 // pred_fallthru
        _
      // Predicated region
      $region33: #{tsd_b_forward.6} parent=27 // pred_check
        %p363 = pneg %p117
      $region34: #{tsd_b_forward.6} parent=27 // pred_check_branch
        %365 = sbr.rel (%p363) target = $region36
      $region35: #{tsd_b_forward.6} parent=27 // pred_region
        %p366 = scmp.lt.s32.totalorder %s25, 3
        %s367 = scalar_select %p366, %s25, 3
        %s368 = smul.addr %s367, 4
        %s369 = smul.addr %s368, 4
        %s370 = scalar_lea.vmem %s3, %s369
      $region36: #{tsd_b_forward.6} parent=27 // pred_fallthru
        _
      // Predicated region
      $region37: #{tsd_b_forward.6} parent=27 // pred_check
        %p371 = pneg %p143
      $region38: #{tsd_b_forward.6} parent=27 // pred_check_branch
        %373 = sbr.rel (%p371) target = $region40
      $region39: #{tsd_b_forward.6} parent=27 // pred_region
        %p374 = scmp.lt.s32.totalorder %s25, 3
        %s375 = scalar_select %p374, %s25, 3
        %s376 = scalar_lea.vmem %s4, %s375
      $region40: #{tsd_b_forward.6} parent=27 // pred_fallthru
        _
      // Predicated region
      $region41: #{tsd_b_forward.6} parent=27 // pred_check
        %p377 = pneg %p169
      $region42: #{tsd_b_forward.6} parent=27 // pred_check_branch
        %379 = sbr.rel (%p377) target = $region44
      $region43: #{tsd_b_forward.6} parent=27 // pred_region
        %p380 = scmp.lt.s32.totalorder %s25, 3
        %s381 = scalar_select %p380, %s25, 3
        %s382 = smul.addr %s381, 4
        %s383 = smul.addr %s382, 4
        %s384 = scalar_lea.vmem %s5, %s383
      $region44: #{tsd_b_forward.6} parent=27 // pred_fallthru
        _
      // Predicated region
      $region45: #{tsd_b_forward.6} parent=27 // pred_check
        %p385 = pneg %p195
      $region46: #{tsd_b_forward.6} parent=27 // pred_check_branch
        %387 = sbr.rel (%p385) target = $region48
      $region47: #{tsd_b_forward.6} parent=27 // pred_region
        %p388 = scmp.lt.s32.totalorder %s25, 3
        %s389 = scalar_select %p388, %s25, 3
        %s390 = scalar_lea.vmem %s6, %s389
      $region48: #{tsd_b_forward.6} parent=27 // pred_fallthru
        _
      // Predicated region
      $region49: #{tsd_b_forward.6} parent=27 // pred_check
        %p391 = pneg %p221
      $region50: #{tsd_b_forward.6} parent=27 // pred_check_branch
        %393 = sbr.rel (%p391) target = $region52
      $region51: #{tsd_b_forward.6} parent=27 // pred_region
        %p394 = scmp.lt.s32.totalorder %s25, 3
        %s395 = scalar_select %p394, %s25, 3
        %s396 = smul.addr %s395, 4
        %s397 = smul.addr %s396, 4
        %s398 = scalar_lea.vmem %s7, %s397
      $region52: #{tsd_b_forward.6} parent=27 // pred_fallthru
        _
      // Predicated region
      $region53: #{tsd_b_forward.6} parent=27 // pred_check
        %p399 = pneg %p247
      $region54: #{tsd_b_forward.6} parent=27 // pred_check_branch
        %401 = sbr.rel (%p399) target = $region56
      $region55: #{tsd_b_forward.6} parent=27 // pred_region
        %p402 = scmp.lt.s32.totalorder %s25, 3
        %s403 = scalar_select %p402, %s25, 3
        %s404 = scalar_lea.vmem %s8, %s403
      $region56: #{tsd_b_forward.6} parent=27 // pred_fallthru
        _
      // Predicated region
      $region57: #{tsd_b_forward.6} parent=27 // pred_check
        %p405 = pneg %p273
      $region58: #{tsd_b_forward.6} parent=27 // pred_check_branch
        %407 = sbr.rel (%p405) target = $region60
      $region59: #{tsd_b_forward.6} parent=27 // pred_region
        %p408 = scmp.lt.s32.totalorder %s25, 3
        %s409 = scalar_select %p408, %s25, 3
        %s410 = smul.addr %s409, 4
        %s411 = scalar_lea.vmem %s9, %s410
      $region60: #{tsd_b_forward.6} parent=27 // pred_fallthru
        _
    $region28: #{tsd_b_forward.6} parent=5 // pred_fallthru
      _
    %p412 = scmp.le.s32.totalorder 1, %s17
    %p413 = scmp.lt.s32.totalorder %s17, 9
    %p414 = pnand %p412, %p413
    %p415 = pneg %p414
    // Predicated region
    $region61: #{tsd_b_forward.6} parent=5 // pred_check
      _
    $region62: #{tsd_b_forward.6} parent=5 // pred_check_branch
      %417 = sbr.rel (%p414) target = $region64
    $region63: #{tsd_b_forward.6} parent=5 // pred_region
      %s418 = ssub.s32 %s17, 1
      %s419 = smul.u32 8, %s26
      %p420 = scmp.lt.s32.totalorder %s419, 15
      %s421 = scalar_select %p420, %s419, 15
      %s422 = smul.addr %s421, 8
      %s423 = scalar_lea.vmem %s0, %s422
      %p424 = pneg %p55
      %p425 = pneg %p52
      %p426 = pneg %p76
      %p427 = pneg %p73
      %p428 = pneg %p97
      %p429 = pneg %p94
      %p430 = scmp.lt.s32.totalorder %s27, 3
      %s431 = scalar_select %p430, %s27, 3
      %s432 = smul.addr %s431, 4
      %s433 = smul.addr %s432, 4
      %s434 = scalar_lea.vmem %s3, %s433
      %p435 = pneg %p123
      %p436 = pneg %p120
      %p437 = scmp.lt.s32.totalorder %s27, 3
      %s438 = scalar_select %p437, %s27, 3
      %s439 = scalar_lea.vmem %s4, %s438
      %p440 = pneg %p149
      %p441 = pneg %p146
      %p442 = scmp.lt.s32.totalorder %s27, 3
      %s443 = scalar_select %p442, %s27, 3
      %s444 = smul.addr %s443, 4
      %s445 = smul.addr %s444, 4
      %s446 = scalar_lea.vmem %s5, %s445
      %p447 = pneg %p175
      %p448 = pneg %p172
      %p449 = scmp.lt.s32.totalorder %s27, 3
      %s450 = scalar_select %p449, %s27, 3
      %s451 = scalar_lea.vmem %s6, %s450
      %p452 = pneg %p201
      %p453 = pneg %p198
      %p454 = scmp.lt.s32.totalorder %s27, 3
      %s455 = scalar_select %p454, %s27, 3
      %s456 = smul.addr %s455, 4
      %s457 = smul.addr %s456, 4
      %s458 = scalar_lea.vmem %s7, %s457
      %p459 = pneg %p227
      %p460 = pneg %p224
      %p461 = scmp.lt.s32.totalorder %s27, 3
      %s462 = scalar_select %p461, %s27, 3
      %s463 = scalar_lea.vmem %s8, %s462
      %p464 = pneg %p253
      %p465 = pneg %p250
      %p466 = scmp.lt.s32.totalorder %s27, 3
      %s467 = scalar_select %p466, %s27, 3
      %s468 = smul.addr %s467, 4
      %s469 = scalar_lea.vmem %s9, %s468
      %p470 = pneg %p279
      %p471 = pneg %p276
      %p472 = pneg %p300
      %p473 = pneg %p297
      %p474 = pneg %p326
      %p475 = pneg %p323
      %s476 = smul.u32 8, %s26
      %p477 = scmp.lt.s32.totalorder %s476, 15
      %s478 = scalar_select %p477, %s476, 15
      %s479 = smul.addr %s478, 8
      %s480 = scalar_lea.vmem %s11, %s479
      %s481 = smul.u32 8, %s26
      %p482 = scmp.lt.s32.totalorder %s481, 15
      %s483 = scalar_select %p482, %s481, 15
      %s484 = smul.addr %s483, 8
      %s485 = scalar_lea.vmem %s0, %s484
      %s486 = smul.u32 8, %s26
      %p487 = scmp.lt.s32.totalorder %s27, 3
      %s488 = scalar_select %p487, %s27, 3
      %s489 = smul.addr %s488, 4
      %s490 = smul.addr %s489, 4
      %s491 = scalar_lea.vmem %s3, %s490
      %p492 = scmp.lt.s32.totalorder %s27, 3
      %s493 = scalar_select %p492, %s27, 3
      %s494 = scalar_lea.vmem %s4, %s493
      %p495 = scmp.lt.s32.totalorder %s27, 3
      %s496 = scalar_select %p495, %s27, 3
      %s497 = smul.addr %s496, 4
      %s498 = smul.addr %s497, 4
      %s499 = scalar_lea.vmem %s5, %s498
      %p500 = scmp.lt.s32.totalorder %s27, 3
      %s501 = scalar_select %p500, %s27, 3
      %s502 = scalar_lea.vmem %s6, %s501
      %p503 = scmp.lt.s32.totalorder %s27, 3
      %s504 = scalar_select %p503, %s27, 3
      %s505 = smul.addr %s504, 4
      %s506 = smul.addr %s505, 4
      %s507 = scalar_lea.vmem %s7, %s506
      %p508 = scmp.lt.s32.totalorder %s27, 3
      %s509 = scalar_select %p508, %s27, 3
      %s510 = scalar_lea.vmem %s8, %s509
      %p511 = scmp.lt.s32.totalorder %s27, 3
      %s512 = scalar_select %p511, %s27, 3
      %s513 = smul.addr %s512, 4
      %s514 = scalar_lea.vmem %s9, %s513
      %s515 = smul.u32 8, %s26
      %p516 = scmp.lt.s32.totalorder %s515, 15
      %s517 = scalar_select %p516, %s515, 15
      %s518 = smul.addr %s517, 8
      %s519 = scalar_lea.vmem %s11, %s518
      %s520 = smul.u32 8, %s26
      %p522 = scmp.eq.s32.totalorder %s27, 0
      // Predicated region
      $region65: #{tsd_b_forward.6} parent=63 // pred_check
        %p523 = pneg %p522
      $region66: #{tsd_b_forward.6} parent=63 // pred_check_branch
        %525 = sbr.rel (%p523) target = $region68
      $region67: #{tsd_b_forward.6} parent=63 // pred_region
        %v526 = vld [vmem:[%s485] sm:$0xff]
        %v527 = vld [vmem:[%s485 + $0x8] sm:$0xff]
        %v528 = vld [vmem:[%s485 + $0x10] sm:$0xff]
        %v529 = vld [vmem:[%s485 + $0x18] sm:$0xff]
        %v530 = vld [vmem:[%s485 + $0x20] sm:$0xff]
        %v531 = vld [vmem:[%s485 + $0x28] sm:$0xff]
        %v532 = vld [vmem:[%s485 + $0x30] sm:$0xff]
        %v533 = vld [vmem:[%s485 + $0x38] sm:$0xff]
        %v534 = vld [vmem:[%s1] sm:$0x1]
        %v535 = vld [vmem:[%s2] sm:$0x1]
        %vm536 = vcmask 261120
        %v537 = vsel %vm536, %v526, 0.0
        %538 = vadd.xlane.f32.xlu0 %v537
        %v539 = vpop.xlane.xlu0 %538
        %v540 = vsel %vm536, %v527, 0.0
        %541 = vadd.xlane.f32.xlu0 %v540
        %v542 = vpop.xlane.xlu0 %541
        %v543 = vsel %vm536, %v528, 0.0
        %544 = vadd.xlane.f32.xlu0 %v543
        %v545 = vpop.xlane.xlu0 %544
        %v546 = vsel %vm536, %v529, 0.0
        %547 = vadd.xlane.f32.xlu0 %v546
        %v548 = vpop.xlane.xlu0 %547
        %v549 = vsel %vm536, %v530, 0.0
        %550 = vadd.xlane.f32.xlu0 %v549
        %v551 = vpop.xlane.xlu0 %550
        %v552 = vsel %vm536, %v531, 0.0
        %553 = vadd.xlane.f32.xlu0 %v552
        %v554 = vpop.xlane.xlu0 %553
        %v555 = vsel %vm536, %v532, 0.0
        %556 = vadd.xlane.f32.xlu0 %v555
        %v557 = vpop.xlane.xlu0 %556
        %v558 = vsel %vm536, %v533, 0.0
        %559 = vadd.xlane.f32.xlu0 %v558
        %v560 = vpop.xlane.xlu0 %559
        %v561 = vrcp.pop 32.0
        %v562 = vmul.f32 %v539, %v561
        %v563 = vmul.f32 %v542, %v561
        %v564 = vmul.f32 %v545, %v561
        %v565 = vmul.f32 %v548, %v561
        %v566 = vmul.f32 %v551, %v561
        %v567 = vmul.f32 %v554, %v561
        %v568 = vmul.f32 %v557, %v561
        %v569 = vmul.f32 %v560, %v561
        %v570 = vsub.f32 %v526, %v562
        %v571 = vsub.f32 %v527, %v563
        %v572 = vsub.f32 %v528, %v564
        %v573 = vsub.f32 %v529, %v565
        %v574 = vsub.f32 %v530, %v566
        %v575 = vsub.f32 %v531, %v567
        %v576 = vsub.f32 %v532, %v568
        %v577 = vsub.f32 %v533, %v569
        %v578 = vmul.f32 %v570, %v570
        %v579 = vmul.f32 %v571, %v571
        %v580 = vmul.f32 %v572, %v572
        %v581 = vmul.f32 %v573, %v573
        %v582 = vmul.f32 %v574, %v574
        %v583 = vmul.f32 %v575, %v575
        %v584 = vmul.f32 %v576, %v576
        %v585 = vmul.f32 %v577, %v577
        %v586 = vsel %vm536, %v578, 0.0
        %587 = vadd.xlane.f32.xlu0 %v586
        %v588 = vpop.xlane.xlu0 %587
        %v589 = vsel %vm536, %v579, 0.0
        %590 = vadd.xlane.f32.xlu0 %v589
        %v591 = vpop.xlane.xlu0 %590
        %v592 = vsel %vm536, %v580, 0.0
        %593 = vadd.xlane.f32.xlu0 %v592
        %v594 = vpop.xlane.xlu0 %593
        %v595 = vsel %vm536, %v581, 0.0
        %596 = vadd.xlane.f32.xlu0 %v595
        %v597 = vpop.xlane.xlu0 %596
        %v598 = vsel %vm536, %v582, 0.0
        %599 = vadd.xlane.f32.xlu0 %v598
        %v600 = vpop.xlane.xlu0 %599
        %v601 = vsel %vm536, %v583, 0.0
        %602 = vadd.xlane.f32.xlu0 %v601
        %v603 = vpop.xlane.xlu0 %602
        %v604 = vsel %vm536, %v584, 0.0
        %605 = vadd.xlane.f32.xlu0 %v604
        %v606 = vpop.xlane.xlu0 %605
        %v607 = vsel %vm536, %v585, 0.0
        %608 = vadd.xlane.f32.xlu0 %v607
        %v609 = vpop.xlane.xlu0 %608
        %v610 = vmul.f32 %v588, %v561
        %v611 = vmul.f32 %v591, %v561
        %v612 = vmul.f32 %v594, %v561
        %v613 = vmul.f32 %v597, %v561
        %v614 = vmul.f32 %v600, %v561
        %v615 = vmul.f32 %v603, %v561
        %v616 = vmul.f32 %v606, %v561
        %v617 = vmul.f32 %v609, %v561
        %v618 = vadd.f32 %v610, 1e-05
        %v619 = vadd.f32 %v611, 1e-05
        %v620 = vadd.f32 %v612, 1e-05
        %v621 = vadd.f32 %v613, 1e-05
        %v622 = vadd.f32 %v614, 1e-05
        %v623 = vadd.f32 %v615, 1e-05
        %v624 = vadd.f32 %v616, 1e-05
        %v625 = vadd.f32 %v617, 1e-05
        %v626 = vrsqrt.pop %v618
        %v627 = vrsqrt.pop %v619
        %v628 = vrsqrt.pop %v620
        %v629 = vrsqrt.pop %v621
        %v630 = vrsqrt.pop %v622
        %v631 = vrsqrt.pop %v623
        %v632 = vrsqrt.pop %v624
        %v633 = vrsqrt.pop %v625
        %v634 = vmul.f32 %v570, %v626
        %v635 = vmul.f32 %v571, %v627
        %v636 = vmul.f32 %v572, %v628
        %v637 = vmul.f32 %v573, %v629
        %v638 = vmul.f32 %v574, %v630
        %v639 = vmul.f32 %v575, %v631
        %v640 = vmul.f32 %v576, %v632
        %v641 = vmul.f32 %v577, %v633
        %v643 = vlaneseq
        %v644 = vshrl.u32 %v643, 7
        %v645 = vsub.s32 0, %v644
        %v646 = vrot.slane %v534, %v645
        %v648 = vmul.f32 %v634, %v646
        %v649 = vmul.f32 %v635, %v646
        %v650 = vmul.f32 %v636, %v646
        %v651 = vmul.f32 %v637, %v646
        %v652 = vmul.f32 %v638, %v646
        %v653 = vmul.f32 %v639, %v646
        %v654 = vmul.f32 %v640, %v646
        %v655 = vmul.f32 %v641, %v646
        %v657 = vlaneseq
        %v658 = vshrl.u32 %v657, 7
        %v659 = vsub.s32 0, %v658
        %v660 = vrot.slane %v535, %v659
        %v662 = vadd.f32 %v648, %v660
        %v663 = vadd.f32 %v649, %v660
        %v664 = vadd.f32 %v650, %v660
        %v665 = vadd.f32 %v651, %v660
        %v666 = vadd.f32 %v652, %v660
        %v667 = vadd.f32 %v653, %v660
        %v668 = vadd.f32 %v654, %v660
        %v669 = vadd.f32 %v655, %v660
        %v670 = vpack.c.bf16 %v663, %v662
        %v671 = vpack.c.bf16 %v665, %v664
        %v672 = vpack.c.bf16 %v667, %v666
        %v673 = vpack.c.bf16 %v669, %v668
        %674 = vst.msk [vmem:[#allocation2] sm:$0xff] %vm536, %v670
        %675 = vst.msk [vmem:[#allocation2 + $0x8] sm:$0xff] %vm536, %v671
        %676 = vst.msk [vmem:[#allocation2 + $0x10] sm:$0xff] %vm536, %v672
        %677 = vst.msk [vmem:[#allocation2 + $0x18] sm:$0xff] %vm536, %v673
        %678 = vst.msk [vmem:[#allocation3] sm:$0xff] %vm536, 0.0
        %679 = vst.msk [vmem:[#allocation3 + $0x8] sm:$0xff] %vm536, 0.0
        %680 = vst.msk [vmem:[#allocation3 + $0x10] sm:$0xff] %vm536, 0.0
        %681 = vst.msk [vmem:[#allocation3 + $0x18] sm:$0xff] %vm536, 0.0
        %682 = vst.msk [vmem:[#allocation3 + $0x20] sm:$0xff] %vm536, 0.0
        %683 = vst.msk [vmem:[#allocation3 + $0x28] sm:$0xff] %vm536, 0.0
        %684 = vst.msk [vmem:[#allocation3 + $0x30] sm:$0xff] %vm536, 0.0
        %685 = vst.msk [vmem:[#allocation3 + $0x38] sm:$0xff] %vm536, 0.0
      $region68: #{tsd_b_forward.6} parent=63 // pred_fallthru
        _
      %v686 = vld [vmem:[#allocation2] sm:$0xff]
      %v687 = vld [vmem:[#allocation2 + $0x8] sm:$0xff]
      %v688 = vld [vmem:[#allocation2 + $0x10] sm:$0xff]
      %v689 = vld [vmem:[#allocation2 + $0x18] sm:$0xff]
      %v690 = vld [vmem:[%s491] sm:$0xf]
      %v691 = vld [vmem:[%s491 + $0x4] sm:$0xf]
      %v692 = vld [vmem:[%s491 + $0x8] sm:$0xf]
      %v693 = vld [vmem:[%s491 + $0xc] sm:$0xf]
      %v694 = vld [vmem:[%s494] sm:$0x1]
      %v696 = vlaneseq
      %v697 = vshrl.u32 %v696, 7
      %v698 = vsub.s32 0, %v697
      %v699 = vrot.slane %v694, %v698
      %v705 = vunpack.c.l.b16 %v690
      %v706 = vunpack.c.l.b16 %v691
      %v707 = vunpack.c.l.b16 %v692
      %v708 = vunpack.c.l.b16 %v693
      %v709 = vpack.c.b16 %v706, %v705
      %v710 = vpack.c.b16 %v708, %v707
      %vm713 = vcmask 261120
      %v715 = vsel %vm713, %v686, 0
      %v718 = vsel %vm713, %v687, 0
      %v721 = vsel %vm713, %v688, 0
      %v724 = vsel %vm713, %v689, 0
      %726 = vmatprep.subr.bf16.mxu0 0
      %727 = vmatpush1.bf16.msra.mxu0 %v709
      %728 = vmatprep.subr.bf16.mxu0 0
      %729 = vmatpush1.bf16.msra.mxu0 %v710
      %730 = vmatprep.subr.bf16.mxu0 0
      %731 = vmatpush1.bf16.msra.mxu0 0
      %732 = vmatprep.subr.bf16.mxu0 0
      %733 = vmatpush1.bf16.msra.mxu0 0
      %734 = vmatprep.subr.bf16.mxu0 0
      %735 = vmatpush1.bf16.msra.mxu0 0
      %736 = vmatprep.subr.bf16.mxu0 0
      %737 = vmatpush1.bf16.msra.mxu0 0
      %738 = vmatprep.subr.bf16.mxu0 0
      %739 = vmatpush1.bf16.msra.mxu0 0
      %740 = vmatprep.subr.bf16.mxu0 0
      %741 = vmatpush1.bf16.msra.mxu0 0
      %742 = vmatprep.subr.bf16.mxu0 0
      %743 = vmatpush1.bf16.msra.mxu0 0
      %744 = vmatprep.subr.bf16.mxu0 0
      %745 = vmatpush1.bf16.msra.mxu0 0
      %746 = vmatprep.subr.bf16.mxu0 0
      %747 = vmatpush1.bf16.msra.mxu0 0
      %748 = vmatprep.subr.bf16.mxu0 0
      %749 = vmatpush1.bf16.msra.mxu0 0
      %750 = vmatprep.subr.bf16.mxu0 0
      %751 = vmatpush1.bf16.msra.mxu0 0
      %752 = vmatprep.subr.bf16.mxu0 0
      %753 = vmatpush1.bf16.msra.mxu0 0
      %754 = vmatprep.subr.bf16.mxu0 0
      %755 = vmatpush1.bf16.msra.mxu0 0
      %756 = vmatprep.subr.bf16.mxu0 0
      %757 = vmatpush1.bf16.msra.mxu0 0
      %758 = vmatprep.mubr.bf16.mxu0 0
      %759 = vmatmul.mubr.bf16.gmra.mrb[0].mxu0 %v715
      %v760 = vpop.f32.mrb[0].mxu0
      %v761 = vadd.f32 %v699, %v760
      %v762 = vpop.f32.mrb[0].mxu0
      %v763 = vpop.f32.mrb[0].mxu0
      %v764 = vadd.f32 %v699, %v763
      %v765 = vpop.f32.mrb[0].mxu0
      %766 = vmatprep.mubr.bf16.mxu0 0
      %767 = vmatmul.mubr.bf16.gmra.mrb[0].mxu0 %v718
      %v768 = vpop.f32.mrb[0].mxu0
      %v769 = vadd.f32 %v699, %v768
      %v770 = vpop.f32.mrb[0].mxu0
      %v771 = vpop.f32.mrb[0].mxu0
      %v772 = vadd.f32 %v699, %v771
      %v773 = vpop.f32.mrb[0].mxu0
      %774 = vmatprep.mubr.bf16.mxu0 0
      %775 = vmatmul.mubr.bf16.gmra.mrb[0].mxu0 %v721
      %v776 = vpop.f32.mrb[0].mxu0
      %v777 = vadd.f32 %v699, %v776
      %v778 = vpop.f32.mrb[0].mxu0
      %v779 = vpop.f32.mrb[0].mxu0
      %v780 = vadd.f32 %v699, %v779
      %v781 = vpop.f32.mrb[0].mxu0
      %782 = vmatprep.mubr.bf16.mxu0 0
      %783 = vmatmul.mubr.bf16.gmra.mrb[0].mxu0 %v724
      %v784 = vpop.f32.mrb[0].mxu0
      %v785 = vadd.f32 %v699, %v784
      %v786 = vpop.f32.mrb[0].mxu0
      %v787 = vpop.f32.mrb[0].mxu0
      %v788 = vadd.f32 %v699, %v787
      %v789 = vpop.f32.mrb[0].mxu0
      %790 = vdwg.mxu0
      %v791 = vld [vmem:[%s499] sm:$0xf]
      %v792 = vld [vmem:[%s499 + $0x4] sm:$0xf]
      %v793 = vld [vmem:[%s499 + $0x8] sm:$0xf]
      %v794 = vld [vmem:[%s499 + $0xc] sm:$0xf]
      %v795 = vld [vmem:[%s502] sm:$0x1]
      %v797 = vlaneseq
      %v798 = vshrl.u32 %v797, 7
      %v799 = vsub.s32 0, %v798
      %v800 = vrot.slane %v795, %v799
      %v806 = vunpack.c.l.b16 %v791
      %v807 = vunpack.c.l.b16 %v792
      %v808 = vunpack.c.l.b16 %v793
      %v809 = vunpack.c.l.b16 %v794
      %v810 = vpack.c.b16 %v807, %v806
      %v811 = vpack.c.b16 %v809, %v808
      %814 = vmatprep.subr.bf16.mxu0 0
      %815 = vmatpush1.bf16.msra.mxu0 %v810
      %816 = vmatprep.subr.bf16.mxu0 0
      %817 = vmatpush1.bf16.msra.mxu0 %v811
      %818 = vmatprep.subr.bf16.mxu0 0
      %819 = vmatpush1.bf16.msra.mxu0 0
      %820 = vmatprep.subr.bf16.mxu0 0
      %821 = vmatpush1.bf16.msra.mxu0 0
      %822 = vmatprep.subr.bf16.mxu0 0
      %823 = vmatpush1.bf16.msra.mxu0 0
      %824 = vmatprep.subr.bf16.mxu0 0
      %825 = vmatpush1.bf16.msra.mxu0 0
      %826 = vmatprep.subr.bf16.mxu0 0
      %827 = vmatpush1.bf16.msra.mxu0 0
      %828 = vmatprep.subr.bf16.mxu0 0
      %829 = vmatpush1.bf16.msra.mxu0 0
      %830 = vmatprep.subr.bf16.mxu0 0
      %831 = vmatpush1.bf16.msra.mxu0 0
      %832 = vmatprep.subr.bf16.mxu0 0
      %833 = vmatpush1.bf16.msra.mxu0 0
      %834 = vmatprep.subr.bf16.mxu0 0
      %835 = vmatpush1.bf16.msra.mxu0 0
      %836 = vmatprep.subr.bf16.mxu0 0
      %837 = vmatpush1.bf16.msra.mxu0 0
      %838 = vmatprep.subr.bf16.mxu0 0
      %839 = vmatpush1.bf16.msra.mxu0 0
      %840 = vmatprep.subr.bf16.mxu0 0
      %841 = vmatpush1.bf16.msra.mxu0 0
      %842 = vmatprep.subr.bf16.mxu0 0
      %843 = vmatpush1.bf16.msra.mxu0 0
      %844 = vmatprep.subr.bf16.mxu0 0
      %845 = vmatpush1.bf16.msra.mxu0 0
      %846 = vmatprep.mubr.bf16.mxu0 0
      %847 = vmatmul.mubr.bf16.gmra.mrb[0].mxu0 %v715
      %v848 = vpop.f32.mrb[0].mxu0
      %v849 = vadd.f32 %v800, %v848
      %v850 = vpop.f32.mrb[0].mxu0
      %v851 = vpop.f32.mrb[0].mxu0
      %v852 = vadd.f32 %v800, %v851
      %v853 = vpop.f32.mrb[0].mxu0
      %854 = vmatprep.mubr.bf16.mxu0 0
      %855 = vmatmul.mubr.bf16.gmra.mrb[0].mxu0 %v718
      %v856 = vpop.f32.mrb[0].mxu0
      %v857 = vadd.f32 %v800, %v856
      %v858 = vpop.f32.mrb[0].mxu0
      %v859 = vpop.f32.mrb[0].mxu0
      %v860 = vadd.f32 %v800, %v859
      %v861 = vpop.f32.mrb[0].mxu0
      %862 = vmatprep.mubr.bf16.mxu0 0
      %863 = vmatmul.mubr.bf16.gmra.mrb[0].mxu0 %v721
      %v864 = vpop.f32.mrb[0].mxu0
      %v865 = vadd.f32 %v800, %v864
      %v866 = vpop.f32.mrb[0].mxu0
      %v867 = vpop.f32.mrb[0].mxu0
      %v868 = vadd.f32 %v800, %v867
      %v869 = vpop.f32.mrb[0].mxu0
      %870 = vmatprep.mubr.bf16.mxu0 0
      %871 = vmatmul.mubr.bf16.gmra.mrb[0].mxu0 %v724
      %v872 = vpop.f32.mrb[0].mxu0
      %v873 = vadd.f32 %v800, %v872
      %v874 = vpop.f32.mrb[0].mxu0
      %v875 = vpop.f32.mrb[0].mxu0
      %v876 = vadd.f32 %v800, %v875
      %v877 = vpop.f32.mrb[0].mxu0
      %878 = vdwg.mxu0
      %v879 = vld [vmem:[%s507] sm:$0xf]
      %v880 = vld [vmem:[%s507 + $0x4] sm:$0xf]
      %v881 = vld [vmem:[%s507 + $0x8] sm:$0xf]
      %v882 = vld [vmem:[%s507 + $0xc] sm:$0xf]
      %v883 = vld [vmem:[%s510] sm:$0x1]
      %v885 = vlaneseq
      %v886 = vshrl.u32 %v885, 7
      %v887 = vsub.s32 0, %v886
      %v888 = vrot.slane %v883, %v887
      %v894 = vunpack.c.l.b16 %v879
      %v895 = vunpack.c.l.b16 %v880
      %v896 = vunpack.c.l.b16 %v881
      %v897 = vunpack.c.l.b16 %v882
      %v898 = vpack.c.b16 %v895, %v894
      %v899 = vpack.c.b16 %v897, %v896
      %902 = vmatprep.subr.bf16.mxu0 0
      %903 = vmatpush1.bf16.msra.mxu0 %v898
      %904 = vmatprep.subr.bf16.mxu0 0
      %905 = vmatpush1.bf16.msra.mxu0 %v899
      %906 = vmatprep.subr.bf16.mxu0 0
      %907 = vmatpush1.bf16.msra.mxu0 0
      %908 = vmatprep.subr.bf16.mxu0 0
      %909 = vmatpush1.bf16.msra.mxu0 0
      %910 = vmatprep.subr.bf16.mxu0 0
      %911 = vmatpush1.bf16.msra.mxu0 0
      %912 = vmatprep.subr.bf16.mxu0 0
      %913 = vmatpush1.bf16.msra.mxu0 0
      %914 = vmatprep.subr.bf16.mxu0 0
      %915 = vmatpush1.bf16.msra.mxu0 0
      %916 = vmatprep.subr.bf16.mxu0 0
      %917 = vmatpush1.bf16.msra.mxu0 0
      %918 = vmatprep.subr.bf16.mxu0 0
      %919 = vmatpush1.bf16.msra.mxu0 0
      %920 = vmatprep.subr.bf16.mxu0 0
      %921 = vmatpush1.bf16.msra.mxu0 0
      %922 = vmatprep.subr.bf16.mxu0 0
      %923 = vmatpush1.bf16.msra.mxu0 0
      %924 = vmatprep.subr.bf16.mxu0 0
      %925 = vmatpush1.bf16.msra.mxu0 0
      %926 = vmatprep.subr.bf16.mxu0 0
      %927 = vmatpush1.bf16.msra.mxu0 0
      %928 = vmatprep.subr.bf16.mxu0 0
      %929 = vmatpush1.bf16.msra.mxu0 0
      %930 = vmatprep.subr.bf16.mxu0 0
      %931 = vmatpush1.bf16.msra.mxu0 0
      %932 = vmatprep.subr.bf16.mxu0 0
      %933 = vmatpush1.bf16.msra.mxu0 0
      %934 = vmatprep.mubr.bf16.mxu0 0
      %935 = vmatmul.mubr.bf16.gmra.mrb[0].mxu0 %v715
      %v936 = vpop.f32.mrb[0].mxu0
      %v937 = vadd.f32 %v888, %v936
      %v938 = vpop.f32.mrb[0].mxu0
      %v939 = vpop.f32.mrb[0].mxu0
      %v940 = vadd.f32 %v888, %v939
      %v941 = vpop.f32.mrb[0].mxu0
      %942 = vmatprep.mubr.bf16.mxu0 0
      %943 = vmatmul.mubr.bf16.gmra.mrb[0].mxu0 %v718
      %v944 = vpop.f32.mrb[0].mxu0
      %v945 = vadd.f32 %v888, %v944
      %v946 = vpop.f32.mrb[0].mxu0
      %v947 = vpop.f32.mrb[0].mxu0
      %v948 = vadd.f32 %v888, %v947
      %v949 = vpop.f32.mrb[0].mxu0
      %950 = vmatprep.mubr.bf16.mxu0 0
      %951 = vmatmul.mubr.bf16.gmra.mrb[0].mxu0 %v721
      %v952 = vpop.f32.mrb[0].mxu0
      %v953 = vadd.f32 %v888, %v952
      %v954 = vpop.f32.mrb[0].mxu0
      %v955 = vpop.f32.mrb[0].mxu0
      %v956 = vadd.f32 %v888, %v955
      %v957 = vpop.f32.mrb[0].mxu0
      %958 = vmatprep.mubr.bf16.mxu0 0
      %959 = vmatmul.mubr.bf16.gmra.mrb[0].mxu0 %v724
      %v960 = vpop.f32.mrb[0].mxu0
      %v961 = vadd.f32 %v888, %v960
      %v962 = vpop.f32.mrb[0].mxu0
      %v963 = vpop.f32.mrb[0].mxu0
      %v964 = vadd.f32 %v888, %v963
      %v965 = vpop.f32.mrb[0].mxu0
      %966 = vdwg.mxu0
      %v967 = vpack.c.bf16 %v764, %v761
      %v968 = vpack.c.bf16 %v772, %v769
      %v969 = vpack.c.bf16 %v780, %v777
      %v970 = vpack.c.bf16 %v788, %v785
      %v971 = vpack.c.bf16 %v852, %v849
      %v972 = vpack.c.bf16 %v860, %v857
      %v973 = vpack.c.bf16 %v868, %v865
      %v974 = vpack.c.bf16 %v876, %v873
      %vm975 = vcmask 64512
      %v977 = vsel %vm975, %v967, 0
      %v980 = vsel %vm975, %v968, 0
      %v983 = vsel %vm975, %v969, 0
      %v986 = vsel %vm975, %v970, 0
      %v989 = vsel %vm975, %v971, 0
      %v992 = vsel %vm975, %v972, 0
      %v995 = vsel %vm975, %v973, 0
      %v998 = vsel %vm975, %v974, 0
      %1000 = vmatprep.subr.bf16.mxu0 0
      %1001 = vmatpush1.bf16.xpose.msra.mxu0 %v989
      %1002 = vmatprep.subr.bf16.mxu0 0
      %1003 = vmatpush1.bf16.xpose.msra.mxu0 %v992
      %1004 = vmatprep.subr.bf16.mxu0 0
      %1005 = vmatpush1.bf16.xpose.msra.mxu0 %v995
      %1006 = vmatprep.subr.bf16.mxu0 0
      %1007 = vmatpush1.bf16.xpose.msra.mxu0 %v998
      %1008 = vmatprep.subr.bf16.mxu0 0
      %1009 = vmatpush1.bf16.xpose.msra.mxu0 0
      %1010 = vmatprep.subr.bf16.mxu0 0
      %1011 = vmatpush1.bf16.xpose.msra.mxu0 0
      %1012 = vmatprep.subr.bf16.mxu0 0
      %1013 = vmatpush1.bf16.xpose.msra.mxu0 0
      %1014 = vmatprep.subr.bf16.mxu0 0
      %1015 = vmatpush1.bf16.xpose.msra.mxu0 0
      %1016 = vmatprep.subr.bf16.mxu0 0
      %1017 = vmatpush1.bf16.xpose.msra.mxu0 0
      %1018 = vmatprep.subr.bf16.mxu0 0
      %1019 = vmatpush1.bf16.xpose.msra.mxu0 0
      %1020 = vmatprep.subr.bf16.mxu0 0
      %1021 = vmatpush1.bf16.xpose.msra.mxu0 0
      %1022 = vmatprep.subr.bf16.mxu0 0
      %1023 = vmatpush1.bf16.xpose.msra.mxu0 0
      %1024 = vmatprep.subr.bf16.mxu0 0
      %1025 = vmatpush1.bf16.xpose.msra.mxu0 0
      %1026 = vmatprep.subr.bf16.mxu0 0
      %1027 = vmatpush1.bf16.xpose.msra.mxu0 0
      %1028 = vmatprep.subr.bf16.mxu0 0
      %1029 = vmatpush1.bf16.xpose.msra.mxu0 0
      %1030 = vmatprep.subr.bf16.mxu0 0
      %1031 = vmatpush1.bf16.xpose.msra.mxu0 0
      %1032 = vmatprep.mubr.bf16.mxu0 0
      %1033 = vmatmul.mubr.bf16.gmra.mrb[0].mxu0 %v977
      %v1034 = vpop.f32.mrb[0].mxu0
      %v1035 = vadd.f32 0.0, %v1034
      %v1036 = vpop.f32.mrb[0].mxu0
      %v1037 = vpop.f32.mrb[0].mxu0
      %v1038 = vadd.f32 0.0, %v1037
      %v1039 = vpop.f32.mrb[0].mxu0
      %1040 = vmatprep.mubr.bf16.mxu0 0
      %1041 = vmatmul.mubr.bf16.gmra.mrb[0].mxu0 %v980
      %v1042 = vpop.f32.mrb[0].mxu0
      %v1043 = vadd.f32 0.0, %v1042
      %v1044 = vpop.f32.mrb[0].mxu0
      %v1045 = vpop.f32.mrb[0].mxu0
      %v1046 = vadd.f32 0.0, %v1045
      %v1047 = vpop.f32.mrb[0].mxu0
      %1048 = vmatprep.mubr.bf16.mxu0 0
      %1049 = vmatmul.mubr.bf16.gmra.mrb[0].mxu0 %v983
      %v1050 = vpop.f32.mrb[0].mxu0
      %v1051 = vadd.f32 0.0, %v1050
      %v1052 = vpop.f32.mrb[0].mxu0
      %v1053 = vpop.f32.mrb[0].mxu0
      %v1054 = vadd.f32 0.0, %v1053
      %v1055 = vpop.f32.mrb[0].mxu0
      %1056 = vmatprep.mubr.bf16.mxu0 0
      %1057 = vmatmul.mubr.bf16.gmra.mrb[0].mxu0 %v986
      %v1058 = vpop.f32.mrb[0].mxu0
      %v1059 = vadd.f32 0.0, %v1058
      %v1060 = vpop.f32.mrb[0].mxu0
      %v1061 = vpop.f32.mrb[0].mxu0
      %v1062 = vadd.f32 0.0, %v1061
      %v1063 = vpop.f32.mrb[0].mxu0
      %1064 = vdwg.mxu0
      %vm1065 = vcmask 523264
      %v1066 = vsel %vm1065, %v1035, -inf
      %1067 = vmax.xlane.f32.xlu0 %v1066
      %v1068 = vpop.xlane.xlu0 %1067
      %v1069 = vsel %vm1065, %v1038, -inf
      %1070 = vmax.xlane.f32.xlu0 %v1069
      %v1071 = vpop.xlane.xlu0 %1070
      %v1072 = vsel %vm1065, %v1043, -inf
      %1073 = vmax.xlane.f32.xlu0 %v1072
      %v1074 = vpop.xlane.xlu0 %1073
      %v1075 = vsel %vm1065, %v1046, -inf
      %1076 = vmax.xlane.f32.xlu0 %v1075
      %v1077 = vpop.xlane.xlu0 %1076
      %v1078 = vsel %vm1065, %v1051, -inf
      %1079 = vmax.xlane.f32.xlu0 %v1078
      %v1080 = vpop.xlane.xlu0 %1079
      %v1081 = vsel %vm1065, %v1054, -inf
      %1082 = vmax.xlane.f32.xlu0 %v1081
      %v1083 = vpop.xlane.xlu0 %1082
      %v1084 = vsel %vm1065, %v1059, -inf
      %1085 = vmax.xlane.f32.xlu0 %v1084
      %v1086 = vpop.xlane.xlu0 %1085
      %v1087 = vsel %vm1065, %v1062, -inf
      %1088 = vmax.xlane.f32.xlu0 %v1087
      %v1089 = vpop.xlane.xlu0 %1088
      %v1090 = vsub.f32 %v1035, %v1068
      %v1091 = vsub.f32 %v1038, %v1071
      %v1092 = vsub.f32 %v1043, %v1074
      %v1093 = vsub.f32 %v1046, %v1077
      %v1094 = vsub.f32 %v1051, %v1080
      %v1095 = vsub.f32 %v1054, %v1083
      %v1096 = vsub.f32 %v1059, %v1086
      %v1097 = vsub.f32 %v1062, %v1089
      %v1098 = vmul.f32 %v1090, 1.442695
      %v1099 = vpow.pop %v1098
      %v1100 = vmul.f32 %v1091, 1.442695
      %v1101 = vpow.pop %v1100
      %v1102 = vmul.f32 %v1092, 1.442695
      %v1103 = vpow.pop %v1102
      %v1104 = vmul.f32 %v1093, 1.442695
      %v1105 = vpow.pop %v1104
      %v1106 = vmul.f32 %v1094, 1.442695
      %v1107 = vpow.pop %v1106
      %v1108 = vmul.f32 %v1095, 1.442695
      %v1109 = vpow.pop %v1108
      %v1110 = vmul.f32 %v1096, 1.442695
      %v1111 = vpow.pop %v1110
      %v1112 = vmul.f32 %v1097, 1.442695
      %v1113 = vpow.pop %v1112
      %v1114 = vsel %vm1065, %v1099, 0.0
      %1115 = vadd.xlane.f32.xlu0 %v1114
      %v1116 = vpop.xlane.xlu0 %1115
      %v1117 = vsel %vm1065, %v1101, 0.0
      %1118 = vadd.xlane.f32.xlu0 %v1117
      %v1119 = vpop.xlane.xlu0 %1118
      %v1120 = vsel %vm1065, %v1103, 0.0
      %1121 = vadd.xlane.f32.xlu0 %v1120
      %v1122 = vpop.xlane.xlu0 %1121
      %v1123 = vsel %vm1065, %v1105, 0.0
      %1124 = vadd.xlane.f32.xlu0 %v1123
      %v1125 = vpop.xlane.xlu0 %1124
      %v1126 = vsel %vm1065, %v1107, 0.0
      %1127 = vadd.xlane.f32.xlu0 %v1126
      %v1128 = vpop.xlane.xlu0 %1127
      %v1129 = vsel %vm1065, %v1109, 0.0
      %1130 = vadd.xlane.f32.xlu0 %v1129
      %v1131 = vpop.xlane.xlu0 %1130
      %v1132 = vsel %vm1065, %v1111, 0.0
      %1133 = vadd.xlane.f32.xlu0 %v1132
      %v1134 = vpop.xlane.xlu0 %1133
      %v1135 = vsel %vm1065, %v1113, 0.0
      %1136 = vadd.xlane.f32.xlu0 %v1135
      %v1137 = vpop.xlane.xlu0 %1136
      %v1138 = vrcp.pop %v1116
      %v1139 = vrcp.pop %v1119
      %v1140 = vrcp.pop %v1122
      %v1141 = vrcp.pop %v1125
      %v1142 = vrcp.pop %v1128
      %v1143 = vrcp.pop %v1131
      %v1144 = vrcp.pop %v1134
      %v1145 = vrcp.pop %v1137
      %v1146 = vmul.f32 %v1099, %v1138
      %v1147 = vmul.f32 %v1101, %v1139
      %v1148 = vmul.f32 %v1103, %v1140
      %v1149 = vmul.f32 %v1105, %v1141
      %v1150 = vmul.f32 %v1107, %v1142
      %v1151 = vmul.f32 %v1109, %v1143
      %v1152 = vmul.f32 %v1111, %v1144
      %v1153 = vmul.f32 %v1113, %v1145
      %v1154 = vpack.c.bf16 %v1147, %v1146
      %v1155 = vpack.c.bf16 %v1149, %v1148
      %v1156 = vpack.c.bf16 %v1151, %v1150
      %v1157 = vpack.c.bf16 %v1153, %v1152
      %v1158 = vpack.c.bf16 %v940, %v937
      %v1159 = vpack.c.bf16 %v948, %v945
      %v1160 = vpack.c.bf16 %v956, %v953
      %v1161 = vpack.c.bf16 %v964, %v961
      %v1163 = vsel %vm1065, %v1154, 0
      %v1166 = vsel %vm1065, %v1155, 0
      %v1169 = vsel %vm1065, %v1156, 0
      %v1172 = vsel %vm1065, %v1157, 0
      %1174 = vmatprep.subr.bf16.mxu0 0
      %1175 = vmatpush1.bf16.msra.mxu0 %v1158
      %1176 = vmatprep.subr.bf16.mxu0 0
      %1177 = vmatpush1.bf16.msra.mxu0 %v1159
      %1178 = vmatprep.subr.bf16.mxu0 0
      %1179 = vmatpush1.bf16.msra.mxu0 %v1160
      %1180 = vmatprep.subr.bf16.mxu0 0
      %1181 = vmatpush1.bf16.msra.mxu0 %v1161
      %1182 = vmatprep.subr.bf16.mxu0 0
      %1183 = vmatpush1.bf16.msra.mxu0 0
      %1184 = vmatprep.subr.bf16.mxu0 0
      %1185 = vmatpush1.bf16.msra.mxu0 0
      %1186 = vmatprep.subr.bf16.mxu0 0
      %1187 = vmatpush1.bf16.msra.mxu0 0
      %1188 = vmatprep.subr.bf16.mxu0 0
      %1189 = vmatpush1.bf16.msra.mxu0 0
      %1190 = vmatprep.subr.bf16.mxu0 0
      %1191 = vmatpush1.bf16.msra.mxu0 0
      %1192 = vmatprep.subr.bf16.mxu0 0
      %1193 = vmatpush1.bf16.msra.mxu0 0
      %1194 = vmatprep.subr.bf16.mxu0 0
      %1195 = vmatpush1.bf16.msra.mxu0 0
      %1196 = vmatprep.subr.bf16.mxu0 0
      %1197 = vmatpush1.bf16.msra.mxu0 0
      %1198 = vmatprep.subr.bf16.mxu0 0
      %1199 = vmatpush1.bf16.msra.mxu0 0
      %1200 = vmatprep.subr.bf16.mxu0 0
      %1201 = vmatpush1.bf16.msra.mxu0 0
      %1202 = vmatprep.subr.bf16.mxu0 0
      %1203 = vmatpush1.bf16.msra.mxu0 0
      %1204 = vmatprep.subr.bf16.mxu0 0
      %1205 = vmatpush1.bf16.msra.mxu0 0
      %1206 = vmatprep.mubr.bf16.mxu0 0
      %1207 = vmatmul.mubr.bf16.gmra.mrb[0].mxu0 %v1163
      %v1208 = vpop.f32.mrb[0].mxu0
      %v1209 = vadd.f32 0.0, %v1208
      %v1210 = vpop.f32.mrb[0].mxu0
      %v1211 = vpop.f32.mrb[0].mxu0
      %v1212 = vadd.f32 0.0, %v1211
      %v1213 = vpop.f32.mrb[0].mxu0
      %1214 = vmatprep.mubr.bf16.mxu0 0
      %1215 = vmatmul.mubr.bf16.gmra.mrb[0].mxu0 %v1166
      %v1216 = vpop.f32.mrb[0].mxu0
      %v1217 = vadd.f32 0.0, %v1216
      %v1218 = vpop.f32.mrb[0].mxu0
      %v1219 = vpop.f32.mrb[0].mxu0
      %v1220 = vadd.f32 0.0, %v1219
      %v1221 = vpop.f32.mrb[0].mxu0
      %1222 = vmatprep.mubr.bf16.mxu0 0
      %1223 = vmatmul.mubr.bf16.gmra.mrb[0].mxu0 %v1169
      %v1224 = vpop.f32.mrb[0].mxu0
      %v1225 = vadd.f32 0.0, %v1224
      %v1226 = vpop.f32.mrb[0].mxu0
      %v1227 = vpop.f32.mrb[0].mxu0
      %v1228 = vadd.f32 0.0, %v1227
      %v1229 = vpop.f32.mrb[0].mxu0
      %1230 = vmatprep.mubr.bf16.mxu0 0
      %1231 = vmatmul.mubr.bf16.gmra.mrb[0].mxu0 %v1172
      %v1232 = vpop.f32.mrb[0].mxu0
      %v1233 = vadd.f32 0.0, %v1232
      %v1234 = vpop.f32.mrb[0].mxu0
      %v1235 = vpop.f32.mrb[0].mxu0
      %v1236 = vadd.f32 0.0, %v1235
      %v1237 = vpop.f32.mrb[0].mxu0
      %1238 = vdwg.mxu0
      %v1239 = vld [vmem:[#allocation3] sm:$0xff]
      %v1240 = vld [vmem:[#allocation3 + $0x8] sm:$0xff]
      %v1241 = vld [vmem:[#allocation3 + $0x10] sm:$0xff]
      %v1242 = vld [vmem:[#allocation3 + $0x18] sm:$0xff]
      %v1243 = vld [vmem:[#allocation3 + $0x20] sm:$0xff]
      %v1244 = vld [vmem:[#allocation3 + $0x28] sm:$0xff]
      %v1245 = vld [vmem:[#allocation3 + $0x30] sm:$0xff]
      %v1246 = vld [vmem:[#allocation3 + $0x38] sm:$0xff]
      %v1247 = vpack.c.bf16 %v1212, %v1209
      %v1248 = vpack.c.bf16 %v1220, %v1217
      %v1249 = vpack.c.bf16 %v1228, %v1225
      %v1250 = vpack.c.bf16 %v1236, %v1233
      %v1251 = vld [vmem:[%s514] sm:$0xf]
      %v1253 = vsel %vm975, %v1247, 0
      %v1256 = vsel %vm975, %v1248, 0
      %v1259 = vsel %vm975, %v1249, 0
      %v1262 = vsel %vm975, %v1250, 0
      %vm1264 = vcmask 1043456
      %v1266 = vsel %vm1264, %v1251, 0
      %1268 = vmatprep.subr.bf16.mxu0 0
      %1269 = vmatpush1.bf16.msra.mxu0 %v1266
      %1270 = vmatprep.subr.bf16.mxu0 0
      %1271 = vmatpush1.bf16.msra.mxu0 0
      %1272 = vmatprep.subr.bf16.mxu0 0
      %1273 = vmatpush1.bf16.msra.mxu0 0
      %1274 = vmatprep.subr.bf16.mxu0 0
      %1275 = vmatpush1.bf16.msra.mxu0 0
      %1276 = vmatprep.subr.bf16.mxu0 0
      %1277 = vmatpush1.bf16.msra.mxu0 0
      %1278 = vmatprep.subr.bf16.mxu0 0
      %1279 = vmatpush1.bf16.msra.mxu0 0
      %1280 = vmatprep.subr.bf16.mxu0 0
      %1281 = vmatpush1.bf16.msra.mxu0 0
      %1282 = vmatprep.subr.bf16.mxu0 0
      %1283 = vmatpush1.bf16.msra.mxu0 0
      %1284 = vmatprep.subr.bf16.mxu0 0
      %1285 = vmatpush1.bf16.msra.mxu0 0
      %1286 = vmatprep.subr.bf16.mxu0 0
      %1287 = vmatpush1.bf16.msra.mxu0 0
      %1288 = vmatprep.subr.bf16.mxu0 0
      %1289 = vmatpush1.bf16.msra.mxu0 0
      %1290 = vmatprep.subr.bf16.mxu0 0
      %1291 = vmatpush1.bf16.msra.mxu0 0
      %1292 = vmatprep.subr.bf16.mxu0 0
      %1293 = vmatpush1.bf16.msra.mxu0 0
      %1294 = vmatprep.subr.bf16.mxu0 0
      %1295 = vmatpush1.bf16.msra.mxu0 0
      %1296 = vmatprep.subr.bf16.mxu0 0
      %1297 = vmatpush1.bf16.msra.mxu0 0
      %1298 = vmatprep.subr.bf16.mxu0 0
      %1299 = vmatpush1.bf16.msra.mxu0 0
      %1300 = vmatprep.mubr.bf16.mxu0 0
      %1301 = vmatmul.mubr.bf16.gmra.mrb[0].mxu0 %v1253
      %v1302 = vpop.f32.mrb[0].mxu0
      %v1303 = vadd.f32 0.0, %v1302
      %v1304 = vpop.f32.mrb[0].mxu0
      %v1305 = vpop.f32.mrb[0].mxu0
      %v1306 = vadd.f32 0.0, %v1305
      %v1307 = vpop.f32.mrb[0].mxu0
      %1308 = vmatprep.mubr.bf16.mxu0 0
      %1309 = vmatmul.mubr.bf16.gmra.mrb[0].mxu0 %v1256
      %v1310 = vpop.f32.mrb[0].mxu0
      %v1311 = vadd.f32 0.0, %v1310
      %v1312 = vpop.f32.mrb[0].mxu0
      %v1313 = vpop.f32.mrb[0].mxu0
      %v1314 = vadd.f32 0.0, %v1313
      %v1315 = vpop.f32.mrb[0].mxu0
      %1316 = vmatprep.mubr.bf16.mxu0 0
      %1317 = vmatmul.mubr.bf16.gmra.mrb[0].mxu0 %v1259
      %v1318 = vpop.f32.mrb[0].mxu0
      %v1319 = vadd.f32 0.0, %v1318
      %v1320 = vpop.f32.mrb[0].mxu0
      %v1321 = vpop.f32.mrb[0].mxu0
      %v1322 = vadd.f32 0.0, %v1321
      %v1323 = vpop.f32.mrb[0].mxu0
      %1324 = vmatprep.mubr.bf16.mxu0 0
      %1325 = vmatmul.mubr.bf16.gmra.mrb[0].mxu0 %v1262
      %v1326 = vpop.f32.mrb[0].mxu0
      %v1327 = vadd.f32 0.0, %v1326
      %v1328 = vpop.f32.mrb[0].mxu0
      %v1329 = vpop.f32.mrb[0].mxu0
      %v1330 = vadd.f32 0.0, %v1329
      %v1331 = vpop.f32.mrb[0].mxu0
      %1332 = vdwg.mxu0
      %v1333 = vadd.f32 %v1239, %v1303
      %v1334 = vadd.f32 %v1240, %v1306
      %v1335 = vadd.f32 %v1241, %v1311
      %v1336 = vadd.f32 %v1242, %v1314
      %v1337 = vadd.f32 %v1243, %v1319
      %v1338 = vadd.f32 %v1244, %v1322
      %v1339 = vadd.f32 %v1245, %v1327
      %v1340 = vadd.f32 %v1246, %v1330
      %1341 = vst.msk [vmem:[#allocation3] sm:$0xff] %vm713, %v1333
      %1342 = vst.msk [vmem:[#allocation3 + $0x8] sm:$0xff] %vm713, %v1334
      %1343 = vst.msk [vmem:[#allocation3 + $0x10] sm:$0xff] %vm713, %v1335
      %1344 = vst.msk [vmem:[#allocation3 + $0x18] sm:$0xff] %vm713, %v1336
      %1345 = vst.msk [vmem:[#allocation3 + $0x20] sm:$0xff] %vm713, %v1337
      %1346 = vst.msk [vmem:[#allocation3 + $0x28] sm:$0xff] %vm713, %v1338
      %1347 = vst.msk [vmem:[#allocation3 + $0x30] sm:$0xff] %vm713, %v1339
      %1348 = vst.msk [vmem:[#allocation3 + $0x38] sm:$0xff] %vm713, %v1340
      %p1349 = scmp.eq.s32.totalorder %s27, 3
      // Predicated region
      $region69: #{tsd_b_forward.6} parent=63 // pred_check
        %p1350 = pneg %p1349
      $region70: #{tsd_b_forward.6} parent=63 // pred_check_branch
        %1352 = sbr.rel (%p1350) target = $region72
      $region71: #{tsd_b_forward.6} parent=63 // pred_region
        %v1353 = vld [vmem:[%s485] sm:$0xff]
        %v1354 = vld [vmem:[%s485 + $0x8] sm:$0xff]
        %v1355 = vld [vmem:[%s485 + $0x10] sm:$0xff]
        %v1356 = vld [vmem:[%s485 + $0x18] sm:$0xff]
        %v1357 = vld [vmem:[%s485 + $0x20] sm:$0xff]
        %v1358 = vld [vmem:[%s485 + $0x28] sm:$0xff]
        %v1359 = vld [vmem:[%s485 + $0x30] sm:$0xff]
        %v1360 = vld [vmem:[%s485 + $0x38] sm:$0xff]
        %v1361 = vld [vmem:[#allocation3] sm:$0xff]
        %v1362 = vld [vmem:[#allocation3 + $0x8] sm:$0xff]
        %v1363 = vld [vmem:[#allocation3 + $0x10] sm:$0xff]
        %v1364 = vld [vmem:[#allocation3 + $0x18] sm:$0xff]
        %v1365 = vld [vmem:[#allocation3 + $0x20] sm:$0xff]
        %v1366 = vld [vmem:[#allocation3 + $0x28] sm:$0xff]
        %v1367 = vld [vmem:[#allocation3 + $0x30] sm:$0xff]
        %v1368 = vld [vmem:[#allocation3 + $0x38] sm:$0xff]
        %v1369 = vadd.f32 %v1353, %v1361
        %v1370 = vadd.f32 %v1354, %v1362
        %v1371 = vadd.f32 %v1355, %v1363
        %v1372 = vadd.f32 %v1356, %v1364
        %v1373 = vadd.f32 %v1357, %v1365
        %v1374 = vadd.f32 %v1358, %v1366
        %v1375 = vadd.f32 %v1359, %v1367
        %v1376 = vadd.f32 %v1360, %v1368
        %v1377 = vld [vmem:[%s10] sm:$0x1]
        %v1379 = vlaneseq
        %v1380 = vshrl.u32 %v1379, 7
        %v1381 = vsub.s32 0, %v1380
        %v1382 = vrot.slane %v1377, %v1381
        %v1384 = vadd.f32 %v1369, %v1382
        %v1385 = vadd.f32 %v1370, %v1382
        %v1386 = vadd.f32 %v1371, %v1382
        %v1387 = vadd.f32 %v1372, %v1382
        %v1388 = vadd.f32 %v1373, %v1382
        %v1389 = vadd.f32 %v1374, %v1382
        %v1390 = vadd.f32 %v1375, %v1382
        %v1391 = vadd.f32 %v1376, %v1382
        %1392 = vst.msk [vmem:[%s519] sm:$0xff] %vm713, %v1384
        %1393 = vst.msk [vmem:[%s519 + $0x8] sm:$0xff] %vm713, %v1385
        %1394 = vst.msk [vmem:[%s519 + $0x10] sm:$0xff] %vm713, %v1386
        %1395 = vst.msk [vmem:[%s519 + $0x18] sm:$0xff] %vm713, %v1387
        %1396 = vst.msk [vmem:[%s519 + $0x20] sm:$0xff] %vm713, %v1388
        %1397 = vst.msk [vmem:[%s519 + $0x28] sm:$0xff] %vm713, %v1389
        %1398 = vst.msk [vmem:[%s519 + $0x30] sm:$0xff] %vm713, %v1390
        %1399 = vst.msk [vmem:[%s519 + $0x38] sm:$0xff] %vm713, %v1391
      $region72: #{tsd_b_forward.6} parent=63 // pred_fallthru
        _
      %s1400 = smul.u32 8, %s26
      %p1401 = scmp.lt.s32.totalorder %s1400, 15
      %s1402 = scalar_select %p1401, %s1400, 15
      %s1403 = smul.addr %s1402, 8
      %s1404 = scalar_lea.vmem %s11, %s1403
      // Predicated region
      $region73: #{tsd_b_forward.6} parent=63 // pred_check
        %p1405 = pneg %p323
      $region74: #{tsd_b_forward.6} parent=63 // pred_check_branch
        %1407 = sbr.rel (%p1405) target = $region76
      $region75: #{tsd_b_forward.6} parent=63 // pred_region
        %s1408 = smul.u32 8, %s26
      $region76: #{tsd_b_forward.6} parent=63 // pred_fallthru
        _
    $region64: #{tsd_b_forward.6} parent=5 // pred_fallthru
      _
    %p1409 = scmp.le.s32.totalorder 2, %s17
    // Predicated region
    $region77: #{tsd_b_forward.6} parent=5 // pred_check
      %p1410 = pneg %p1409
    $region78: #{tsd_b_forward.6} parent=5 // pred_check_branch
      %1412 = sbr.rel (%p1410) target = $region80
    $region79: #{tsd_b_forward.6} parent=5 // pred_region
      %s1413 = ssub.s32 %s17, 2
      // Predicated region
      $region81: #{tsd_b_forward.6} parent=79 // pred_check
        %p1414 = pneg %p329
      $region82: #{tsd_b_forward.6} parent=79 // pred_check_branch
        %1416 = sbr.rel (%p1414) target = $region84
      $region83: #{tsd_b_forward.6} parent=79 // pred_region
        %s1417 = smul.u32 8, %s28
        %p1418 = scmp.lt.s32.totalorder %s1417, 15
        %s1419 = scalar_select %p1418, %s1417, 15
        %s1420 = smul.addr %s1419, 8
        %s1421 = scalar_lea.vmem %s11, %s1420
      $region84: #{tsd_b_forward.6} parent=79 // pred_fallthru
        _
    $region80: #{tsd_b_forward.6} parent=5 // pred_fallthru
      _
  $region6: #{tsd_b_forward.6} parent=0 // loop_footer
    %s21 = sadd.s32 1, %s17
  $region7: #{tsd_b_forward.6} parent=0 // loop_footer_branch
    %16 = sbr.rel target = $region3
  $region8: #{tsd_b_forward.6} parent=0 // loop_exit
    _

</llo_original>
